<compile_context>
chip_gen: v7x
topology: tpu7x:2x2x1
jax: 0.10.0
libtpu: 0.0.40
codegen_flags: <defaults>
</compile_context>

<pallas_src>
import jax
import jax.numpy as jnp
from jax.experimental import pallas as pl
from jax.experimental.pallas import tpu as pltpu


NUM_CLASSES = 7
HEAD_PAD = 128          # lane-dense padded head width (slice [:, :7] outside)
EMBED = 512
IR_FEAT = 1024
BATCH_TILE = 256        # batch tile for the large-batch grid path


# -----------------------------------------------------------------------------
# Fused Pallas kernel: ir_layer1  +  SE_block  +  ClassificationHead
# -----------------------------------------------------------------------------
def _fused_tail_kernel(x_cnn_ref, y_ref,
                       ir_w_ref, ir_b_ref,
                       se_w1_ref, se_b1_ref,
                       se_w2_ref, se_b2_ref,
                       head_w_ref, head_b_ref,
                       cnn_out_ref, logits_ref):
    """Two independent branches, one kernel:

      cnn512 = x_cnn @ ir_w + ir_b                      (ir_layer1)
      h      = relu(y @ w1 + b1)                        (SE_block.linear1+relu)
      g      = sigmoid(h @ w2 + b2)                     (SE_block.linear2+sigmoid)
      z      = y * g                                    (SE gating)
      logits = z @ head_w + head_b                      (ClassificationHead)

    Weights are bf16 (fed straight to the MXU), biases & accumulators are f32.
    """
    # --- ir_layer1 branch --------------------------------------------------
    x_cnn = x_cnn_ref[...]                                   # (TB, 1024) f32
    cnn = jnp.dot(x_cnn.astype(jnp.bfloat16), ir_w_ref[...],
                  preferred_element_type=jnp.float32) + ir_b_ref[...]
    cnn_out_ref[...] = cnn

    # --- SE_block + head branch ---------------------------------------------
    y = y_ref[...]                                           # (TB, 512) f32, read once
    y_bf = y.astype(jnp.bfloat16)

    h = jnp.dot(y_bf, se_w1_ref[...],
                preferred_element_type=jnp.float32) + se_b1_ref[...]
    h = jnp.maximum(h, 0.0)                                  # ReLU

    g = jnp.dot(h.astype(jnp.bfloat16), se_w2_ref[...],
                preferred_element_type=jnp.float32) + se_b2_ref[...]
    g = jax.nn.sigmoid(g)                                    # Sigmoid (EUP)

    z = y * g                                                # SE gating (f32)

    logits = jnp.dot(z.astype(jnp.bfloat16), head_w_ref[...],
                     preferred_element_type=jnp.float32) + head_b_ref[...]
    logits_ref[...] = logits                                 # (TB, 128) lane-dense


# -----------------------------------------------------------------------------
# Wrapper helpers
# -----------------------------------------------------------------------------
_VMEM = pl.BlockSpec(memory_space=pltpu.MemorySpace.VMEM)


def _round_up(x, m):
    return (x + m - 1) // m * m


def _cost(nrows):
    flops = 2 * nrows * (IR_FEAT * EMBED + 2 * EMBED * EMBED + EMBED * HEAD_PAD)
    bytes_accessed = (
        2 * (IR_FEAT * EMBED + 2 * EMBED * EMBED + EMBED * HEAD_PAD)   # bf16 weights
        + 4 * (3 * EMBED + HEAD_PAD)                                    # f32 biases
        + 4 * nrows * (IR_FEAT + EMBED)                                 # f32 activations in
        + 4 * nrows * (EMBED + HEAD_PAD))                               # f32 outputs
    return pl.CostEstimate(flops=flops, transcendentals=nrows * EMBED,
                           bytes_accessed=bytes_accessed)


def _tail_small(x_cnn, y_vit, p):
    """Small batch: single call, full-array VMEM blocks, no padding/slicing."""
    B = x_cnn.shape[0]
    cnn512, logits = pl.pallas_call(
        _fused_tail_kernel,
        out_shape=(jax.ShapeDtypeStruct((B, EMBED), jnp.float32),
                   jax.ShapeDtypeStruct((B, HEAD_PAD), jnp.float32)),
        in_specs=[_VMEM] * 10,
        out_specs=(_VMEM, _VMEM),
        cost_estimate=_cost(B),
    )(x_cnn, y_vit, *p)
    return cnn512, logits


def _tail_grid(x_cnn, y_vit, p, tb=BATCH_TILE):
    """Large batch: batch grid, weights resident (constant index_map)."""
    B = x_cnn.shape[0]
    Bp = _round_up(B, tb)
    if Bp != B:                       # pad cost amortized over the large batch
        x_cnn = jnp.pad(x_cnn, ((0, Bp - B), (0, 0)))
        y_vit = jnp.pad(y_vit, ((0, Bp - B), (0, 0)))

    def w_spec(shape):
        return pl.BlockSpec(shape, lambda i: (0, 0))

    cnn512, logits = pl.pallas_call(
        _fused_tail_kernel,
        out_shape=(jax.ShapeDtypeStruct((Bp, EMBED), jnp.float32),
                   jax.ShapeDtypeStruct((Bp, HEAD_PAD), jnp.float32)),
        grid_spec=pltpu.PrefetchScalarGridSpec(
            num_scalar_prefetch=0, grid=(Bp // tb,),
            in_specs=[
                pl.BlockSpec((tb, IR_FEAT), lambda i: (i, 0)),
                pl.BlockSpec((tb, EMBED), lambda i: (i, 0)),
                w_spec((IR_FEAT, EMBED)), w_spec((1, EMBED)),
                w_spec((EMBED, EMBED)), w_spec((1, EMBED)),
                w_spec((EMBED, EMBED)), w_spec((1, EMBED)),
                w_spec((EMBED, HEAD_PAD)), w_spec((1, HEAD_PAD)),
            ],
            out_specs=[
                pl.BlockSpec((tb, EMBED), lambda i: (i, 0)),
                pl.BlockSpec((tb, HEAD_PAD), lambda i: (i, 0)),
            ]),
        compiler_params=pltpu.CompilerParams(
            dimension_semantics=("parallel",)),
        cost_estimate=_cost(Bp),
    )(x_cnn, y_vit, *p)
    return cnn512[:B], logits[:B]


@jax.jit
def baseline_tail(x_cnn_feature, y_vit, params):
    """Pallas-implemented portion of BaseLine.forward.

    x_cnn_feature : (B, 1024) f32   (ir_back output)
    y_vit         : (B, 512)  f32   (ViT output)
    returns (logits (B, 7), cnn512 (B, 512))
    """
    B = x_cnn_feature.shape[0]
    p = (params["ir_w"], params["ir_b"],
         params["se_w1"], params["se_b1"],
         params["se_w2"], params["se_b2"],
         params["head_w"], params["head_b"])
    if B > BATCH_TILE:
        cnn512, logits = _tail_grid(x_cnn_feature, y_vit, p)
    else:
        cnn512, logits = _tail_small(x_cnn_feature, y_vit, p)
    return logits[:, :NUM_CLASSES], cnn512


# -----------------------------------------------------------------------------
# Glue: F.interpolate(x, size=112) equivalent (PyTorch default mode='nearest').
# Its consumers (MobileFaceNet backbones) are unavailable; kept for fidelity.
# -----------------------------------------------------------------------------
def interpolate_nearest_nchw(x, size):
    b, c, h, w = x.shape
    rows = (jnp.arange(size) * h // size).astype(jnp.int32)
    cols = (jnp.arange(size) * w // size).astype(jnp.int32)
    return x[:, :, rows[:, None], cols[None, :]]


# -----------------------------------------------------------------------------
# Deterministic parameter init (PyTorch nn.Linear default: U(-1/sqrt(fan_in), +))
# Weights stored bf16 (MXU-native, half the HBM bytes of f32), biases f32.
# -----------------------------------------------------------------------------
def init_linear(key, d_in, d_out, pad_out=None):
    kw, kb = jax.random.split(key)
    bound = 1.0 / jnp.sqrt(float(d_in))
    w = jax.random.uniform(kw, (d_in, d_out), jnp.float32, -bound, bound)
    b = jax.random.uniform(kb, (1, d_out), jnp.float32, -bound, bound)
    if pad_out is not None and pad_out > d_out:
        w = jnp.pad(w, ((0, 0), (0, pad_out - d_out)))
        b = jnp.pad(b, ((0, 0), (0, pad_out - d_out)))
    return w.astype(jnp.bfloat16), b


def baseline_tail_forward(x, x_lbp_hog, x_cnn_feature_1024, y_vit_512, params):
    """Pallas-implemented portion of BaseLine.forward (plus image-branch glue)."""
    _x_face = interpolate_nearest_nchw(x, 112)
    _x_lbp = interpolate_nearest_nchw(x_lbp_hog, 112)
    # TODO(synk): face_landback / face_landback2 / ir_back / ViT not available.
    logits, cnn512 = baseline_tail(x_cnn_feature_1024, y_vit_512, params)
    return logits, cnn512


if __name__ == "__main__":
    B = 2
    IMG = 16  # small spatial size for the (unused-by-kernel) image inputs

    key = jax.random.PRNGKey(0)
    (k_img, k_lbp, k_cnn, k_vit, k1, k2, k3, k4,
     k_cnn_big, k_vit_big) = jax.random.split(key, 10)

    # module inputs (NCHW images) + backbone/ViT features (see TODO above)
    x = jax.random.normal(k_img, (B, 3, IMG, IMG), jnp.float32)
    x_lbp_hog = jax.random.normal(k_lbp, (B, 3, IMG, IMG), jnp.float32)
    x_cnn_feature = jax.random.normal(k_cnn, (B, IR_FEAT), jnp.float32)
    y_vit = jax.random.normal(k_vit, (B, EMBED), jnp.float32)

    # parameters (weights bf16, biases f32; head padded to 128 lanes)
    ir_w, ir_b = init_linear(k1, IR_FEAT, EMBED)                    # ir_layer1
    se_w1, se_b1 = init_linear(k2, EMBED, EMBED)                    # SE_block.linear1
    se_w2, se_b2 = init_linear(k3, EMBED, EMBED)                    # SE_block.linear2
    head_w, head_b = init_linear(k4, EMBED, NUM_CLASSES, HEAD_PAD)  # ClassificationHead

    params = dict(ir_w=ir_w, ir_b=ir_b,
                  se_w1=se_w1, se_b1=se_b1,
                  se_w2=se_w2, se_b2=se_b2,
                  head_w=head_w, head_b=head_b)

    out, cnn512 = baseline_tail_forward(x, x_lbp_hog, x_cnn_feature, y_vit,
                                        params)
    jax.block_until_ready((out, cnn512))

    # plain JAX reference mirroring the bf16 MXU operand types (f32 accumulate)
    def bdot(a, w):
        return jnp.dot(a.astype(jnp.bfloat16), w,
                       preferred_element_type=jnp.float32)

    def ref_tail(xc, yv):
        ref_cnn = bdot(xc, ir_w) + ir_b
        h = jnp.maximum(bdot(yv, se_w1) + se_b1, 0.0)
        g = jax.nn.sigmoid(bdot(h, se_w2) + se_b2)
        z = yv * g
        ref_out = (bdot(z, head_w) + head_b)[:, :NUM_CLASSES]
        return ref_out, ref_cnn

    ref_out, ref_cnn = ref_tail(x_cnn_feature, y_vit)
    assert out.shape == (B, NUM_CLASSES)
    assert cnn512.shape == (B, EMBED)
    assert jnp.allclose(out, ref_out, atol=1e-2, rtol=1e-2)
    assert jnp.allclose(cnn512, ref_cnn, atol=1e-2, rtol=1e-2)

    # exercise the large-batch grid path (batch tiles, resident weights)
    Bg = 512
    x_big = jax.random.normal(k_cnn_big, (Bg, IR_FEAT), jnp.float32)
    y_big = jax.random.normal(k_vit_big, (Bg, EMBED), jnp.float32)
    out_g, cnn_g = baseline_tail(x_big, y_big, params)
    jax.block_until_ready((out_g, cnn_g))
    ref_out_g, ref_cnn_g = ref_tail(x_big, y_big)
    assert out_g.shape == (Bg, NUM_CLASSES)
    assert cnn_g.shape == (Bg, EMBED)
    assert jnp.allclose(out_g, ref_out_g, atol=1e-2, rtol=1e-2)
    assert jnp.allclose(cnn_g, ref_cnn_g, atol=1e-2, rtol=1e-2)

    print("KERNEL_OK")
</pallas_src>

<mosaic_0001>
module attributes {stable_mosaic.version = 11 : i64} {
  func.func @_fused_tail_kernel(%arg0: memref<2x1024xf32, #tpu.memory_space<vmem>>, %arg1: memref<2x512xf32, #tpu.memory_space<vmem>>, %arg2: memref<1024x512xbf16, #tpu.memory_space<vmem>>, %arg3: memref<1x512xf32, #tpu.memory_space<vmem>>, %arg4: memref<512x512xbf16, #tpu.memory_space<vmem>>, %arg5: memref<1x512xf32, #tpu.memory_space<vmem>>, %arg6: memref<512x512xbf16, #tpu.memory_space<vmem>>, %arg7: memref<1x512xf32, #tpu.memory_space<vmem>>, %arg8: memref<512x128xbf16, #tpu.memory_space<vmem>>, %arg9: memref<1x128xf32, #tpu.memory_space<vmem>>, %arg10: memref<2x512xf32, #tpu.memory_space<vmem>>, %arg11: memref<2x128xf32, #tpu.memory_space<vmem>>) attributes {dimension_semantics = [], scalar_prefetch = 0 : i64, scratch_operands = 0 : i64, tpu.core_type = #tpu.core_type<tc>} {
    %c0 = arith.constant 0 : index
    %c0_0 = arith.constant 0 : index
    %0 = vector.load %arg0[%c0, %c0_0] : memref<2x1024xf32, #tpu.memory_space<vmem>>, vector<2x1024xf32>
    %1 = arith.truncf %0 : vector<2x1024xf32> to vector<2x1024xbf16>
    %c0_1 = arith.constant 0 : index
    %c0_2 = arith.constant 0 : index
    %2 = vector.load %arg2[%c0_1, %c0_2] : memref<1024x512xbf16, #tpu.memory_space<vmem>>, vector<1024x512xbf16>
    %cst = arith.constant dense<0.000000e+00> : vector<2x512xf32>
    %3 = tpu.matmul %1, %2, %cst {dimension_numbers = #tpu.dot_dimension_numbers<[1], [0], [0], [1], [0, 0, 1, 1], [], []>} : vector<2x1024xbf16>, vector<1024x512xbf16>, vector<2x512xf32> -> vector<2x512xf32>
    %c0_3 = arith.constant 0 : index
    %c0_4 = arith.constant 0 : index
    %4 = vector.load %arg3[%c0_3, %c0_4] : memref<1x512xf32, #tpu.memory_space<vmem>>, vector<1x512xf32>
    %5 = vector.broadcast %4 : vector<1x512xf32> to vector<2x512xf32>
    %6 = arith.addf %3, %5 : vector<2x512xf32>
    %c0_5 = arith.constant 0 : index
    %c0_6 = arith.constant 0 : index
    %7 = vector.load %arg10[%c0_5, %c0_6] : memref<2x512xf32, #tpu.memory_space<vmem>>, vector<2x512xf32>
    tpu.vector_store %arg10[%c0_5, %c0_6], %6 {strides = array<i32>} : memref<2x512xf32, #tpu.memory_space<vmem>>, vector<2x512xf32>,
    %c0_7 = arith.constant 0 : index
    %c0_8 = arith.constant 0 : index
    %8 = vector.load %arg1[%c0_7, %c0_8] : memref<2x512xf32, #tpu.memory_space<vmem>>, vector<2x512xf32>
    %9 = arith.truncf %8 : vector<2x512xf32> to vector<2x512xbf16>
    %c0_9 = arith.constant 0 : index
    %c0_10 = arith.constant 0 : index
    %10 = vector.load %arg4[%c0_9, %c0_10] : memref<512x512xbf16, #tpu.memory_space<vmem>>, vector<512x512xbf16>
    %cst_11 = arith.constant dense<0.000000e+00> : vector<2x512xf32>
    %11 = tpu.matmul %9, %10, %cst_11 {dimension_numbers = #tpu.dot_dimension_numbers<[1], [0], [0], [1], [0, 0, 1, 1], [], []>} : vector<2x512xbf16>, vector<512x512xbf16>, vector<2x512xf32> -> vector<2x512xf32>
    %c0_12 = arith.constant 0 : index
    %c0_13 = arith.constant 0 : index
    %12 = vector.load %arg5[%c0_12, %c0_13] : memref<1x512xf32, #tpu.memory_space<vmem>>, vector<1x512xf32>
    %13 = vector.broadcast %12 : vector<1x512xf32> to vector<2x512xf32>
    %14 = arith.addf %11, %13 : vector<2x512xf32>
    %cst_14 = arith.constant 0.000000e+00 : f32
    %15 = vector.broadcast %cst_14 : f32 to vector<2x512xf32>
    %16 = arith.maximumf %14, %15 : vector<2x512xf32>
    %17 = arith.truncf %16 : vector<2x512xf32> to vector<2x512xbf16>
    %c0_15 = arith.constant 0 : index
    %c0_16 = arith.constant 0 : index
    %18 = vector.load %arg6[%c0_15, %c0_16] : memref<512x512xbf16, #tpu.memory_space<vmem>>, vector<512x512xbf16>
    %cst_17 = arith.constant dense<0.000000e+00> : vector<2x512xf32>
    %19 = tpu.matmul %17, %18, %cst_17 {dimension_numbers = #tpu.dot_dimension_numbers<[1], [0], [0], [1], [0, 0, 1, 1], [], []>} : vector<2x512xbf16>, vector<512x512xbf16>, vector<2x512xf32> -> vector<2x512xf32>
    %c0_18 = arith.constant 0 : index
    %c0_19 = arith.constant 0 : index
    %20 = vector.load %arg7[%c0_18, %c0_19] : memref<1x512xf32, #tpu.memory_space<vmem>>, vector<1x512xf32>
    %21 = vector.broadcast %20 : vector<1x512xf32> to vector<2x512xf32>
    %22 = arith.addf %19, %21 : vector<2x512xf32>
    %23 = arith.negf %22 : vector<2x512xf32>
    %24 = math.exp %23 : vector<2x512xf32>
    %cst_20 = arith.constant 1.000000e+00 : f32
    %25 = vector.broadcast %cst_20 : f32 to vector<2x512xf32>
    %26 = arith.addf %25, %24 : vector<2x512xf32>
    %27 = arith.divf %25, %26 : vector<2x512xf32>
    %28 = arith.mulf %8, %27 : vector<2x512xf32>
    %29 = arith.truncf %28 : vector<2x512xf32> to vector<2x512xbf16>
    %c0_21 = arith.constant 0 : index
    %c0_22 = arith.constant 0 : index
    %30 = vector.load %arg8[%c0_21, %c0_22] : memref<512x128xbf16, #tpu.memory_space<vmem>>, vector<512x128xbf16>
    %cst_23 = arith.constant dense<0.000000e+00> : vector<2x128xf32>
    %31 = tpu.matmul %29, %30, %cst_23 {dimension_numbers = #tpu.dot_dimension_numbers<[1], [0], [0], [1], [0, 0, 1, 1], [], []>} : vector<2x512xbf16>, vector<512x128xbf16>, vector<2x128xf32> -> vector<2x128xf32>
    %c0_24 = arith.constant 0 : index
    %c0_25 = arith.constant 0 : index
    %32 = vector.load %arg9[%c0_24, %c0_25] : memref<1x128xf32, #tpu.memory_space<vmem>>, vector<1x128xf32>
    %33 = vector.broadcast %32 : vector<1x128xf32> to vector<2x128xf32>
    %34 = arith.addf %31, %33 : vector<2x128xf32>
    %c0_26 = arith.constant 0 : index
    %c0_27 = arith.constant 0 : index
    %35 = vector.load %arg11[%c0_26, %c0_27] : memref<2x128xf32, #tpu.memory_space<vmem>>, vector<2x128xf32>
    tpu.vector_store %arg11[%c0_26, %c0_27], %34 {strides = array<i32>} : memref<2x128xf32, #tpu.memory_space<vmem>>, vector<2x128xf32>,
    return
  }
}

</mosaic_0001>

<llo_original>
// kernel: baseline_tail.1
$region0: #{baseline_tail.1}
  #allocation0 [shape = 'u32[]', space=smem, size = 0x4, offset = 0x4, fixed_abs, tag = 'smem constant byte address 0x4 - core index']
  #allocation1 [shape = 'u32[144,128]{1,0:T(1,128)}', space=vmem, size = 0x12000, scoped, tag = 'internal scratch']
  %s0 = inlined_call_operand.hbm [shape: f32[2,1024], index: 0, kind: input, shape index: {}]
  %s1 = inlined_call_operand.hbm [shape: f32[2,512], index: 1, kind: input, shape index: {}]
  %s2 = inlined_call_operand.hbm [shape: bf16[1024,512], index: 2, kind: input, shape index: {}]
  %s3 = inlined_call_operand.vmem [shape: f32[1,512], index: 3, kind: input, shape index: {}]
  %s4 = inlined_call_operand.hbm [shape: bf16[512,512], index: 4, kind: input, shape index: {}]
  %s5 = inlined_call_operand.vmem [shape: f32[1,512], index: 5, kind: input, shape index: {}]
  %s6 = inlined_call_operand.hbm [shape: bf16[512,512], index: 6, kind: input, shape index: {}]
  %s7 = inlined_call_operand.vmem [shape: f32[1,512], index: 7, kind: input, shape index: {}]
  %s8 = inlined_call_operand.hbm [shape: bf16[512,128], index: 8, kind: input, shape index: {}]
  %s9 = inlined_call_operand.vmem [shape: f32[1,128], index: 9, kind: input, shape index: {}]
  %s10 = inlined_call_operand.hbm [shape: f32[2,512], index: 10, kind: output, shape index: {0}]
  %s11 = inlined_call_operand.hbm [shape: f32[2,128], index: 11, kind: output, shape index: {1}]
  %12 = xla_tuple %s10, %s11
  %s13 = sld [smem:[#allocation0]]
  $region82: #{baseline_tail.1} parent=0
    _
  %s15 = ssub.s32 1, %s13
  %s16 = scalar_select 0, %s15, %s13
  $region1: #{baseline_tail.1} parent=0
    #allocation2 [shape = 'u8[8192]{0}', space=vmem, size = 0x2000, scoped, tag = 'input window, operand 0, single buffered']
    #allocation3 [shape = 's32[1]{0}', space=sflag, size = 0x4, scoped, tag = 'scoped memory for baseline_tail.1']
    #allocation4 [shape = 's32[1]{0}', space=sflag, size = 0x4, scoped, tag = 'scoped memory for baseline_tail.1']
    #allocation5 [shape = 'u8[4096]{0}', space=vmem, size = 0x1000, scoped, tag = 'input window, operand 1, single buffered']
    #allocation6 [shape = 's32[1]{0}', space=sflag, size = 0x4, scoped, tag = 'scoped memory for baseline_tail.1']
    #allocation7 [shape = 'u8[1048576]{0}', space=vmem, size = 0x100000, scoped, tag = 'input window, operand 2, single buffered']
    #allocation8 [shape = 'u8[524288]{0}', space=vmem, size = 0x80000, scoped, tag = 'input window, operand 4, single buffered']
    #allocation9 [shape = 's32[1]{0}', space=sflag, size = 0x4, scoped, tag = 'scoped memory for baseline_tail.1']
    #allocation10 [shape = 'u8[524288]{0}', space=vmem, size = 0x80000, scoped, tag = 'input window, operand 6, single buffered']
    #allocation11 [shape = 'u8[131072]{0}', space=vmem, size = 0x20000, scoped, tag = 'input window, operand 8, single buffered']
    #allocation12 [shape = 's32[1]{0}', space=sflag, size = 0x4, scoped, tag = 'scoped memory for baseline_tail.1']
    #allocation13 [shape = 'u8[4096]{0}', space=vmem, size = 0x1000, scoped, tag = 'output window, operand 0, single buffered']
    #allocation14 [shape = 'u8[1024]{0}', space=vmem, size = 0x400, scoped, tag = 'output window, operand 1, single buffered']
    #allocation15 [shape = 's32[1]{0}', space=sflag, size = 0x4, scoped, tag = 'scoped memory for baseline_tail.1']
    %17 = vsyncpa [#allocation3], 0
    %18 = vsyncpa [#allocation6], 0
    %19 = vsyncpa [#allocation9], 0
    %20 = vsyncpa [#allocation12], 0
    %21 = vsyncpa [#allocation4], 0
    %22 = vsyncpa [#allocation15], 0
    // Predicated region
    $region2: #{baseline_tail.1} parent=1 // pred_check
      _
    $region3: #{baseline_tail.1} parent=1 // pred_check_branch
      %24 = sbr.rel (0) target = $region5
    $region4: #{baseline_tail.1} parent=1 // pred_region
      %s26 = ssub.s32 256, 256
      %27 = vsyncadd [#allocation3], %s26
      %s29 = sshll.u32 [#allocation2], 4
      %s30 = int_to_ptr.vmem [resolvable:$true] %s29
      %32 = dma.hbm_to_vmem [thread:$0]  %s0, 256, %s30, [#allocation3]
    $region5: #{baseline_tail.1} parent=1 // pred_fallthru
      _
    // Predicated region
    $region6: #{baseline_tail.1} parent=1 // pred_check
      _
    $region7: #{baseline_tail.1} parent=1 // pred_check_branch
      %34 = sbr.rel (0) target = $region9
    $region8: #{baseline_tail.1} parent=1 // pred_region
      %s36 = ssub.s32 128, 128
      %37 = vsyncadd [#allocation6], %s36
      %s39 = sshll.u32 [#allocation5], 4
      %s40 = int_to_ptr.vmem [resolvable:$true] %s39
      %42 = dma.hbm_to_vmem [thread:$0]  %s1, 128, %s40, [#allocation6]
    $region9: #{baseline_tail.1} parent=1 // pred_fallthru
      _
    // Predicated region
    $region10: #{baseline_tail.1} parent=1 // pred_check
      _
    $region11: #{baseline_tail.1} parent=1 // pred_check_branch
      %44 = sbr.rel (0) target = $region13
    $region12: #{baseline_tail.1} parent=1 // pred_region
      %s46 = ssub.s32 32768, 32768
      %47 = vsyncadd [#allocation6], %s46
      %s48 = sshll.u32 [#allocation7], 4
      %s49 = int_to_ptr.vmem [resolvable:$true] %s48
      %54 = dma.hbm_to_vmem [thread:$0]  %s2, 32768, %s49, [#allocation6], 256, 256, 16
    $region13: #{baseline_tail.1} parent=1 // pred_fallthru
      _
    // Predicated region
    $region14: #{baseline_tail.1} parent=1 // pred_check
      _
    $region15: #{baseline_tail.1} parent=1 // pred_check_branch
      %56 = sbr.rel (0) target = $region17
    $region16: #{baseline_tail.1} parent=1 // pred_region
      _
    $region17: #{baseline_tail.1} parent=1 // pred_fallthru
      _
    // Predicated region
    $region18: #{baseline_tail.1} parent=1 // pred_check
      _
    $region19: #{baseline_tail.1} parent=1 // pred_check_branch
      %58 = sbr.rel (0) target = $region21
    $region20: #{baseline_tail.1} parent=1 // pred_region
      %s60 = ssub.s32 16384, 16384
      %61 = vsyncadd [#allocation9], %s60
      %s62 = sshll.u32 [#allocation8], 4
      %s63 = int_to_ptr.vmem [resolvable:$true] %s62
      %68 = dma.hbm_to_vmem [thread:$0]  %s4, 16384, %s63, [#allocation9], 256, 256, 16
    $region21: #{baseline_tail.1} parent=1 // pred_fallthru
      _
    // Predicated region
    $region22: #{baseline_tail.1} parent=1 // pred_check
      _
    $region23: #{baseline_tail.1} parent=1 // pred_check_branch
      %70 = sbr.rel (0) target = $region25
    $region24: #{baseline_tail.1} parent=1 // pred_region
      _
    $region25: #{baseline_tail.1} parent=1 // pred_fallthru
      _
    // Predicated region
    $region26: #{baseline_tail.1} parent=1 // pred_check
      _
    $region27: #{baseline_tail.1} parent=1 // pred_check_branch
      %72 = sbr.rel (0) target = $region29
    $region28: #{baseline_tail.1} parent=1 // pred_region
      %s74 = ssub.s32 16384, 16384
      %75 = vsyncadd [#allocation9], %s74
      %s76 = sshll.u32 [#allocation10], 4
      %s77 = int_to_ptr.vmem [resolvable:$true] %s76
      %82 = dma.hbm_to_vmem [thread:$0]  %s6, 16384, %s77, [#allocation9], 256, 256, 16
    $region29: #{baseline_tail.1} parent=1 // pred_fallthru
      _
    // Predicated region
    $region30: #{baseline_tail.1} parent=1 // pred_check
      _
    $region31: #{baseline_tail.1} parent=1 // pred_check_branch
      %84 = sbr.rel (0) target = $region33
    $region32: #{baseline_tail.1} parent=1 // pred_region
      _
    $region33: #{baseline_tail.1} parent=1 // pred_fallthru
      _
    // Predicated region
    $region34: #{baseline_tail.1} parent=1 // pred_check
      _
    $region35: #{baseline_tail.1} parent=1 // pred_check_branch
      %86 = sbr.rel (0) target = $region37
    $region36: #{baseline_tail.1} parent=1 // pred_region
      %s88 = ssub.s32 4096, 4096
      %89 = vsyncadd [#allocation12], %s88
      %s90 = sshll.u32 [#allocation11], 4
      %s91 = int_to_ptr.vmem [resolvable:$true] %s90
      %96 = dma.hbm_to_vmem [thread:$0]  %s8, 4096, %s91, [#allocation12], 64, 64, 4
    $region37: #{baseline_tail.1} parent=1 // pred_fallthru
      _
    // Predicated region
    $region38: #{baseline_tail.1} parent=1 // pred_check
      _
    $region39: #{baseline_tail.1} parent=1 // pred_check_branch
      %98 = sbr.rel (0) target = $region41
    $region40: #{baseline_tail.1} parent=1 // pred_region
      _
    $region41: #{baseline_tail.1} parent=1 // pred_fallthru
      _
    // Predicated region
    $region42: #{baseline_tail.1} parent=1 // pred_check
      _
    $region43: #{baseline_tail.1} parent=1 // pred_check_branch
      %100 = sbr.rel (0) target = $region45
    $region44: #{baseline_tail.1} parent=1 // pred_region
      %101 = dma.done [#allocation3], 256
    $region45: #{baseline_tail.1} parent=1 // pred_fallthru
      _
    // Predicated region
    $region46: #{baseline_tail.1} parent=1 // pred_check
      _
    $region47: #{baseline_tail.1} parent=1 // pred_check_branch
      %103 = sbr.rel (0) target = $region49
    $region48: #{baseline_tail.1} parent=1 // pred_region
      %104 = dma.done [#allocation6], 128
    $region49: #{baseline_tail.1} parent=1 // pred_fallthru
      _
    // Predicated region
    $region50: #{baseline_tail.1} parent=1 // pred_check
      _
    $region51: #{baseline_tail.1} parent=1 // pred_check_branch
      %106 = sbr.rel (0) target = $region53
    $region52: #{baseline_tail.1} parent=1 // pred_region
      %107 = dma.done [#allocation6], 32768
    $region53: #{baseline_tail.1} parent=1 // pred_fallthru
      _
    // Predicated region
    $region54: #{baseline_tail.1} parent=1 // pred_check
      _
    $region55: #{baseline_tail.1} parent=1 // pred_check_branch
      %109 = sbr.rel (0) target = $region57
    $region56: #{baseline_tail.1} parent=1 // pred_region
      %110 = dma.done [#allocation9], 16384
    $region57: #{baseline_tail.1} parent=1 // pred_fallthru
      _
    // Predicated region
    $region58: #{baseline_tail.1} parent=1 // pred_check
      _
    $region59: #{baseline_tail.1} parent=1 // pred_check_branch
      %112 = sbr.rel (0) target = $region61
    $region60: #{baseline_tail.1} parent=1 // pred_region
      %113 = dma.done [#allocation9], 16384
    $region61: #{baseline_tail.1} parent=1 // pred_fallthru
      _
    // Predicated region
    $region62: #{baseline_tail.1} parent=1 // pred_check
      _
    $region63: #{baseline_tail.1} parent=1 // pred_check_branch
      %115 = sbr.rel (0) target = $region65
    $region64: #{baseline_tail.1} parent=1 // pred_region
      %116 = dma.done [#allocation12], 4096
    $region65: #{baseline_tail.1} parent=1 // pred_fallthru
      _
    %v118 = vld [vmem:[#allocation2] sm:$0xff]
    %v119 = vld [vmem:[#allocation2 + $0x8] sm:$0xff]
    %v122 = vcombine.high %v118, %v118
    %v124 = vunpack.c.l.s4 1983009808
    %v125 = vunpack.c.0.s8 %v124
    %v126 = vlaneseq
    %v127 = vshrl.u32 %v126, 7
    %v128 = vsub.s32 %v125, %v127
    %v129 = vrot.slane %v118, %v128
    %v131 = vunpack.c.l.s4 1983009808
    %v132 = vunpack.c.0.s8 %v131
    %v133 = vlaneseq
    %v134 = vshrl.u32 %v133, 7
    %v135 = vsub.s32 %v132, %v134
    %v136 = vrot.slane %v122, %v135
    %v137 = vcombine.high %v129, %v129
    %v138 = vcombine.high %v136, %v136
    %v139 = vcombine.high %v119, %v119
    %v141 = vunpack.c.l.s4 1983009808
    %v142 = vunpack.c.0.s8 %v141
    %v143 = vlaneseq
    %v144 = vshrl.u32 %v143, 7
    %v145 = vsub.s32 %v142, %v144
    %v146 = vrot.slane %v119, %v145
    %v148 = vunpack.c.l.s4 1983009808
    %v149 = vunpack.c.0.s8 %v148
    %v150 = vlaneseq
    %v151 = vshrl.u32 %v150, 7
    %v152 = vsub.s32 %v149, %v151
    %v153 = vrot.slane %v139, %v152
    %v154 = vcombine.high %v146, %v146
    %v155 = vcombine.high %v153, %v153
    %v164 = vpack.c.bf16 %v129, %v129
    %v165 = vpack.c.bf16 %v137, %v137
    %v166 = vpack.c.bf16 %v136, %v136
    %v167 = vpack.c.bf16 %v138, %v138
    %v168 = vpack.c.bf16 %v146, %v146
    %v169 = vpack.c.bf16 %v154, %v154
    %v170 = vpack.c.bf16 %v153, %v153
    %v171 = vpack.c.bf16 %v155, %v155
    %v172 = vld [vmem:[#allocation7] sm:$0xff]
    %v173 = vld [vmem:[#allocation7 + $0x8] sm:$0xff]
    %v174 = vld [vmem:[#allocation7 + $0x10] sm:$0xff]
    %v175 = vld [vmem:[#allocation7 + $0x18] sm:$0xff]
    %v176 = vld [vmem:[#allocation7 + $0x20] sm:$0xff]
    %v177 = vld [vmem:[#allocation7 + $0x28] sm:$0xff]
    %v178 = vld [vmem:[#allocation7 + $0x30] sm:$0xff]
    %v179 = vld [vmem:[#allocation7 + $0x38] sm:$0xff]
    %v180 = vld [vmem:[#allocation7 + $0x40] sm:$0xff]
    %v181 = vld [vmem:[#allocation7 + $0x48] sm:$0xff]
    %v182 = vld [vmem:[#allocation7 + $0x50] sm:$0xff]
    %v183 = vld [vmem:[#allocation7 + $0x58] sm:$0xff]
    %v184 = vld [vmem:[#allocation7 + $0x60] sm:$0xff]
    %v185 = vld [vmem:[#allocation7 + $0x68] sm:$0xff]
    %v186 = vld [vmem:[#allocation7 + $0x70] sm:$0xff]
    %v187 = vld [vmem:[#allocation7 + $0x78] sm:$0xff]
    %v188 = vld [vmem:[#allocation7 + $0x80] sm:$0xff]
    %v189 = vld [vmem:[#allocation7 + $0x88] sm:$0xff]
    %v190 = vld [vmem:[#allocation7 + $0x90] sm:$0xff]
    %v191 = vld [vmem:[#allocation7 + $0x98] sm:$0xff]
    %v192 = vld [vmem:[#allocation7 + $0xa0] sm:$0xff]
    %v193 = vld [vmem:[#allocation7 + $0xa8] sm:$0xff]
    %v194 = vld [vmem:[#allocation7 + $0xb0] sm:$0xff]
    %v195 = vld [vmem:[#allocation7 + $0xb8] sm:$0xff]
    %v196 = vld [vmem:[#allocation7 + $0xc0] sm:$0xff]
    %v197 = vld [vmem:[#allocation7 + $0xc8] sm:$0xff]
    %v198 = vld [vmem:[#allocation7 + $0xd0] sm:$0xff]
    %v199 = vld [vmem:[#allocation7 + $0xd8] sm:$0xff]
    %v200 = vld [vmem:[#allocation7 + $0xe0] sm:$0xff]
    %v201 = vld [vmem:[#allocation7 + $0xe8] sm:$0xff]
    %v202 = vld [vmem:[#allocation7 + $0xf0] sm:$0xff]
    %v203 = vld [vmem:[#allocation7 + $0xf8] sm:$0xff]
    %v204 = vld [vmem:[#allocation7 + $0x100] sm:$0xff]
    %v205 = vld [vmem:[#allocation7 + $0x108] sm:$0xff]
    %v206 = vld [vmem:[#allocation7 + $0x110] sm:$0xff]
    %v207 = vld [vmem:[#allocation7 + $0x118] sm:$0xff]
    %v208 = vld [vmem:[#allocation7 + $0x120] sm:$0xff]
    %v209 = vld [vmem:[#allocation7 + $0x128] sm:$0xff]
    %v210 = vld [vmem:[#allocation7 + $0x130] sm:$0xff]
    %v211 = vld [vmem:[#allocation7 + $0x138] sm:$0xff]
    %v212 = vld [vmem:[#allocation7 + $0x140] sm:$0xff]
    %v213 = vld [vmem:[#allocation7 + $0x148] sm:$0xff]
    %v214 = vld [vmem:[#allocation7 + $0x150] sm:$0xff]
    %v215 = vld [vmem:[#allocation7 + $0x158] sm:$0xff]
    %v216 = vld [vmem:[#allocation7 + $0x160] sm:$0xff]
    %v217 = vld [vmem:[#allocation7 + $0x168] sm:$0xff]
    %v218 = vld [vmem:[#allocation7 + $0x170] sm:$0xff]
    %v219 = vld [vmem:[#allocation7 + $0x178] sm:$0xff]
    %v220 = vld [vmem:[#allocation7 + $0x180] sm:$0xff]
    %v221 = vld [vmem:[#allocation7 + $0x188] sm:$0xff]
    %v222 = vld [vmem:[#allocation7 + $0x190] sm:$0xff]
    %v223 = vld [vmem:[#allocation7 + $0x198] sm:$0xff]
    %v224 = vld [vmem:[#allocation7 + $0x1a0] sm:$0xff]
    %v225 = vld [vmem:[#allocation7 + $0x1a8] sm:$0xff]
    %v226 = vld [vmem:[#allocation7 + $0x1b0] sm:$0xff]
    %v227 = vld [vmem:[#allocation7 + $0x1b8] sm:$0xff]
    %v228 = vld [vmem:[#allocation7 + $0x1c0] sm:$0xff]
    %v229 = vld [vmem:[#allocation7 + $0x1c8] sm:$0xff]
    %v230 = vld [vmem:[#allocation7 + $0x1d0] sm:$0xff]
    %v231 = vld [vmem:[#allocation7 + $0x1d8] sm:$0xff]
    %v232 = vld [vmem:[#allocation7 + $0x1e0] sm:$0xff]
    %v233 = vld [vmem:[#allocation7 + $0x1e8] sm:$0xff]
    %v234 = vld [vmem:[#allocation7 + $0x1f0] sm:$0xff]
    %v235 = vld [vmem:[#allocation7 + $0x1f8] sm:$0xff]
    %v236 = vld [vmem:[#allocation7 + $0x200] sm:$0xff]
    %v237 = vld [vmem:[#allocation7 + $0x208] sm:$0xff]
    %v238 = vld [vmem:[#allocation7 + $0x210] sm:$0xff]
    %v239 = vld [vmem:[#allocation7 + $0x218] sm:$0xff]
    %v240 = vld [vmem:[#allocation7 + $0x220] sm:$0xff]
    %v241 = vld [vmem:[#allocation7 + $0x228] sm:$0xff]
    %v242 = vld [vmem:[#allocation7 + $0x230] sm:$0xff]
    %v243 = vld [vmem:[#allocation7 + $0x238] sm:$0xff]
    %v244 = vld [vmem:[#allocation7 + $0x240] sm:$0xff]
    %v245 = vld [vmem:[#allocation7 + $0x248] sm:$0xff]
    %v246 = vld [vmem:[#allocation7 + $0x250] sm:$0xff]
    %v247 = vld [vmem:[#allocation7 + $0x258] sm:$0xff]
    %v248 = vld [vmem:[#allocation7 + $0x260] sm:$0xff]
    %v249 = vld [vmem:[#allocation7 + $0x268] sm:$0xff]
    %v250 = vld [vmem:[#allocation7 + $0x270] sm:$0xff]
    %v251 = vld [vmem:[#allocation7 + $0x278] sm:$0xff]
    %v252 = vld [vmem:[#allocation7 + $0x280] sm:$0xff]
    %v253 = vld [vmem:[#allocation7 + $0x288] sm:$0xff]
    %v254 = vld [vmem:[#allocation7 + $0x290] sm:$0xff]
    %v255 = vld [vmem:[#allocation7 + $0x298] sm:$0xff]
    %v256 = vld [vmem:[#allocation7 + $0x2a0] sm:$0xff]
    %v257 = vld [vmem:[#allocation7 + $0x2a8] sm:$0xff]
    %v258 = vld [vmem:[#allocation7 + $0x2b0] sm:$0xff]
    %v259 = vld [vmem:[#allocation7 + $0x2b8] sm:$0xff]
    %v260 = vld [vmem:[#allocation7 + $0x2c0] sm:$0xff]
    %v261 = vld [vmem:[#allocation7 + $0x2c8] sm:$0xff]
    %v262 = vld [vmem:[#allocation7 + $0x2d0] sm:$0xff]
    %v263 = vld [vmem:[#allocation7 + $0x2d8] sm:$0xff]
    %v264 = vld [vmem:[#allocation7 + $0x2e0] sm:$0xff]
    %v265 = vld [vmem:[#allocation7 + $0x2e8] sm:$0xff]
    %v266 = vld [vmem:[#allocation7 + $0x2f0] sm:$0xff]
    %v267 = vld [vmem:[#allocation7 + $0x2f8] sm:$0xff]
    %v268 = vld [vmem:[#allocation7 + $0x300] sm:$0xff]
    %v269 = vld [vmem:[#allocation7 + $0x308] sm:$0xff]
    %v270 = vld [vmem:[#allocation7 + $0x310] sm:$0xff]
    %v271 = vld [vmem:[#allocation7 + $0x318] sm:$0xff]
    %v272 = vld [vmem:[#allocation7 + $0x320] sm:$0xff]
    %v273 = vld [vmem:[#allocation7 + $0x328] sm:$0xff]
    %v274 = vld [vmem:[#allocation7 + $0x330] sm:$0xff]
    %v275 = vld [vmem:[#allocation7 + $0x338] sm:$0xff]
    %v276 = vld [vmem:[#allocation7 + $0x340] sm:$0xff]
    %v277 = vld [vmem:[#allocation7 + $0x348] sm:$0xff]
    %v278 = vld [vmem:[#allocation7 + $0x350] sm:$0xff]
    %v279 = vld [vmem:[#allocation7 + $0x358] sm:$0xff]
    %v280 = vld [vmem:[#allocation7 + $0x360] sm:$0xff]
    %v281 = vld [vmem:[#allocation7 + $0x368] sm:$0xff]
    %v282 = vld [vmem:[#allocation7 + $0x370] sm:$0xff]
    %v283 = vld [vmem:[#allocation7 + $0x378] sm:$0xff]
    %v284 = vld [vmem:[#allocation7 + $0x380] sm:$0xff]
    %v285 = vld [vmem:[#allocation7 + $0x388] sm:$0xff]
    %v286 = vld [vmem:[#allocation7 + $0x390] sm:$0xff]
    %v287 = vld [vmem:[#allocation7 + $0x398] sm:$0xff]
    %v288 = vld [vmem:[#allocation7 + $0x3a0] sm:$0xff]
    %v289 = vld [vmem:[#allocation7 + $0x3a8] sm:$0xff]
    %v290 = vld [vmem:[#allocation7 + $0x3b0] sm:$0xff]
    %v291 = vld [vmem:[#allocation7 + $0x3b8] sm:$0xff]
    %v292 = vld [vmem:[#allocation7 + $0x3c0] sm:$0xff]
    %v293 = vld [vmem:[#allocation7 + $0x3c8] sm:$0xff]
    %v294 = vld [vmem:[#allocation7 + $0x3d0] sm:$0xff]
    %v295 = vld [vmem:[#allocation7 + $0x3d8] sm:$0xff]
    %v296 = vld [vmem:[#allocation7 + $0x3e0] sm:$0xff]
    %v297 = vld [vmem:[#allocation7 + $0x3e8] sm:$0xff]
    %v298 = vld [vmem:[#allocation7 + $0x3f0] sm:$0xff]
    %v299 = vld [vmem:[#allocation7 + $0x3f8] sm:$0xff]
    %v300 = vld [vmem:[#allocation7 + $0x400] sm:$0xff]
    %v301 = vld [vmem:[#allocation7 + $0x408] sm:$0xff]
    %v302 = vld [vmem:[#allocation7 + $0x410] sm:$0xff]
    %v303 = vld [vmem:[#allocation7 + $0x418] sm:$0xff]
    %v304 = vld [vmem:[#allocation7 + $0x420] sm:$0xff]
    %v305 = vld [vmem:[#allocation7 + $0x428] sm:$0xff]
    %v306 = vld [vmem:[#allocation7 + $0x430] sm:$0xff]
    %v307 = vld [vmem:[#allocation7 + $0x438] sm:$0xff]
    %v308 = vld [vmem:[#allocation7 + $0x440] sm:$0xff]
    %v309 = vld [vmem:[#allocation7 + $0x448] sm:$0xff]
    %v310 = vld [vmem:[#allocation7 + $0x450] sm:$0xff]
    %v311 = vld [vmem:[#allocation7 + $0x458] sm:$0xff]
    %v312 = vld [vmem:[#allocation7 + $0x460] sm:$0xff]
    %v313 = vld [vmem:[#allocation7 + $0x468] sm:$0xff]
    %v314 = vld [vmem:[#allocation7 + $0x470] sm:$0xff]
    %v315 = vld [vmem:[#allocation7 + $0x478] sm:$0xff]
    %v316 = vld [vmem:[#allocation7 + $0x480] sm:$0xff]
    %v317 = vld [vmem:[#allocation7 + $0x488] sm:$0xff]
    %v318 = vld [vmem:[#allocation7 + $0x490] sm:$0xff]
    %v319 = vld [vmem:[#allocation7 + $0x498] sm:$0xff]
    %v320 = vld [vmem:[#allocation7 + $0x4a0] sm:$0xff]
    %v321 = vld [vmem:[#allocation7 + $0x4a8] sm:$0xff]
    %v322 = vld [vmem:[#allocation7 + $0x4b0] sm:$0xff]
    %v323 = vld [vmem:[#allocation7 + $0x4b8] sm:$0xff]
    %v324 = vld [vmem:[#allocation7 + $0x4c0] sm:$0xff]
    %v325 = vld [vmem:[#allocation7 + $0x4c8] sm:$0xff]
    %v326 = vld [vmem:[#allocation7 + $0x4d0] sm:$0xff]
    %v327 = vld [vmem:[#allocation7 + $0x4d8] sm:$0xff]
    %v328 = vld [vmem:[#allocation7 + $0x4e0] sm:$0xff]
    %v329 = vld [vmem:[#allocation7 + $0x4e8] sm:$0xff]
    %v330 = vld [vmem:[#allocation7 + $0x4f0] sm:$0xff]
    %v331 = vld [vmem:[#allocation7 + $0x4f8] sm:$0xff]
    %v332 = vld [vmem:[#allocation7 + $0x500] sm:$0xff]
    %v333 = vld [vmem:[#allocation7 + $0x508] sm:$0xff]
    %v334 = vld [vmem:[#allocation7 + $0x510] sm:$0xff]
    %v335 = vld [vmem:[#allocation7 + $0x518] sm:$0xff]
    %v336 = vld [vmem:[#allocation7 + $0x520] sm:$0xff]
    %v337 = vld [vmem:[#allocation7 + $0x528] sm:$0xff]
    %v338 = vld [vmem:[#allocation7 + $0x530] sm:$0xff]
    %v339 = vld [vmem:[#allocation7 + $0x538] sm:$0xff]
    %v340 = vld [vmem:[#allocation7 + $0x540] sm:$0xff]
    %v341 = vld [vmem:[#allocation7 + $0x548] sm:$0xff]
    %v342 = vld [vmem:[#allocation7 + $0x550] sm:$0xff]
    %v343 = vld [vmem:[#allocation7 + $0x558] sm:$0xff]
    %v344 = vld [vmem:[#allocation7 + $0x560] sm:$0xff]
    %v345 = vld [vmem:[#allocation7 + $0x568] sm:$0xff]
    %v346 = vld [vmem:[#allocation7 + $0x570] sm:$0xff]
    %v347 = vld [vmem:[#allocation7 + $0x578] sm:$0xff]
    %v348 = vld [vmem:[#allocation7 + $0x580] sm:$0xff]
    %v349 = vld [vmem:[#allocation7 + $0x588] sm:$0xff]
    %v350 = vld [vmem:[#allocation7 + $0x590] sm:$0xff]
    %v351 = vld [vmem:[#allocation7 + $0x598] sm:$0xff]
    %v352 = vld [vmem:[#allocation7 + $0x5a0] sm:$0xff]
    %v353 = vld [vmem:[#allocation7 + $0x5a8] sm:$0xff]
    %v354 = vld [vmem:[#allocation7 + $0x5b0] sm:$0xff]
    %v355 = vld [vmem:[#allocation7 + $0x5b8] sm:$0xff]
    %v356 = vld [vmem:[#allocation7 + $0x5c0] sm:$0xff]
    %v357 = vld [vmem:[#allocation7 + $0x5c8] sm:$0xff]
    %v358 = vld [vmem:[#allocation7 + $0x5d0] sm:$0xff]
    %v359 = vld [vmem:[#allocation7 + $0x5d8] sm:$0xff]
    %v360 = vld [vmem:[#allocation7 + $0x5e0] sm:$0xff]
    %v361 = vld [vmem:[#allocation7 + $0x5e8] sm:$0xff]
    %v362 = vld [vmem:[#allocation7 + $0x5f0] sm:$0xff]
    %v363 = vld [vmem:[#allocation7 + $0x5f8] sm:$0xff]
    %v364 = vld [vmem:[#allocation7 + $0x600] sm:$0xff]
    %v365 = vld [vmem:[#allocation7 + $0x608] sm:$0xff]
    %v366 = vld [vmem:[#allocation7 + $0x610] sm:$0xff]
    %v367 = vld [vmem:[#allocation7 + $0x618] sm:$0xff]
    %v368 = vld [vmem:[#allocation7 + $0x620] sm:$0xff]
    %v369 = vld [vmem:[#allocation7 + $0x628] sm:$0xff]
    %v370 = vld [vmem:[#allocation7 + $0x630] sm:$0xff]
    %v371 = vld [vmem:[#allocation7 + $0x638] sm:$0xff]
    %v372 = vld [vmem:[#allocation7 + $0x640] sm:$0xff]
    %v373 = vld [vmem:[#allocation7 + $0x648] sm:$0xff]
    %v374 = vld [vmem:[#allocation7 + $0x650] sm:$0xff]
    %v375 = vld [vmem:[#allocation7 + $0x658] sm:$0xff]
    %v376 = vld [vmem:[#allocation7 + $0x660] sm:$0xff]
    %v377 = vld [vmem:[#allocation7 + $0x668] sm:$0xff]
    %v378 = vld [vmem:[#allocation7 + $0x670] sm:$0xff]
    %v379 = vld [vmem:[#allocation7 + $0x678] sm:$0xff]
    %v380 = vld [vmem:[#allocation7 + $0x680] sm:$0xff]
    %v381 = vld [vmem:[#allocation7 + $0x688] sm:$0xff]
    %v382 = vld [vmem:[#allocation7 + $0x690] sm:$0xff]
    %v383 = vld [vmem:[#allocation7 + $0x698] sm:$0xff]
    %v384 = vld [vmem:[#allocation7 + $0x6a0] sm:$0xff]
    %v385 = vld [vmem:[#allocation7 + $0x6a8] sm:$0xff]
    %v386 = vld [vmem:[#allocation7 + $0x6b0] sm:$0xff]
    %v387 = vld [vmem:[#allocation7 + $0x6b8] sm:$0xff]
    %v388 = vld [vmem:[#allocation7 + $0x6c0] sm:$0xff]
    %v389 = vld [vmem:[#allocation7 + $0x6c8] sm:$0xff]
    %v390 = vld [vmem:[#allocation7 + $0x6d0] sm:$0xff]
    %v391 = vld [vmem:[#allocation7 + $0x6d8] sm:$0xff]
    %v392 = vld [vmem:[#allocation7 + $0x6e0] sm:$0xff]
    %v393 = vld [vmem:[#allocation7 + $0x6e8] sm:$0xff]
    %v394 = vld [vmem:[#allocation7 + $0x6f0] sm:$0xff]
    %v395 = vld [vmem:[#allocation7 + $0x6f8] sm:$0xff]
    %v396 = vld [vmem:[#allocation7 + $0x700] sm:$0xff]
    %v397 = vld [vmem:[#allocation7 + $0x708] sm:$0xff]
    %v398 = vld [vmem:[#allocation7 + $0x710] sm:$0xff]
    %v399 = vld [vmem:[#allocation7 + $0x718] sm:$0xff]
    %v400 = vld [vmem:[#allocation7 + $0x720] sm:$0xff]
    %v401 = vld [vmem:[#allocation7 + $0x728] sm:$0xff]
    %v402 = vld [vmem:[#allocation7 + $0x730] sm:$0xff]
    %v403 = vld [vmem:[#allocation7 + $0x738] sm:$0xff]
    %v404 = vld [vmem:[#allocation7 + $0x740] sm:$0xff]
    %v405 = vld [vmem:[#allocation7 + $0x748] sm:$0xff]
    %v406 = vld [vmem:[#allocation7 + $0x750] sm:$0xff]
    %v407 = vld [vmem:[#allocation7 + $0x758] sm:$0xff]
    %v408 = vld [vmem:[#allocation7 + $0x760] sm:$0xff]
    %v409 = vld [vmem:[#allocation7 + $0x768] sm:$0xff]
    %v410 = vld [vmem:[#allocation7 + $0x770] sm:$0xff]
    %v411 = vld [vmem:[#allocation7 + $0x778] sm:$0xff]
    %v412 = vld [vmem:[#allocation7 + $0x780] sm:$0xff]
    %v413 = vld [vmem:[#allocation7 + $0x788] sm:$0xff]
    %v414 = vld [vmem:[#allocation7 + $0x790] sm:$0xff]
    %v415 = vld [vmem:[#allocation7 + $0x798] sm:$0xff]
    %v416 = vld [vmem:[#allocation7 + $0x7a0] sm:$0xff]
    %v417 = vld [vmem:[#allocation7 + $0x7a8] sm:$0xff]
    %v418 = vld [vmem:[#allocation7 + $0x7b0] sm:$0xff]
    %v419 = vld [vmem:[#allocation7 + $0x7b8] sm:$0xff]
    %v420 = vld [vmem:[#allocation7 + $0x7c0] sm:$0xff]
    %v421 = vld [vmem:[#allocation7 + $0x7c8] sm:$0xff]
    %v422 = vld [vmem:[#allocation7 + $0x7d0] sm:$0xff]
    %v423 = vld [vmem:[#allocation7 + $0x7d8] sm:$0xff]
    %v424 = vld [vmem:[#allocation7 + $0x7e0] sm:$0xff]
    %v425 = vld [vmem:[#allocation7 + $0x7e8] sm:$0xff]
    %v426 = vld [vmem:[#allocation7 + $0x7f0] sm:$0xff]
    %v427 = vld [vmem:[#allocation7 + $0x7f8] sm:$0xff]
    %v428 = vld [vmem:[%s3] sm:$0xf]
    %v430 = vlaneseq
    %v431 = vshrl.u32 %v430, 7
    %v432 = vsub.s32 0, %v431
    %v433 = vrot.slane %v428, %v432
    %v434 = vlaneseq
    %v435 = vshrl.u32 %v434, 7
    %v436 = vsub.s32 1, %v435
    %v437 = vrot.slane %v428, %v436
    %v438 = vlaneseq
    %v439 = vshrl.u32 %v438, 7
    %v440 = vsub.s32 2, %v439
    %v441 = vrot.slane %v428, %v440
    %v442 = vlaneseq
    %v443 = vshrl.u32 %v442, 7
    %v444 = vsub.s32 3, %v443
    %v445 = vrot.slane %v428, %v444
    %v706 = vunpack.c.l.b16 %v172
    %v707 = vunpack.c.h.b16 %v172
    %v708 = vunpack.c.l.b16 %v173
    %v709 = vunpack.c.h.b16 %v173
    %v710 = vunpack.c.l.b16 %v174
    %v711 = vunpack.c.h.b16 %v174
    %v712 = vunpack.c.l.b16 %v175
    %v713 = vunpack.c.h.b16 %v175
    %v714 = vunpack.c.l.b16 %v176
    %v715 = vunpack.c.h.b16 %v176
    %v716 = vunpack.c.l.b16 %v177
    %v717 = vunpack.c.h.b16 %v177
    %v718 = vunpack.c.l.b16 %v178
    %v719 = vunpack.c.h.b16 %v178
    %v720 = vunpack.c.l.b16 %v179
    %v721 = vunpack.c.h.b16 %v179
    %v722 = vunpack.c.l.b16 %v180
    %v723 = vunpack.c.h.b16 %v180
    %v724 = vunpack.c.l.b16 %v181
    %v725 = vunpack.c.h.b16 %v181
    %v726 = vunpack.c.l.b16 %v182
    %v727 = vunpack.c.h.b16 %v182
    %v728 = vunpack.c.l.b16 %v183
    %v729 = vunpack.c.h.b16 %v183
    %v730 = vunpack.c.l.b16 %v184
    %v731 = vunpack.c.h.b16 %v184
    %v732 = vunpack.c.l.b16 %v185
    %v733 = vunpack.c.h.b16 %v185
    %v734 = vunpack.c.l.b16 %v186
    %v735 = vunpack.c.h.b16 %v186
    %v736 = vunpack.c.l.b16 %v187
    %v737 = vunpack.c.h.b16 %v187
    %v738 = vunpack.c.l.b16 %v188
    %v739 = vunpack.c.h.b16 %v188
    %v740 = vunpack.c.l.b16 %v189
    %v741 = vunpack.c.h.b16 %v189
    %v742 = vunpack.c.l.b16 %v190
    %v743 = vunpack.c.h.b16 %v190
    %v744 = vunpack.c.l.b16 %v191
    %v745 = vunpack.c.h.b16 %v191
    %v746 = vunpack.c.l.b16 %v192
    %v747 = vunpack.c.h.b16 %v192
    %v748 = vunpack.c.l.b16 %v193
    %v749 = vunpack.c.h.b16 %v193
    %v750 = vunpack.c.l.b16 %v194
    %v751 = vunpack.c.h.b16 %v194
    %v752 = vunpack.c.l.b16 %v195
    %v753 = vunpack.c.h.b16 %v195
    %v754 = vunpack.c.l.b16 %v196
    %v755 = vunpack.c.h.b16 %v196
    %v756 = vunpack.c.l.b16 %v197
    %v757 = vunpack.c.h.b16 %v197
    %v758 = vunpack.c.l.b16 %v198
    %v759 = vunpack.c.h.b16 %v198
    %v760 = vunpack.c.l.b16 %v199
    %v761 = vunpack.c.h.b16 %v199
    %v762 = vunpack.c.l.b16 %v200
    %v763 = vunpack.c.h.b16 %v200
    %v764 = vunpack.c.l.b16 %v201
    %v765 = vunpack.c.h.b16 %v201
    %v766 = vunpack.c.l.b16 %v202
    %v767 = vunpack.c.h.b16 %v202
    %v768 = vunpack.c.l.b16 %v203
    %v769 = vunpack.c.h.b16 %v203
    %v770 = vunpack.c.l.b16 %v204
    %v771 = vunpack.c.h.b16 %v204
    %v772 = vunpack.c.l.b16 %v205
    %v773 = vunpack.c.h.b16 %v205
    %v774 = vunpack.c.l.b16 %v206
    %v775 = vunpack.c.h.b16 %v206
    %v776 = vunpack.c.l.b16 %v207
    %v777 = vunpack.c.h.b16 %v207
    %v778 = vunpack.c.l.b16 %v208
    %v779 = vunpack.c.h.b16 %v208
    %v780 = vunpack.c.l.b16 %v209
    %v781 = vunpack.c.h.b16 %v209
    %v782 = vunpack.c.l.b16 %v210
    %v783 = vunpack.c.h.b16 %v210
    %v784 = vunpack.c.l.b16 %v211
    %v785 = vunpack.c.h.b16 %v211
    %v786 = vunpack.c.l.b16 %v212
    %v787 = vunpack.c.h.b16 %v212
    %v788 = vunpack.c.l.b16 %v213
    %v789 = vunpack.c.h.b16 %v213
    %v790 = vunpack.c.l.b16 %v214
    %v791 = vunpack.c.h.b16 %v214
    %v792 = vunpack.c.l.b16 %v215
    %v793 = vunpack.c.h.b16 %v215
    %v794 = vunpack.c.l.b16 %v216
    %v795 = vunpack.c.h.b16 %v216
    %v796 = vunpack.c.l.b16 %v217
    %v797 = vunpack.c.h.b16 %v217
    %v798 = vunpack.c.l.b16 %v218
    %v799 = vunpack.c.h.b16 %v218
    %v800 = vunpack.c.l.b16 %v219
    %v801 = vunpack.c.h.b16 %v219
    %v802 = vunpack.c.l.b16 %v220
    %v803 = vunpack.c.h.b16 %v220
    %v804 = vunpack.c.l.b16 %v221
    %v805 = vunpack.c.h.b16 %v221
    %v806 = vunpack.c.l.b16 %v222
    %v807 = vunpack.c.h.b16 %v222
    %v808 = vunpack.c.l.b16 %v223
    %v809 = vunpack.c.h.b16 %v223
    %v810 = vunpack.c.l.b16 %v224
    %v811 = vunpack.c.h.b16 %v224
    %v812 = vunpack.c.l.b16 %v225
    %v813 = vunpack.c.h.b16 %v225
    %v814 = vunpack.c.l.b16 %v226
    %v815 = vunpack.c.h.b16 %v226
    %v816 = vunpack.c.l.b16 %v227
    %v817 = vunpack.c.h.b16 %v227
    %v818 = vunpack.c.l.b16 %v228
    %v819 = vunpack.c.h.b16 %v228
    %v820 = vunpack.c.l.b16 %v229
    %v821 = vunpack.c.h.b16 %v229
    %v822 = vunpack.c.l.b16 %v230
    %v823 = vunpack.c.h.b16 %v230
    %v824 = vunpack.c.l.b16 %v231
    %v825 = vunpack.c.h.b16 %v231
    %v826 = vunpack.c.l.b16 %v232
    %v827 = vunpack.c.h.b16 %v232
    %v828 = vunpack.c.l.b16 %v233
    %v829 = vunpack.c.h.b16 %v233
    %v830 = vunpack.c.l.b16 %v234
    %v831 = vunpack.c.h.b16 %v234
    %v832 = vunpack.c.l.b16 %v235
    %v833 = vunpack.c.h.b16 %v235
    %v834 = vunpack.c.l.b16 %v236
    %v835 = vunpack.c.h.b16 %v236
    %v836 = vunpack.c.l.b16 %v237
    %v837 = vunpack.c.h.b16 %v237
    %v838 = vunpack.c.l.b16 %v238
    %v839 = vunpack.c.h.b16 %v238
    %v840 = vunpack.c.l.b16 %v239
    %v841 = vunpack.c.h.b16 %v239
    %v842 = vunpack.c.l.b16 %v240
    %v843 = vunpack.c.h.b16 %v240
    %v844 = vunpack.c.l.b16 %v241
    %v845 = vunpack.c.h.b16 %v241
    %v846 = vunpack.c.l.b16 %v242
    %v847 = vunpack.c.h.b16 %v242
    %v848 = vunpack.c.l.b16 %v243
    %v849 = vunpack.c.h.b16 %v243
    %v850 = vunpack.c.l.b16 %v244
    %v851 = vunpack.c.h.b16 %v244
    %v852 = vunpack.c.l.b16 %v245
    %v853 = vunpack.c.h.b16 %v245
    %v854 = vunpack.c.l.b16 %v246
    %v855 = vunpack.c.h.b16 %v246
    %v856 = vunpack.c.l.b16 %v247
    %v857 = vunpack.c.h.b16 %v247
    %v858 = vunpack.c.l.b16 %v248
    %v859 = vunpack.c.h.b16 %v248
    %v860 = vunpack.c.l.b16 %v249
    %v861 = vunpack.c.h.b16 %v249
    %v862 = vunpack.c.l.b16 %v250
    %v863 = vunpack.c.h.b16 %v250
    %v864 = vunpack.c.l.b16 %v251
    %v865 = vunpack.c.h.b16 %v251
    %v866 = vunpack.c.l.b16 %v252
    %v867 = vunpack.c.h.b16 %v252
    %v868 = vunpack.c.l.b16 %v253
    %v869 = vunpack.c.h.b16 %v253
    %v870 = vunpack.c.l.b16 %v254
    %v871 = vunpack.c.h.b16 %v254
    %v872 = vunpack.c.l.b16 %v255
    %v873 = vunpack.c.h.b16 %v255
    %v874 = vunpack.c.l.b16 %v256
    %v875 = vunpack.c.h.b16 %v256
    %v876 = vunpack.c.l.b16 %v257
    %v877 = vunpack.c.h.b16 %v257
    %v878 = vunpack.c.l.b16 %v258
    %v879 = vunpack.c.h.b16 %v258
    %v880 = vunpack.c.l.b16 %v259
    %v881 = vunpack.c.h.b16 %v259
    %v882 = vunpack.c.l.b16 %v260
    %v883 = vunpack.c.h.b16 %v260
    %v884 = vunpack.c.l.b16 %v261
    %v885 = vunpack.c.h.b16 %v261
    %v886 = vunpack.c.l.b16 %v262
    %v887 = vunpack.c.h.b16 %v262
    %v888 = vunpack.c.l.b16 %v263
    %v889 = vunpack.c.h.b16 %v263
    %v890 = vunpack.c.l.b16 %v264
    %v891 = vunpack.c.h.b16 %v264
    %v892 = vunpack.c.l.b16 %v265
    %v893 = vunpack.c.h.b16 %v265
    %v894 = vunpack.c.l.b16 %v266
    %v895 = vunpack.c.h.b16 %v266
    %v896 = vunpack.c.l.b16 %v267
    %v897 = vunpack.c.h.b16 %v267
    %v898 = vunpack.c.l.b16 %v268
    %v899 = vunpack.c.h.b16 %v268
    %v900 = vunpack.c.l.b16 %v269
    %v901 = vunpack.c.h.b16 %v269
    %v902 = vunpack.c.l.b16 %v270
    %v903 = vunpack.c.h.b16 %v270
    %v904 = vunpack.c.l.b16 %v271
    %v905 = vunpack.c.h.b16 %v271
    %v906 = vunpack.c.l.b16 %v272
    %v907 = vunpack.c.h.b16 %v272
    %v908 = vunpack.c.l.b16 %v273
    %v909 = vunpack.c.h.b16 %v273
    %v910 = vunpack.c.l.b16 %v274
    %v911 = vunpack.c.h.b16 %v274
    %v912 = vunpack.c.l.b16 %v275
    %v913 = vunpack.c.h.b16 %v275
    %v914 = vunpack.c.l.b16 %v276
    %v915 = vunpack.c.h.b16 %v276
    %v916 = vunpack.c.l.b16 %v277
    %v917 = vunpack.c.h.b16 %v277
    %v918 = vunpack.c.l.b16 %v278
    %v919 = vunpack.c.h.b16 %v278
    %v920 = vunpack.c.l.b16 %v279
    %v921 = vunpack.c.h.b16 %v279
    %v922 = vunpack.c.l.b16 %v280
    %v923 = vunpack.c.h.b16 %v280
    %v924 = vunpack.c.l.b16 %v281
    %v925 = vunpack.c.h.b16 %v281
    %v926 = vunpack.c.l.b16 %v282
    %v927 = vunpack.c.h.b16 %v282
    %v928 = vunpack.c.l.b16 %v283
    %v929 = vunpack.c.h.b16 %v283
    %v930 = vunpack.c.l.b16 %v284
    %v931 = vunpack.c.h.b16 %v284
    %v932 = vunpack.c.l.b16 %v285
    %v933 = vunpack.c.h.b16 %v285
    %v934 = vunpack.c.l.b16 %v286
    %v935 = vunpack.c.h.b16 %v286
    %v936 = vunpack.c.l.b16 %v287
    %v937 = vunpack.c.h.b16 %v287
    %v938 = vunpack.c.l.b16 %v288
    %v939 = vunpack.c.h.b16 %v288
    %v940 = vunpack.c.l.b16 %v289
    %v941 = vunpack.c.h.b16 %v289
    %v942 = vunpack.c.l.b16 %v290
    %v943 = vunpack.c.h.b16 %v290
    %v944 = vunpack.c.l.b16 %v291
    %v945 = vunpack.c.h.b16 %v291
    %v946 = vunpack.c.l.b16 %v292
    %v947 = vunpack.c.h.b16 %v292
    %v948 = vunpack.c.l.b16 %v293
    %v949 = vunpack.c.h.b16 %v293
    %v950 = vunpack.c.l.b16 %v294
    %v951 = vunpack.c.h.b16 %v294
    %v952 = vunpack.c.l.b16 %v295
    %v953 = vunpack.c.h.b16 %v295
    %v954 = vunpack.c.l.b16 %v296
    %v955 = vunpack.c.h.b16 %v296
    %v956 = vunpack.c.l.b16 %v297
    %v957 = vunpack.c.h.b16 %v297
    %v958 = vunpack.c.l.b16 %v298
    %v959 = vunpack.c.h.b16 %v298
    %v960 = vunpack.c.l.b16 %v299
    %v961 = vunpack.c.h.b16 %v299
    %v962 = vunpack.c.l.b16 %v300
    %v963 = vunpack.c.h.b16 %v300
    %v964 = vunpack.c.l.b16 %v301
    %v965 = vunpack.c.h.b16 %v301
    %v966 = vunpack.c.l.b16 %v302
    %v967 = vunpack.c.h.b16 %v302
    %v968 = vunpack.c.l.b16 %v303
    %v969 = vunpack.c.h.b16 %v303
    %v970 = vunpack.c.l.b16 %v304
    %v971 = vunpack.c.h.b16 %v304
    %v972 = vunpack.c.l.b16 %v305
    %v973 = vunpack.c.h.b16 %v305
    %v974 = vunpack.c.l.b16 %v306
    %v975 = vunpack.c.h.b16 %v306
    %v976 = vunpack.c.l.b16 %v307
    %v977 = vunpack.c.h.b16 %v307
    %v978 = vunpack.c.l.b16 %v308
    %v979 = vunpack.c.h.b16 %v308
    %v980 = vunpack.c.l.b16 %v309
    %v981 = vunpack.c.h.b16 %v309
    %v982 = vunpack.c.l.b16 %v310
    %v983 = vunpack.c.h.b16 %v310
    %v984 = vunpack.c.l.b16 %v311
    %v985 = vunpack.c.h.b16 %v311
    %v986 = vunpack.c.l.b16 %v312
    %v987 = vunpack.c.h.b16 %v312
    %v988 = vunpack.c.l.b16 %v313
    %v989 = vunpack.c.h.b16 %v313
    %v990 = vunpack.c.l.b16 %v314
    %v991 = vunpack.c.h.b16 %v314
    %v992 = vunpack.c.l.b16 %v315
    %v993 = vunpack.c.h.b16 %v315
    %v994 = vunpack.c.l.b16 %v316
    %v995 = vunpack.c.h.b16 %v316
    %v996 = vunpack.c.l.b16 %v317
    %v997 = vunpack.c.h.b16 %v317
    %v998 = vunpack.c.l.b16 %v318
    %v999 = vunpack.c.h.b16 %v318
    %v1000 = vunpack.c.l.b16 %v319
    %v1001 = vunpack.c.h.b16 %v319
    %v1002 = vunpack.c.l.b16 %v320
    %v1003 = vunpack.c.h.b16 %v320
    %v1004 = vunpack.c.l.b16 %v321
    %v1005 = vunpack.c.h.b16 %v321
    %v1006 = vunpack.c.l.b16 %v322
    %v1007 = vunpack.c.h.b16 %v322
    %v1008 = vunpack.c.l.b16 %v323
    %v1009 = vunpack.c.h.b16 %v323
    %v1010 = vunpack.c.l.b16 %v324
    %v1011 = vunpack.c.h.b16 %v324
    %v1012 = vunpack.c.l.b16 %v325
    %v1013 = vunpack.c.h.b16 %v325
    %v1014 = vunpack.c.l.b16 %v326
    %v1015 = vunpack.c.h.b16 %v326
    %v1016 = vunpack.c.l.b16 %v327
    %v1017 = vunpack.c.h.b16 %v327
    %v1018 = vunpack.c.l.b16 %v328
    %v1019 = vunpack.c.h.b16 %v328
    %v1020 = vunpack.c.l.b16 %v329
    %v1021 = vunpack.c.h.b16 %v329
    %v1022 = vunpack.c.l.b16 %v330
    %v1023 = vunpack.c.h.b16 %v330
    %v1024 = vunpack.c.l.b16 %v331
    %v1025 = vunpack.c.h.b16 %v331
    %v1026 = vunpack.c.l.b16 %v332
    %v1027 = vunpack.c.h.b16 %v332
    %v1028 = vunpack.c.l.b16 %v333
    %v1029 = vunpack.c.h.b16 %v333
    %v1030 = vunpack.c.l.b16 %v334
    %v1031 = vunpack.c.h.b16 %v334
    %v1032 = vunpack.c.l.b16 %v335
    %v1033 = vunpack.c.h.b16 %v335
    %v1034 = vunpack.c.l.b16 %v336
    %v1035 = vunpack.c.h.b16 %v336
    %v1036 = vunpack.c.l.b16 %v337
    %v1037 = vunpack.c.h.b16 %v337
    %v1038 = vunpack.c.l.b16 %v338
    %v1039 = vunpack.c.h.b16 %v338
    %v1040 = vunpack.c.l.b16 %v339
    %v1041 = vunpack.c.h.b16 %v339
    %v1042 = vunpack.c.l.b16 %v340
    %v1043 = vunpack.c.h.b16 %v340
    %v1044 = vunpack.c.l.b16 %v341
    %v1045 = vunpack.c.h.b16 %v341
    %v1046 = vunpack.c.l.b16 %v342
    %v1047 = vunpack.c.h.b16 %v342
    %v1048 = vunpack.c.l.b16 %v343
    %v1049 = vunpack.c.h.b16 %v343
    %v1050 = vunpack.c.l.b16 %v344
    %v1051 = vunpack.c.h.b16 %v344
    %v1052 = vunpack.c.l.b16 %v345
    %v1053 = vunpack.c.h.b16 %v345
    %v1054 = vunpack.c.l.b16 %v346
    %v1055 = vunpack.c.h.b16 %v346
    %v1056 = vunpack.c.l.b16 %v347
    %v1057 = vunpack.c.h.b16 %v347
    %v1058 = vunpack.c.l.b16 %v348
    %v1059 = vunpack.c.h.b16 %v348
    %v1060 = vunpack.c.l.b16 %v349
    %v1061 = vunpack.c.h.b16 %v349
    %v1062 = vunpack.c.l.b16 %v350
    %v1063 = vunpack.c.h.b16 %v350
    %v1064 = vunpack.c.l.b16 %v351
    %v1065 = vunpack.c.h.b16 %v351
    %v1066 = vunpack.c.l.b16 %v352
    %v1067 = vunpack.c.h.b16 %v352
    %v1068 = vunpack.c.l.b16 %v353
    %v1069 = vunpack.c.h.b16 %v353
    %v1070 = vunpack.c.l.b16 %v354
    %v1071 = vunpack.c.h.b16 %v354
    %v1072 = vunpack.c.l.b16 %v355
    %v1073 = vunpack.c.h.b16 %v355
    %v1074 = vunpack.c.l.b16 %v356
    %v1075 = vunpack.c.h.b16 %v356
    %v1076 = vunpack.c.l.b16 %v357
    %v1077 = vunpack.c.h.b16 %v357
    %v1078 = vunpack.c.l.b16 %v358
    %v1079 = vunpack.c.h.b16 %v358
    %v1080 = vunpack.c.l.b16 %v359
    %v1081 = vunpack.c.h.b16 %v359
    %v1082 = vunpack.c.l.b16 %v360
    %v1083 = vunpack.c.h.b16 %v360
    %v1084 = vunpack.c.l.b16 %v361
    %v1085 = vunpack.c.h.b16 %v361
    %v1086 = vunpack.c.l.b16 %v362
    %v1087 = vunpack.c.h.b16 %v362
    %v1088 = vunpack.c.l.b16 %v363
    %v1089 = vunpack.c.h.b16 %v363
    %v1090 = vunpack.c.l.b16 %v364
    %v1091 = vunpack.c.h.b16 %v364
    %v1092 = vunpack.c.l.b16 %v365
    %v1093 = vunpack.c.h.b16 %v365
    %v1094 = vunpack.c.l.b16 %v366
    %v1095 = vunpack.c.h.b16 %v366
    %v1096 = vunpack.c.l.b16 %v367
    %v1097 = vunpack.c.h.b16 %v367
    %v1098 = vunpack.c.l.b16 %v368
    %v1099 = vunpack.c.h.b16 %v368
    %v1100 = vunpack.c.l.b16 %v369
    %v1101 = vunpack.c.h.b16 %v369
    %v1102 = vunpack.c.l.b16 %v370
    %v1103 = vunpack.c.h.b16 %v370
    %v1104 = vunpack.c.l.b16 %v371
    %v1105 = vunpack.c.h.b16 %v371
    %v1106 = vunpack.c.l.b16 %v372
    %v1107 = vunpack.c.h.b16 %v372
    %v1108 = vunpack.c.l.b16 %v373
    %v1109 = vunpack.c.h.b16 %v373
    %v1110 = vunpack.c.l.b16 %v374
    %v1111 = vunpack.c.h.b16 %v374
    %v1112 = vunpack.c.l.b16 %v375
    %v1113 = vunpack.c.h.b16 %v375
    %v1114 = vunpack.c.l.b16 %v376
    %v1115 = vunpack.c.h.b16 %v376
    %v1116 = vunpack.c.l.b16 %v377
    %v1117 = vunpack.c.h.b16 %v377
    %v1118 = vunpack.c.l.b16 %v378
    %v1119 = vunpack.c.h.b16 %v378
    %v1120 = vunpack.c.l.b16 %v379
    %v1121 = vunpack.c.h.b16 %v379
    %v1122 = vunpack.c.l.b16 %v380
    %v1123 = vunpack.c.h.b16 %v380
    %v1124 = vunpack.c.l.b16 %v381
    %v1125 = vunpack.c.h.b16 %v381
    %v1126 = vunpack.c.l.b16 %v382
    %v1127 = vunpack.c.h.b16 %v382
    %v1128 = vunpack.c.l.b16 %v383
    %v1129 = vunpack.c.h.b16 %v383
    %v1130 = vunpack.c.l.b16 %v384
    %v1131 = vunpack.c.h.b16 %v384
    %v1132 = vunpack.c.l.b16 %v385
    %v1133 = vunpack.c.h.b16 %v385
    %v1134 = vunpack.c.l.b16 %v386
    %v1135 = vunpack.c.h.b16 %v386
    %v1136 = vunpack.c.l.b16 %v387
    %v1137 = vunpack.c.h.b16 %v387
    %v1138 = vunpack.c.l.b16 %v388
    %v1139 = vunpack.c.h.b16 %v388
    %v1140 = vunpack.c.l.b16 %v389
    %v1141 = vunpack.c.h.b16 %v389
    %v1142 = vunpack.c.l.b16 %v390
    %v1143 = vunpack.c.h.b16 %v390
    %v1144 = vunpack.c.l.b16 %v391
    %v1145 = vunpack.c.h.b16 %v391
    %v1146 = vunpack.c.l.b16 %v392
    %v1147 = vunpack.c.h.b16 %v392
    %v1148 = vunpack.c.l.b16 %v393
    %v1149 = vunpack.c.h.b16 %v393
    %v1150 = vunpack.c.l.b16 %v394
    %v1151 = vunpack.c.h.b16 %v394
    %v1152 = vunpack.c.l.b16 %v395
    %v1153 = vunpack.c.h.b16 %v395
    %v1154 = vunpack.c.l.b16 %v396
    %v1155 = vunpack.c.h.b16 %v396
    %v1156 = vunpack.c.l.b16 %v397
    %v1157 = vunpack.c.h.b16 %v397
    %v1158 = vunpack.c.l.b16 %v398
    %v1159 = vunpack.c.h.b16 %v398
    %v1160 = vunpack.c.l.b16 %v399
    %v1161 = vunpack.c.h.b16 %v399
    %v1162 = vunpack.c.l.b16 %v400
    %v1163 = vunpack.c.h.b16 %v400
    %v1164 = vunpack.c.l.b16 %v401
    %v1165 = vunpack.c.h.b16 %v401
    %v1166 = vunpack.c.l.b16 %v402
    %v1167 = vunpack.c.h.b16 %v402
    %v1168 = vunpack.c.l.b16 %v403
    %v1169 = vunpack.c.h.b16 %v403
    %v1170 = vunpack.c.l.b16 %v404
    %v1171 = vunpack.c.h.b16 %v404
    %v1172 = vunpack.c.l.b16 %v405
    %v1173 = vunpack.c.h.b16 %v405
    %v1174 = vunpack.c.l.b16 %v406
    %v1175 = vunpack.c.h.b16 %v406
    %v1176 = vunpack.c.l.b16 %v407
    %v1177 = vunpack.c.h.b16 %v407
    %v1178 = vunpack.c.l.b16 %v408
    %v1179 = vunpack.c.h.b16 %v408
    %v1180 = vunpack.c.l.b16 %v409
    %v1181 = vunpack.c.h.b16 %v409
    %v1182 = vunpack.c.l.b16 %v410
    %v1183 = vunpack.c.h.b16 %v410
    %v1184 = vunpack.c.l.b16 %v411
    %v1185 = vunpack.c.h.b16 %v411
    %v1186 = vunpack.c.l.b16 %v412
    %v1187 = vunpack.c.h.b16 %v412
    %v1188 = vunpack.c.l.b16 %v413
    %v1189 = vunpack.c.h.b16 %v413
    %v1190 = vunpack.c.l.b16 %v414
    %v1191 = vunpack.c.h.b16 %v414
    %v1192 = vunpack.c.l.b16 %v415
    %v1193 = vunpack.c.h.b16 %v415
    %v1194 = vunpack.c.l.b16 %v416
    %v1195 = vunpack.c.h.b16 %v416
    %v1196 = vunpack.c.l.b16 %v417
    %v1197 = vunpack.c.h.b16 %v417
    %v1198 = vunpack.c.l.b16 %v418
    %v1199 = vunpack.c.h.b16 %v418
    %v1200 = vunpack.c.l.b16 %v419
    %v1201 = vunpack.c.h.b16 %v419
    %v1202 = vunpack.c.l.b16 %v420
    %v1203 = vunpack.c.h.b16 %v420
    %v1204 = vunpack.c.l.b16 %v421
    %v1205 = vunpack.c.h.b16 %v421
    %v1206 = vunpack.c.l.b16 %v422
    %v1207 = vunpack.c.h.b16 %v422
    %v1208 = vunpack.c.l.b16 %v423
    %v1209 = vunpack.c.h.b16 %v423
    %v1210 = vunpack.c.l.b16 %v424
    %v1211 = vunpack.c.h.b16 %v424
    %v1212 = vunpack.c.l.b16 %v425
    %v1213 = vunpack.c.h.b16 %v425
    %v1214 = vunpack.c.l.b16 %v426
    %v1215 = vunpack.c.h.b16 %v426
    %v1216 = vunpack.c.l.b16 %v427
    %v1217 = vunpack.c.h.b16 %v427
    %v1218 = vpack.c.b16 %v710, %v706
    %v1219 = vpack.c.b16 %v711, %v707
    %v1220 = vpack.c.b16 %v712, %v708
    %v1221 = vpack.c.b16 %v713, %v709
    %v1222 = vpack.c.b16 %v718, %v714
    %v1223 = vpack.c.b16 %v719, %v715
    %v1224 = vpack.c.b16 %v720, %v716
    %v1225 = vpack.c.b16 %v721, %v717
    %v1226 = vpack.c.b16 %v726, %v722
    %v1227 = vpack.c.b16 %v727, %v723
    %v1228 = vpack.c.b16 %v728, %v724
    %v1229 = vpack.c.b16 %v729, %v725
    %v1230 = vpack.c.b16 %v734, %v730
    %v1231 = vpack.c.b16 %v735, %v731
    %v1232 = vpack.c.b16 %v736, %v732
    %v1233 = vpack.c.b16 %v737, %v733
    %v1234 = vpack.c.b16 %v742, %v738
    %v1235 = vpack.c.b16 %v743, %v739
    %v1236 = vpack.c.b16 %v744, %v740
    %v1237 = vpack.c.b16 %v745, %v741
    %v1238 = vpack.c.b16 %v750, %v746
    %v1239 = vpack.c.b16 %v751, %v747
    %v1240 = vpack.c.b16 %v752, %v748
    %v1241 = vpack.c.b16 %v753, %v749
    %v1242 = vpack.c.b16 %v758, %v754
    %v1243 = vpack.c.b16 %v759, %v755
    %v1244 = vpack.c.b16 %v760, %v756
    %v1245 = vpack.c.b16 %v761, %v757
    %v1246 = vpack.c.b16 %v766, %v762
    %v1247 = vpack.c.b16 %v767, %v763
    %v1248 = vpack.c.b16 %v768, %v764
    %v1249 = vpack.c.b16 %v769, %v765
    %v1250 = vpack.c.b16 %v774, %v770
    %v1251 = vpack.c.b16 %v775, %v771
    %v1252 = vpack.c.b16 %v776, %v772
    %v1253 = vpack.c.b16 %v777, %v773
    %v1254 = vpack.c.b16 %v782, %v778
    %v1255 = vpack.c.b16 %v783, %v779
    %v1256 = vpack.c.b16 %v784, %v780
    %v1257 = vpack.c.b16 %v785, %v781
    %v1258 = vpack.c.b16 %v790, %v786
    %v1259 = vpack.c.b16 %v791, %v787
    %v1260 = vpack.c.b16 %v792, %v788
    %v1261 = vpack.c.b16 %v793, %v789
    %v1262 = vpack.c.b16 %v798, %v794
    %v1263 = vpack.c.b16 %v799, %v795
    %v1264 = vpack.c.b16 %v800, %v796
    %v1265 = vpack.c.b16 %v801, %v797
    %v1266 = vpack.c.b16 %v806, %v802
    %v1267 = vpack.c.b16 %v807, %v803
    %v1268 = vpack.c.b16 %v808, %v804
    %v1269 = vpack.c.b16 %v809, %v805
    %v1270 = vpack.c.b16 %v814, %v810
    %v1271 = vpack.c.b16 %v815, %v811
    %v1272 = vpack.c.b16 %v816, %v812
    %v1273 = vpack.c.b16 %v817, %v813
    %v1274 = vpack.c.b16 %v822, %v818
    %v1275 = vpack.c.b16 %v823, %v819
    %v1276 = vpack.c.b16 %v824, %v820
    %v1277 = vpack.c.b16 %v825, %v821
    %v1278 = vpack.c.b16 %v830, %v826
    %v1279 = vpack.c.b16 %v831, %v827
    %v1280 = vpack.c.b16 %v832, %v828
    %v1281 = vpack.c.b16 %v833, %v829
    %v1282 = vpack.c.b16 %v838, %v834
    %v1283 = vpack.c.b16 %v839, %v835
    %v1284 = vpack.c.b16 %v840, %v836
    %v1285 = vpack.c.b16 %v841, %v837
    %v1286 = vpack.c.b16 %v846, %v842
    %v1287 = vpack.c.b16 %v847, %v843
    %v1288 = vpack.c.b16 %v848, %v844
    %v1289 = vpack.c.b16 %v849, %v845
    %v1290 = vpack.c.b16 %v854, %v850
    %v1291 = vpack.c.b16 %v855, %v851
    %v1292 = vpack.c.b16 %v856, %v852
    %v1293 = vpack.c.b16 %v857, %v853
    %v1294 = vpack.c.b16 %v862, %v858
    %v1295 = vpack.c.b16 %v863, %v859
    %v1296 = vpack.c.b16 %v864, %v860
    %v1297 = vpack.c.b16 %v865, %v861
    %v1298 = vpack.c.b16 %v870, %v866
    %v1299 = vpack.c.b16 %v871, %v867
    %v1300 = vpack.c.b16 %v872, %v868
    %v1301 = vpack.c.b16 %v873, %v869
    %v1302 = vpack.c.b16 %v878, %v874
    %v1303 = vpack.c.b16 %v879, %v875
    %v1304 = vpack.c.b16 %v880, %v876
    %v1305 = vpack.c.b16 %v881, %v877
    %v1306 = vpack.c.b16 %v886, %v882
    %v1307 = vpack.c.b16 %v887, %v883
    %v1308 = vpack.c.b16 %v888, %v884
    %v1309 = vpack.c.b16 %v889, %v885
    %v1310 = vpack.c.b16 %v894, %v890
    %v1311 = vpack.c.b16 %v895, %v891
    %v1312 = vpack.c.b16 %v896, %v892
    %v1313 = vpack.c.b16 %v897, %v893
    %v1314 = vpack.c.b16 %v902, %v898
    %v1315 = vpack.c.b16 %v903, %v899
    %v1316 = vpack.c.b16 %v904, %v900
    %v1317 = vpack.c.b16 %v905, %v901
    %v1318 = vpack.c.b16 %v910, %v906
    %v1319 = vpack.c.b16 %v911, %v907
    %v1320 = vpack.c.b16 %v912, %v908
    %v1321 = vpack.c.b16 %v913, %v909
    %v1322 = vpack.c.b16 %v918, %v914
    %v1323 = vpack.c.b16 %v919, %v915
    %v1324 = vpack.c.b16 %v920, %v916
    %v1325 = vpack.c.b16 %v921, %v917
    %v1326 = vpack.c.b16 %v926, %v922
    %v1327 = vpack.c.b16 %v927, %v923
    %v1328 = vpack.c.b16 %v928, %v924
    %v1329 = vpack.c.b16 %v929, %v925
    %v1330 = vpack.c.b16 %v934, %v930
    %v1331 = vpack.c.b16 %v935, %v931
    %v1332 = vpack.c.b16 %v936, %v932
    %v1333 = vpack.c.b16 %v937, %v933
    %v1334 = vpack.c.b16 %v942, %v938
    %v1335 = vpack.c.b16 %v943, %v939
    %v1336 = vpack.c.b16 %v944, %v940
    %v1337 = vpack.c.b16 %v945, %v941
    %v1338 = vpack.c.b16 %v950, %v946
    %v1339 = vpack.c.b16 %v951, %v947
    %v1340 = vpack.c.b16 %v952, %v948
    %v1341 = vpack.c.b16 %v953, %v949
    %v1342 = vpack.c.b16 %v958, %v954
    %v1343 = vpack.c.b16 %v959, %v955
    %v1344 = vpack.c.b16 %v960, %v956
    %v1345 = vpack.c.b16 %v961, %v957
    %v1346 = vpack.c.b16 %v966, %v962
    %v1347 = vpack.c.b16 %v967, %v963
    %v1348 = vpack.c.b16 %v968, %v964
    %v1349 = vpack.c.b16 %v969, %v965
    %v1350 = vpack.c.b16 %v974, %v970
    %v1351 = vpack.c.b16 %v975, %v971
    %v1352 = vpack.c.b16 %v976, %v972
    %v1353 = vpack.c.b16 %v977, %v973
    %v1354 = vpack.c.b16 %v982, %v978
    %v1355 = vpack.c.b16 %v983, %v979
    %v1356 = vpack.c.b16 %v984, %v980
    %v1357 = vpack.c.b16 %v985, %v981
    %v1358 = vpack.c.b16 %v990, %v986
    %v1359 = vpack.c.b16 %v991, %v987
    %v1360 = vpack.c.b16 %v992, %v988
    %v1361 = vpack.c.b16 %v993, %v989
    %v1362 = vpack.c.b16 %v998, %v994
    %v1363 = vpack.c.b16 %v999, %v995
    %v1364 = vpack.c.b16 %v1000, %v996
    %v1365 = vpack.c.b16 %v1001, %v997
    %v1366 = vpack.c.b16 %v1006, %v1002
    %v1367 = vpack.c.b16 %v1007, %v1003
    %v1368 = vpack.c.b16 %v1008, %v1004
    %v1369 = vpack.c.b16 %v1009, %v1005
    %v1370 = vpack.c.b16 %v1014, %v1010
    %v1371 = vpack.c.b16 %v1015, %v1011
    %v1372 = vpack.c.b16 %v1016, %v1012
    %v1373 = vpack.c.b16 %v1017, %v1013
    %v1374 = vpack.c.b16 %v1022, %v1018
    %v1375 = vpack.c.b16 %v1023, %v1019
    %v1376 = vpack.c.b16 %v1024, %v1020
    %v1377 = vpack.c.b16 %v1025, %v1021
    %v1378 = vpack.c.b16 %v1030, %v1026
    %v1379 = vpack.c.b16 %v1031, %v1027
    %v1380 = vpack.c.b16 %v1032, %v1028
    %v1381 = vpack.c.b16 %v1033, %v1029
    %v1382 = vpack.c.b16 %v1038, %v1034
    %v1383 = vpack.c.b16 %v1039, %v1035
    %v1384 = vpack.c.b16 %v1040, %v1036
    %v1385 = vpack.c.b16 %v1041, %v1037
    %v1386 = vpack.c.b16 %v1046, %v1042
    %v1387 = vpack.c.b16 %v1047, %v1043
    %v1388 = vpack.c.b16 %v1048, %v1044
    %v1389 = vpack.c.b16 %v1049, %v1045
    %v1390 = vpack.c.b16 %v1054, %v1050
    %v1391 = vpack.c.b16 %v1055, %v1051
    %v1392 = vpack.c.b16 %v1056, %v1052
    %v1393 = vpack.c.b16 %v1057, %v1053
    %v1394 = vpack.c.b16 %v1062, %v1058
    %v1395 = vpack.c.b16 %v1063, %v1059
    %v1396 = vpack.c.b16 %v1064, %v1060
    %v1397 = vpack.c.b16 %v1065, %v1061
    %v1398 = vpack.c.b16 %v1070, %v1066
    %v1399 = vpack.c.b16 %v1071, %v1067
    %v1400 = vpack.c.b16 %v1072, %v1068
    %v1401 = vpack.c.b16 %v1073, %v1069
    %v1402 = vpack.c.b16 %v1078, %v1074
    %v1403 = vpack.c.b16 %v1079, %v1075
    %v1404 = vpack.c.b16 %v1080, %v1076
    %v1405 = vpack.c.b16 %v1081, %v1077
    %v1406 = vpack.c.b16 %v1086, %v1082
    %v1407 = vpack.c.b16 %v1087, %v1083
    %v1408 = vpack.c.b16 %v1088, %v1084
    %v1409 = vpack.c.b16 %v1089, %v1085
    %v1410 = vpack.c.b16 %v1094, %v1090
    %v1411 = vpack.c.b16 %v1095, %v1091
    %v1412 = vpack.c.b16 %v1096, %v1092
    %v1413 = vpack.c.b16 %v1097, %v1093
    %v1414 = vpack.c.b16 %v1102, %v1098
    %v1415 = vpack.c.b16 %v1103, %v1099
    %v1416 = vpack.c.b16 %v1104, %v1100
    %v1417 = vpack.c.b16 %v1105, %v1101
    %v1418 = vpack.c.b16 %v1110, %v1106
    %v1419 = vpack.c.b16 %v1111, %v1107
    %v1420 = vpack.c.b16 %v1112, %v1108
    %v1421 = vpack.c.b16 %v1113, %v1109
    %v1422 = vpack.c.b16 %v1118, %v1114
    %v1423 = vpack.c.b16 %v1119, %v1115
    %v1424 = vpack.c.b16 %v1120, %v1116
    %v1425 = vpack.c.b16 %v1121, %v1117
    %v1426 = vpack.c.b16 %v1126, %v1122
    %v1427 = vpack.c.b16 %v1127, %v1123
    %v1428 = vpack.c.b16 %v1128, %v1124
    %v1429 = vpack.c.b16 %v1129, %v1125
    %v1430 = vpack.c.b16 %v1134, %v1130
    %v1431 = vpack.c.b16 %v1135, %v1131
    %v1432 = vpack.c.b16 %v1136, %v1132
    %v1433 = vpack.c.b16 %v1137, %v1133
    %v1434 = vpack.c.b16 %v1142, %v1138
    %v1435 = vpack.c.b16 %v1143, %v1139
    %v1436 = vpack.c.b16 %v1144, %v1140
    %v1437 = vpack.c.b16 %v1145, %v1141
    %v1438 = vpack.c.b16 %v1150, %v1146
    %v1439 = vpack.c.b16 %v1151, %v1147
    %v1440 = vpack.c.b16 %v1152, %v1148
    %v1441 = vpack.c.b16 %v1153, %v1149
    %v1442 = vpack.c.b16 %v1158, %v1154
    %v1443 = vpack.c.b16 %v1159, %v1155
    %v1444 = vpack.c.b16 %v1160, %v1156
    %v1445 = vpack.c.b16 %v1161, %v1157
    %v1446 = vpack.c.b16 %v1166, %v1162
    %v1447 = vpack.c.b16 %v1167, %v1163
    %v1448 = vpack.c.b16 %v1168, %v1164
    %v1449 = vpack.c.b16 %v1169, %v1165
    %v1450 = vpack.c.b16 %v1174, %v1170
    %v1451 = vpack.c.b16 %v1175, %v1171
    %v1452 = vpack.c.b16 %v1176, %v1172
    %v1453 = vpack.c.b16 %v1177, %v1173
    %v1454 = vpack.c.b16 %v1182, %v1178
    %v1455 = vpack.c.b16 %v1183, %v1179
    %v1456 = vpack.c.b16 %v1184, %v1180
    %v1457 = vpack.c.b16 %v1185, %v1181
    %v1458 = vpack.c.b16 %v1190, %v1186
    %v1459 = vpack.c.b16 %v1191, %v1187
    %v1460 = vpack.c.b16 %v1192, %v1188
    %v1461 = vpack.c.b16 %v1193, %v1189
    %v1462 = vpack.c.b16 %v1198, %v1194
    %v1463 = vpack.c.b16 %v1199, %v1195
    %v1464 = vpack.c.b16 %v1200, %v1196
    %v1465 = vpack.c.b16 %v1201, %v1197
    %v1466 = vpack.c.b16 %v1206, %v1202
    %v1467 = vpack.c.b16 %v1207, %v1203
    %v1468 = vpack.c.b16 %v1208, %v1204
    %v1469 = vpack.c.b16 %v1209, %v1205
    %v1470 = vpack.c.b16 %v1214, %v1210
    %v1471 = vpack.c.b16 %v1215, %v1211
    %v1472 = vpack.c.b16 %v1216, %v1212
    %v1473 = vpack.c.b16 %v1217, %v1213
    %1730 = vmatprep.subr.bf16.mxu0 %v1219
    %1731 = vmatpush1.bf16.msra.mxu0 %v1218
    %1732 = vmatprep.subr.bf16.mxu0 %v1223
    %1733 = vmatpush1.bf16.msra.mxu0 %v1222
    %1734 = vmatprep.subr.bf16.mxu0 %v1227
    %1735 = vmatpush1.bf16.msra.mxu0 %v1226
    %1736 = vmatprep.subr.bf16.mxu0 %v1231
    %1737 = vmatpush1.bf16.msra.mxu0 %v1230
    %1738 = vmatprep.subr.bf16.mxu0 %v1235
    %1739 = vmatpush1.bf16.msra.mxu0 %v1234
    %1740 = vmatprep.subr.bf16.mxu0 %v1239
    %1741 = vmatpush1.bf16.msra.mxu0 %v1238
    %1742 = vmatprep.subr.bf16.mxu0 %v1243
    %1743 = vmatpush1.bf16.msra.mxu0 %v1242
    %1744 = vmatprep.subr.bf16.mxu0 %v1247
    %1745 = vmatpush1.bf16.msra.mxu0 %v1246
    %1746 = vmatprep.subr.bf16.mxu0 %v1251
    %1747 = vmatpush1.bf16.msra.mxu0 %v1250
    %1748 = vmatprep.subr.bf16.mxu0 %v1255
    %1749 = vmatpush1.bf16.msra.mxu0 %v1254
    %1750 = vmatprep.subr.bf16.mxu0 %v1259
    %1751 = vmatpush1.bf16.msra.mxu0 %v1258
    %1752 = vmatprep.subr.bf16.mxu0 %v1263
    %1753 = vmatpush1.bf16.msra.mxu0 %v1262
    %1754 = vmatprep.subr.bf16.mxu0 %v1267
    %1755 = vmatpush1.bf16.msra.mxu0 %v1266
    %1756 = vmatprep.subr.bf16.mxu0 %v1271
    %1757 = vmatpush1.bf16.msra.mxu0 %v1270
    %1758 = vmatprep.subr.bf16.mxu0 %v1275
    %1759 = vmatpush1.bf16.msra.mxu0 %v1274
    %1760 = vmatprep.subr.bf16.mxu0 %v1279
    %1761 = vmatpush1.bf16.msra.mxu0 %v1278
    %1762 = vmatprep.mubr.bf16.mxu0 %v165
    %1763 = vmatmul.mubr.bf16.gmra.mrb[0].mxu0 %v164
    %v1764 = vpop.f32.mrb[0].mxu0
    %v1765 = vadd.f32 %v433, %v1764
    %v1766 = vpop.f32.mrb[0].mxu0
    %v1767 = vadd.f32 %v437, %v1766
    %v1768 = vpop.f32.mrb[0].mxu0
    %v1769 = vpop.f32.mrb[0].mxu0
    %1770 = vdwg.mxu0
    %1771 = vmatprep.subr.bf16.mxu0 %v1283
    %1772 = vmatpush1.bf16.msra.mxu0 %v1282
    %1773 = vmatprep.subr.bf16.mxu0 %v1287
    %1774 = vmatpush1.bf16.msra.mxu0 %v1286
    %1775 = vmatprep.subr.bf16.mxu0 %v1291
    %1776 = vmatpush1.bf16.msra.mxu0 %v1290
    %1777 = vmatprep.subr.bf16.mxu0 %v1295
    %1778 = vmatpush1.bf16.msra.mxu0 %v1294
    %1779 = vmatprep.subr.bf16.mxu0 %v1299
    %1780 = vmatpush1.bf16.msra.mxu0 %v1298
    %1781 = vmatprep.subr.bf16.mxu0 %v1303
    %1782 = vmatpush1.bf16.msra.mxu0 %v1302
    %1783 = vmatprep.subr.bf16.mxu0 %v1307
    %1784 = vmatpush1.bf16.msra.mxu0 %v1306
    %1785 = vmatprep.subr.bf16.mxu0 %v1311
    %1786 = vmatpush1.bf16.msra.mxu0 %v1310
    %1787 = vmatprep.subr.bf16.mxu0 %v1315
    %1788 = vmatpush1.bf16.msra.mxu0 %v1314
    %1789 = vmatprep.subr.bf16.mxu0 %v1319
    %1790 = vmatpush1.bf16.msra.mxu0 %v1318
    %1791 = vmatprep.subr.bf16.mxu0 %v1323
    %1792 = vmatpush1.bf16.msra.mxu0 %v1322
    %1793 = vmatprep.subr.bf16.mxu0 %v1327
    %1794 = vmatpush1.bf16.msra.mxu0 %v1326
    %1795 = vmatprep.subr.bf16.mxu0 %v1331
    %1796 = vmatpush1.bf16.msra.mxu0 %v1330
    %1797 = vmatprep.subr.bf16.mxu0 %v1335
    %1798 = vmatpush1.bf16.msra.mxu0 %v1334
    %1799 = vmatprep.subr.bf16.mxu0 %v1339
    %1800 = vmatpush1.bf16.msra.mxu0 %v1338
    %1801 = vmatprep.subr.bf16.mxu0 %v1343
    %1802 = vmatpush1.bf16.msra.mxu0 %v1342
    %1803 = vmatprep.mubr.bf16.mxu0 %v167
    %1804 = vmatmul.mubr.bf16.gmra.mrb[0].mxu0 %v166
    %v1805 = vpop.f32.mrb[0].mxu0
    %v1806 = vadd.f32 %v1765, %v1805
    %v1807 = vpop.f32.mrb[0].mxu0
    %v1808 = vadd.f32 %v1767, %v1807
    %v1809 = vpop.f32.mrb[0].mxu0
    %v1810 = vpop.f32.mrb[0].mxu0
    %1811 = vdwg.mxu0
    %1812 = vmatprep.subr.bf16.mxu0 %v1347
    %1813 = vmatpush1.bf16.msra.mxu0 %v1346
    %1814 = vmatprep.subr.bf16.mxu0 %v1351
    %1815 = vmatpush1.bf16.msra.mxu0 %v1350
    %1816 = vmatprep.subr.bf16.mxu0 %v1355
    %1817 = vmatpush1.bf16.msra.mxu0 %v1354
    %1818 = vmatprep.subr.bf16.mxu0 %v1359
    %1819 = vmatpush1.bf16.msra.mxu0 %v1358
    %1820 = vmatprep.subr.bf16.mxu0 %v1363
    %1821 = vmatpush1.bf16.msra.mxu0 %v1362
    %1822 = vmatprep.subr.bf16.mxu0 %v1367
    %1823 = vmatpush1.bf16.msra.mxu0 %v1366
    %1824 = vmatprep.subr.bf16.mxu0 %v1371
    %1825 = vmatpush1.bf16.msra.mxu0 %v1370
    %1826 = vmatprep.subr.bf16.mxu0 %v1375
    %1827 = vmatpush1.bf16.msra.mxu0 %v1374
    %1828 = vmatprep.subr.bf16.mxu0 %v1379
    %1829 = vmatpush1.bf16.msra.mxu0 %v1378
    %1830 = vmatprep.subr.bf16.mxu0 %v1383
    %1831 = vmatpush1.bf16.msra.mxu0 %v1382
    %1832 = vmatprep.subr.bf16.mxu0 %v1387
    %1833 = vmatpush1.bf16.msra.mxu0 %v1386
    %1834 = vmatprep.subr.bf16.mxu0 %v1391
    %1835 = vmatpush1.bf16.msra.mxu0 %v1390
    %1836 = vmatprep.subr.bf16.mxu0 %v1395
    %1837 = vmatpush1.bf16.msra.mxu0 %v1394
    %1838 = vmatprep.subr.bf16.mxu0 %v1399
    %1839 = vmatpush1.bf16.msra.mxu0 %v1398
    %1840 = vmatprep.subr.bf16.mxu0 %v1403
    %1841 = vmatpush1.bf16.msra.mxu0 %v1402
    %1842 = vmatprep.subr.bf16.mxu0 %v1407
    %1843 = vmatpush1.bf16.msra.mxu0 %v1406
    %1844 = vmatprep.mubr.bf16.mxu0 %v169
    %1845 = vmatmul.mubr.bf16.gmra.mrb[0].mxu0 %v168
    %v1846 = vpop.f32.mrb[0].mxu0
    %v1847 = vadd.f32 %v1806, %v1846
    %v1848 = vpop.f32.mrb[0].mxu0
    %v1849 = vadd.f32 %v1808, %v1848
    %v1850 = vpop.f32.mrb[0].mxu0
    %v1851 = vpop.f32.mrb[0].mxu0
    %1852 = vdwg.mxu0
    %1853 = vmatprep.subr.bf16.mxu0 %v1411
    %1854 = vmatpush1.bf16.msra.mxu0 %v1410
    %1855 = vmatprep.subr.bf16.mxu0 %v1415
    %1856 = vmatpush1.bf16.msra.mxu0 %v1414
    %1857 = vmatprep.subr.bf16.mxu0 %v1419
    %1858 = vmatpush1.bf16.msra.mxu0 %v1418
    %1859 = vmatprep.subr.bf16.mxu0 %v1423
    %1860 = vmatpush1.bf16.msra.mxu0 %v1422
    %1861 = vmatprep.subr.bf16.mxu0 %v1427
    %1862 = vmatpush1.bf16.msra.mxu0 %v1426
    %1863 = vmatprep.subr.bf16.mxu0 %v1431
    %1864 = vmatpush1.bf16.msra.mxu0 %v1430
    %1865 = vmatprep.subr.bf16.mxu0 %v1435
    %1866 = vmatpush1.bf16.msra.mxu0 %v1434
    %1867 = vmatprep.subr.bf16.mxu0 %v1439
    %1868 = vmatpush1.bf16.msra.mxu0 %v1438
    %1869 = vmatprep.subr.bf16.mxu0 %v1443
    %1870 = vmatpush1.bf16.msra.mxu0 %v1442
    %1871 = vmatprep.subr.bf16.mxu0 %v1447
    %1872 = vmatpush1.bf16.msra.mxu0 %v1446
    %1873 = vmatprep.subr.bf16.mxu0 %v1451
    %1874 = vmatpush1.bf16.msra.mxu0 %v1450
    %1875 = vmatprep.subr.bf16.mxu0 %v1455
    %1876 = vmatpush1.bf16.msra.mxu0 %v1454
    %1877 = vmatprep.subr.bf16.mxu0 %v1459
    %1878 = vmatpush1.bf16.msra.mxu0 %v1458
    %1879 = vmatprep.subr.bf16.mxu0 %v1463
    %1880 = vmatpush1.bf16.msra.mxu0 %v1462
    %1881 = vmatprep.subr.bf16.mxu0 %v1467
    %1882 = vmatpush1.bf16.msra.mxu0 %v1466
    %1883 = vmatprep.subr.bf16.mxu0 %v1471
    %1884 = vmatpush1.bf16.msra.mxu0 %v1470
    %1885 = vmatprep.mubr.bf16.mxu0 %v171
    %1886 = vmatmul.mubr.bf16.gmra.mrb[0].mxu0 %v170
    %v1887 = vpop.f32.mrb[0].mxu0
    %v1888 = vadd.f32 %v1847, %v1887
    %v1889 = vpop.f32.mrb[0].mxu0
    %v1890 = vadd.f32 %v1849, %v1889
    %v1891 = vpop.f32.mrb[0].mxu0
    %v1892 = vpop.f32.mrb[0].mxu0
    %1893 = vdwg.mxu0
    %1894 = vmatprep.subr.bf16.mxu0 %v1221
    %1895 = vmatpush1.bf16.msra.mxu0 %v1220
    %1896 = vmatprep.subr.bf16.mxu0 %v1225
    %1897 = vmatpush1.bf16.msra.mxu0 %v1224
    %1898 = vmatprep.subr.bf16.mxu0 %v1229
    %1899 = vmatpush1.bf16.msra.mxu0 %v1228
    %1900 = vmatprep.subr.bf16.mxu0 %v1233
    %1901 = vmatpush1.bf16.msra.mxu0 %v1232
    %1902 = vmatprep.subr.bf16.mxu0 %v1237
    %1903 = vmatpush1.bf16.msra.mxu0 %v1236
    %1904 = vmatprep.subr.bf16.mxu0 %v1241
    %1905 = vmatpush1.bf16.msra.mxu0 %v1240
    %1906 = vmatprep.subr.bf16.mxu0 %v1245
    %1907 = vmatpush1.bf16.msra.mxu0 %v1244
    %1908 = vmatprep.subr.bf16.mxu0 %v1249
    %1909 = vmatpush1.bf16.msra.mxu0 %v1248
    %1910 = vmatprep.subr.bf16.mxu0 %v1253
    %1911 = vmatpush1.bf16.msra.mxu0 %v1252
    %1912 = vmatprep.subr.bf16.mxu0 %v1257
    %1913 = vmatpush1.bf16.msra.mxu0 %v1256
    %1914 = vmatprep.subr.bf16.mxu0 %v1261
    %1915 = vmatpush1.bf16.msra.mxu0 %v1260
    %1916 = vmatprep.subr.bf16.mxu0 %v1265
    %1917 = vmatpush1.bf16.msra.mxu0 %v1264
    %1918 = vmatprep.subr.bf16.mxu0 %v1269
    %1919 = vmatpush1.bf16.msra.mxu0 %v1268
    %1920 = vmatprep.subr.bf16.mxu0 %v1273
    %1921 = vmatpush1.bf16.msra.mxu0 %v1272
    %1922 = vmatprep.subr.bf16.mxu0 %v1277
    %1923 = vmatpush1.bf16.msra.mxu0 %v1276
    %1924 = vmatprep.subr.bf16.mxu0 %v1281
    %1925 = vmatpush1.bf16.msra.mxu0 %v1280
    %1926 = vmatprep.mubr.bf16.mxu0 %v165
    %1927 = vmatmul.mubr.bf16.gmra.mrb[0].mxu0 %v164
    %v1928 = vpop.f32.mrb[0].mxu0
    %v1929 = vadd.f32 %v441, %v1928
    %v1930 = vpop.f32.mrb[0].mxu0
    %v1931 = vadd.f32 %v445, %v1930
    %v1932 = vpop.f32.mrb[0].mxu0
    %v1933 = vpop.f32.mrb[0].mxu0
    %1934 = vdwg.mxu0
    %1935 = vmatprep.subr.bf16.mxu0 %v1285
    %1936 = vmatpush1.bf16.msra.mxu0 %v1284
    %1937 = vmatprep.subr.bf16.mxu0 %v1289
    %1938 = vmatpush1.bf16.msra.mxu0 %v1288
    %1939 = vmatprep.subr.bf16.mxu0 %v1293
    %1940 = vmatpush1.bf16.msra.mxu0 %v1292
    %1941 = vmatprep.subr.bf16.mxu0 %v1297
    %1942 = vmatpush1.bf16.msra.mxu0 %v1296
    %1943 = vmatprep.subr.bf16.mxu0 %v1301
    %1944 = vmatpush1.bf16.msra.mxu0 %v1300
    %1945 = vmatprep.subr.bf16.mxu0 %v1305
    %1946 = vmatpush1.bf16.msra.mxu0 %v1304
    %1947 = vmatprep.subr.bf16.mxu0 %v1309
    %1948 = vmatpush1.bf16.msra.mxu0 %v1308
    %1949 = vmatprep.subr.bf16.mxu0 %v1313
    %1950 = vmatpush1.bf16.msra.mxu0 %v1312
    %1951 = vmatprep.subr.bf16.mxu0 %v1317
    %1952 = vmatpush1.bf16.msra.mxu0 %v1316
    %1953 = vmatprep.subr.bf16.mxu0 %v1321
    %1954 = vmatpush1.bf16.msra.mxu0 %v1320
    %1955 = vmatprep.subr.bf16.mxu0 %v1325
    %1956 = vmatpush1.bf16.msra.mxu0 %v1324
    %1957 = vmatprep.subr.bf16.mxu0 %v1329
    %1958 = vmatpush1.bf16.msra.mxu0 %v1328
    %1959 = vmatprep.subr.bf16.mxu0 %v1333
    %1960 = vmatpush1.bf16.msra.mxu0 %v1332
    %1961 = vmatprep.subr.bf16.mxu0 %v1337
    %1962 = vmatpush1.bf16.msra.mxu0 %v1336
    %1963 = vmatprep.subr.bf16.mxu0 %v1341
    %1964 = vmatpush1.bf16.msra.mxu0 %v1340
    %1965 = vmatprep.subr.bf16.mxu0 %v1345
    %1966 = vmatpush1.bf16.msra.mxu0 %v1344
    %1967 = vmatprep.mubr.bf16.mxu0 %v167
    %1968 = vmatmul.mubr.bf16.gmra.mrb[0].mxu0 %v166
    %v1969 = vpop.f32.mrb[0].mxu0
    %v1970 = vadd.f32 %v1929, %v1969
    %v1971 = vpop.f32.mrb[0].mxu0
    %v1972 = vadd.f32 %v1931, %v1971
    %v1973 = vpop.f32.mrb[0].mxu0
    %v1974 = vpop.f32.mrb[0].mxu0
    %1975 = vdwg.mxu0
    %1976 = vmatprep.subr.bf16.mxu0 %v1349
    %1977 = vmatpush1.bf16.msra.mxu0 %v1348
    %1978 = vmatprep.subr.bf16.mxu0 %v1353
    %1979 = vmatpush1.bf16.msra.mxu0 %v1352
    %1980 = vmatprep.subr.bf16.mxu0 %v1357
    %1981 = vmatpush1.bf16.msra.mxu0 %v1356
    %1982 = vmatprep.subr.bf16.mxu0 %v1361
    %1983 = vmatpush1.bf16.msra.mxu0 %v1360
    %1984 = vmatprep.subr.bf16.mxu0 %v1365
    %1985 = vmatpush1.bf16.msra.mxu0 %v1364
    %1986 = vmatprep.subr.bf16.mxu0 %v1369
    %1987 = vmatpush1.bf16.msra.mxu0 %v1368
    %1988 = vmatprep.subr.bf16.mxu0 %v1373
    %1989 = vmatpush1.bf16.msra.mxu0 %v1372
    %1990 = vmatprep.subr.bf16.mxu0 %v1377
    %1991 = vmatpush1.bf16.msra.mxu0 %v1376
    %1992 = vmatprep.subr.bf16.mxu0 %v1381
    %1993 = vmatpush1.bf16.msra.mxu0 %v1380
    %1994 = vmatprep.subr.bf16.mxu0 %v1385
    %1995 = vmatpush1.bf16.msra.mxu0 %v1384
    %1996 = vmatprep.subr.bf16.mxu0 %v1389
    %1997 = vmatpush1.bf16.msra.mxu0 %v1388
    %1998 = vmatprep.subr.bf16.mxu0 %v1393
    %1999 = vmatpush1.bf16.msra.mxu0 %v1392
    %2000 = vmatprep.subr.bf16.mxu0 %v1397
    %2001 = vmatpush1.bf16.msra.mxu0 %v1396
    %2002 = vmatprep.subr.bf16.mxu0 %v1401
    %2003 = vmatpush1.bf16.msra.mxu0 %v1400
    %2004 = vmatprep.subr.bf16.mxu0 %v1405
    %2005 = vmatpush1.bf16.msra.mxu0 %v1404
    %2006 = vmatprep.subr.bf16.mxu0 %v1409
    %2007 = vmatpush1.bf16.msra.mxu0 %v1408
    %2008 = vmatprep.mubr.bf16.mxu0 %v169
    %2009 = vmatmul.mubr.bf16.gmra.mrb[0].mxu0 %v168
    %v2010 = vpop.f32.mrb[0].mxu0
    %v2011 = vadd.f32 %v1970, %v2010
    %v2012 = vpop.f32.mrb[0].mxu0
    %v2013 = vadd.f32 %v1972, %v2012
    %v2014 = vpop.f32.mrb[0].mxu0
    %v2015 = vpop.f32.mrb[0].mxu0
    %2016 = vdwg.mxu0
    %2017 = vmatprep.subr.bf16.mxu0 %v1413
    %2018 = vmatpush1.bf16.msra.mxu0 %v1412
    %2019 = vmatprep.subr.bf16.mxu0 %v1417
    %2020 = vmatpush1.bf16.msra.mxu0 %v1416
    %2021 = vmatprep.subr.bf16.mxu0 %v1421
    %2022 = vmatpush1.bf16.msra.mxu0 %v1420
    %2023 = vmatprep.subr.bf16.mxu0 %v1425
    %2024 = vmatpush1.bf16.msra.mxu0 %v1424
    %2025 = vmatprep.subr.bf16.mxu0 %v1429
    %2026 = vmatpush1.bf16.msra.mxu0 %v1428
    %2027 = vmatprep.subr.bf16.mxu0 %v1433
    %2028 = vmatpush1.bf16.msra.mxu0 %v1432
    %2029 = vmatprep.subr.bf16.mxu0 %v1437
    %2030 = vmatpush1.bf16.msra.mxu0 %v1436
    %2031 = vmatprep.subr.bf16.mxu0 %v1441
    %2032 = vmatpush1.bf16.msra.mxu0 %v1440
    %2033 = vmatprep.subr.bf16.mxu0 %v1445
    %2034 = vmatpush1.bf16.msra.mxu0 %v1444
    %2035 = vmatprep.subr.bf16.mxu0 %v1449
    %2036 = vmatpush1.bf16.msra.mxu0 %v1448
    %2037 = vmatprep.subr.bf16.mxu0 %v1453
    %2038 = vmatpush1.bf16.msra.mxu0 %v1452
    %2039 = vmatprep.subr.bf16.mxu0 %v1457
    %2040 = vmatpush1.bf16.msra.mxu0 %v1456
    %2041 = vmatprep.subr.bf16.mxu0 %v1461
    %2042 = vmatpush1.bf16.msra.mxu0 %v1460
    %2043 = vmatprep.subr.bf16.mxu0 %v1465
    %2044 = vmatpush1.bf16.msra.mxu0 %v1464
    %2045 = vmatprep.subr.bf16.mxu0 %v1469
    %2046 = vmatpush1.bf16.msra.mxu0 %v1468
    %2047 = vmatprep.subr.bf16.mxu0 %v1473
    %2048 = vmatpush1.bf16.msra.mxu0 %v1472
    %2049 = vmatprep.mubr.bf16.mxu0 %v171
    %2050 = vmatmul.mubr.bf16.gmra.mrb[0].mxu0 %v170
    %v2051 = vpop.f32.mrb[0].mxu0
    %v2052 = vadd.f32 %v2011, %v2051
    %v2053 = vpop.f32.mrb[0].mxu0
    %v2054 = vadd.f32 %v2013, %v2053
    %v2055 = vpop.f32.mrb[0].mxu0
    %v2056 = vpop.f32.mrb[0].mxu0
    %2057 = vdwg.mxu0
    %v2062 = vcombine.low %v1888, %v1890
    %v2063 = vcombine.low %v2052, %v2054
    %v2065 = vunpack.c.l.s4 1983009808
    %v2066 = vunpack.c.0.s8 %v2065
    %v2067 = vlaneseq
    %v2068 = vshrl.u32 %v2067, 7
    %v2069 = vsub.s32 %v2066, %v2068
    %v2070 = vrot.slane %v2062, %v2069
    %v2072 = vunpack.c.l.s4 1983009808
    %v2073 = vunpack.c.0.s8 %v2072
    %v2074 = vlaneseq
    %v2075 = vshrl.u32 %v2074, 7
    %v2076 = vsub.s32 %v2073, %v2075
    %v2077 = vrot.slane %v2063, %v2076
    %v2078 = vcombine.low %v2070, %v2077
    %2080 = vst [vmem:[#allocation13] sm:$0xff] %v2078
    %v2081 = vld [vmem:[#allocation5] sm:$0xff]
    %v2083 = vcombine.high %v2081, %v2081
    %v2085 = vunpack.c.l.s4 1983009808
    %v2086 = vunpack.c.0.s8 %v2085
    %v2087 = vlaneseq
    %v2088 = vshrl.u32 %v2087, 7
    %v2089 = vsub.s32 %v2086, %v2088
    %v2090 = vrot.slane %v2081, %v2089
    %v2092 = vunpack.c.l.s4 1983009808
    %v2093 = vunpack.c.0.s8 %v2092
    %v2094 = vlaneseq
    %v2095 = vshrl.u32 %v2094, 7
    %v2096 = vsub.s32 %v2093, %v2095
    %v2097 = vrot.slane %v2083, %v2096
    %v2098 = vcombine.high %v2090, %v2090
    %v2099 = vcombine.high %v2097, %v2097
    %v2104 = vpack.c.bf16 %v2090, %v2090
    %v2105 = vpack.c.bf16 %v2098, %v2098
    %v2106 = vpack.c.bf16 %v2097, %v2097
    %v2107 = vpack.c.bf16 %v2099, %v2099
    %v2108 = vld [vmem:[#allocation8] sm:$0xff]
    %v2109 = vld [vmem:[#allocation8 + $0x8] sm:$0xff]
    %v2110 = vld [vmem:[#allocation8 + $0x10] sm:$0xff]
    %v2111 = vld [vmem:[#allocation8 + $0x18] sm:$0xff]
    %v2112 = vld [vmem:[#allocation8 + $0x20] sm:$0xff]
    %v2113 = vld [vmem:[#allocation8 + $0x28] sm:$0xff]
    %v2114 = vld [vmem:[#allocation8 + $0x30] sm:$0xff]
    %v2115 = vld [vmem:[#allocation8 + $0x38] sm:$0xff]
    %v2116 = vld [vmem:[#allocation8 + $0x40] sm:$0xff]
    %v2117 = vld [vmem:[#allocation8 + $0x48] sm:$0xff]
    %v2118 = vld [vmem:[#allocation8 + $0x50] sm:$0xff]
    %v2119 = vld [vmem:[#allocation8 + $0x58] sm:$0xff]
    %v2120 = vld [vmem:[#allocation8 + $0x60] sm:$0xff]
    %v2121 = vld [vmem:[#allocation8 + $0x68] sm:$0xff]
    %v2122 = vld [vmem:[#allocation8 + $0x70] sm:$0xff]
    %v2123 = vld [vmem:[#allocation8 + $0x78] sm:$0xff]
    %v2124 = vld [vmem:[#allocation8 + $0x80] sm:$0xff]
    %v2125 = vld [vmem:[#allocation8 + $0x88] sm:$0xff]
    %v2126 = vld [vmem:[#allocation8 + $0x90] sm:$0xff]
    %v2127 = vld [vmem:[#allocation8 + $0x98] sm:$0xff]
    %v2128 = vld [vmem:[#allocation8 + $0xa0] sm:$0xff]
    %v2129 = vld [vmem:[#allocation8 + $0xa8] sm:$0xff]
    %v2130 = vld [vmem:[#allocation8 + $0xb0] sm:$0xff]
    %v2131 = vld [vmem:[#allocation8 + $0xb8] sm:$0xff]
    %v2132 = vld [vmem:[#allocation8 + $0xc0] sm:$0xff]
    %v2133 = vld [vmem:[#allocation8 + $0xc8] sm:$0xff]
    %v2134 = vld [vmem:[#allocation8 + $0xd0] sm:$0xff]
    %v2135 = vld [vmem:[#allocation8 + $0xd8] sm:$0xff]
    %v2136 = vld [vmem:[#allocation8 + $0xe0] sm:$0xff]
    %v2137 = vld [vmem:[#allocation8 + $0xe8] sm:$0xff]
    %v2138 = vld [vmem:[#allocation8 + $0xf0] sm:$0xff]
    %v2139 = vld [vmem:[#allocation8 + $0xf8] sm:$0xff]
    %v2140 = vld [vmem:[#allocation8 + $0x100] sm:$0xff]
    %v2141 = vld [vmem:[#allocation8 + $0x108] sm:$0xff]
    %v2142 = vld [vmem:[#allocation8 + $0x110] sm:$0xff]
    %v2143 = vld [vmem:[#allocation8 + $0x118] sm:$0xff]
    %v2144 = vld [vmem:[#allocation8 + $0x120] sm:$0xff]
    %v2145 = vld [vmem:[#allocation8 + $0x128] sm:$0xff]
    %v2146 = vld [vmem:[#allocation8 + $0x130] sm:$0xff]
    %v2147 = vld [vmem:[#allocation8 + $0x138] sm:$0xff]
    %v2148 = vld [vmem:[#allocation8 + $0x140] sm:$0xff]
    %v2149 = vld [vmem:[#allocation8 + $0x148] sm:$0xff]
    %v2150 = vld [vmem:[#allocation8 + $0x150] sm:$0xff]
    %v2151 = vld [vmem:[#allocation8 + $0x158] sm:$0xff]
    %v2152 = vld [vmem:[#allocation8 + $0x160] sm:$0xff]
    %v2153 = vld [vmem:[#allocation8 + $0x168] sm:$0xff]
    %v2154 = vld [vmem:[#allocation8 + $0x170] sm:$0xff]
    %v2155 = vld [vmem:[#allocation8 + $0x178] sm:$0xff]
    %v2156 = vld [vmem:[#allocation8 + $0x180] sm:$0xff]
    %v2157 = vld [vmem:[#allocation8 + $0x188] sm:$0xff]
    %v2158 = vld [vmem:[#allocation8 + $0x190] sm:$0xff]
    %v2159 = vld [vmem:[#allocation8 + $0x198] sm:$0xff]
    %v2160 = vld [vmem:[#allocation8 + $0x1a0] sm:$0xff]
    %v2161 = vld [vmem:[#allocation8 + $0x1a8] sm:$0xff]
    %v2162 = vld [vmem:[#allocation8 + $0x1b0] sm:$0xff]
    %v2163 = vld [vmem:[#allocation8 + $0x1b8] sm:$0xff]
    %v2164 = vld [vmem:[#allocation8 + $0x1c0] sm:$0xff]
    %v2165 = vld [vmem:[#allocation8 + $0x1c8] sm:$0xff]
    %v2166 = vld [vmem:[#allocation8 + $0x1d0] sm:$0xff]
    %v2167 = vld [vmem:[#allocation8 + $0x1d8] sm:$0xff]
    %v2168 = vld [vmem:[#allocation8 + $0x1e0] sm:$0xff]
    %v2169 = vld [vmem:[#allocation8 + $0x1e8] sm:$0xff]
    %v2170 = vld [vmem:[#allocation8 + $0x1f0] sm:$0xff]
    %v2171 = vld [vmem:[#allocation8 + $0x1f8] sm:$0xff]
    %v2172 = vld [vmem:[#allocation8 + $0x200] sm:$0xff]
    %v2173 = vld [vmem:[#allocation8 + $0x208] sm:$0xff]
    %v2174 = vld [vmem:[#allocation8 + $0x210] sm:$0xff]
    %v2175 = vld [vmem:[#allocation8 + $0x218] sm:$0xff]
    %v2176 = vld [vmem:[#allocation8 + $0x220] sm:$0xff]
    %v2177 = vld [vmem:[#allocation8 + $0x228] sm:$0xff]
    %v2178 = vld [vmem:[#allocation8 + $0x230] sm:$0xff]
    %v2179 = vld [vmem:[#allocation8 + $0x238] sm:$0xff]
    %v2180 = vld [vmem:[#allocation8 + $0x240] sm:$0xff]
    %v2181 = vld [vmem:[#allocation8 + $0x248] sm:$0xff]
    %v2182 = vld [vmem:[#allocation8 + $0x250] sm:$0xff]
    %v2183 = vld [vmem:[#allocation8 + $0x258] sm:$0xff]
    %v2184 = vld [vmem:[#allocation8 + $0x260] sm:$0xff]
    %v2185 = vld [vmem:[#allocation8 + $0x268] sm:$0xff]
    %v2186 = vld [vmem:[#allocation8 + $0x270] sm:$0xff]
    %v2187 = vld [vmem:[#allocation8 + $0x278] sm:$0xff]
    %v2188 = vld [vmem:[#allocation8 + $0x280] sm:$0xff]
    %v2189 = vld [vmem:[#allocation8 + $0x288] sm:$0xff]
    %v2190 = vld [vmem:[#allocation8 + $0x290] sm:$0xff]
    %v2191 = vld [vmem:[#allocation8 + $0x298] sm:$0xff]
    %v2192 = vld [vmem:[#allocation8 + $0x2a0] sm:$0xff]
    %v2193 = vld [vmem:[#allocation8 + $0x2a8] sm:$0xff]
    %v2194 = vld [vmem:[#allocation8 + $0x2b0] sm:$0xff]
    %v2195 = vld [vmem:[#allocation8 + $0x2b8] sm:$0xff]
    %v2196 = vld [vmem:[#allocation8 + $0x2c0] sm:$0xff]
    %v2197 = vld [vmem:[#allocation8 + $0x2c8] sm:$0xff]
    %v2198 = vld [vmem:[#allocation8 + $0x2d0] sm:$0xff]
    %v2199 = vld [vmem:[#allocation8 + $0x2d8] sm:$0xff]
    %v2200 = vld [vmem:[#allocation8 + $0x2e0] sm:$0xff]
    %v2201 = vld [vmem:[#allocation8 + $0x2e8] sm:$0xff]
    %v2202 = vld [vmem:[#allocation8 + $0x2f0] sm:$0xff]
    %v2203 = vld [vmem:[#allocation8 + $0x2f8] sm:$0xff]
    %v2204 = vld [vmem:[#allocation8 + $0x300] sm:$0xff]
    %v2205 = vld [vmem:[#allocation8 + $0x308] sm:$0xff]
    %v2206 = vld [vmem:[#allocation8 + $0x310] sm:$0xff]
    %v2207 = vld [vmem:[#allocation8 + $0x318] sm:$0xff]
    %v2208 = vld [vmem:[#allocation8 + $0x320] sm:$0xff]
    %v2209 = vld [vmem:[#allocation8 + $0x328] sm:$0xff]
    %v2210 = vld [vmem:[#allocation8 + $0x330] sm:$0xff]
    %v2211 = vld [vmem:[#allocation8 + $0x338] sm:$0xff]
    %v2212 = vld [vmem:[#allocation8 + $0x340] sm:$0xff]
    %v2213 = vld [vmem:[#allocation8 + $0x348] sm:$0xff]
    %v2214 = vld [vmem:[#allocation8 + $0x350] sm:$0xff]
    %v2215 = vld [vmem:[#allocation8 + $0x358] sm:$0xff]
    %v2216 = vld [vmem:[#allocation8 + $0x360] sm:$0xff]
    %v2217 = vld [vmem:[#allocation8 + $0x368] sm:$0xff]
    %v2218 = vld [vmem:[#allocation8 + $0x370] sm:$0xff]
    %v2219 = vld [vmem:[#allocation8 + $0x378] sm:$0xff]
    %v2220 = vld [vmem:[#allocation8 + $0x380] sm:$0xff]
    %v2221 = vld [vmem:[#allocation8 + $0x388] sm:$0xff]
    %v2222 = vld [vmem:[#allocation8 + $0x390] sm:$0xff]
    %v2223 = vld [vmem:[#allocation8 + $0x398] sm:$0xff]
    %v2224 = vld [vmem:[#allocation8 + $0x3a0] sm:$0xff]
    %v2225 = vld [vmem:[#allocation8 + $0x3a8] sm:$0xff]
    %v2226 = vld [vmem:[#allocation8 + $0x3b0] sm:$0xff]
    %v2227 = vld [vmem:[#allocation8 + $0x3b8] sm:$0xff]
    %v2228 = vld [vmem:[#allocation8 + $0x3c0] sm:$0xff]
    %v2229 = vld [vmem:[#allocation8 + $0x3c8] sm:$0xff]
    %v2230 = vld [vmem:[#allocation8 + $0x3d0] sm:$0xff]
    %v2231 = vld [vmem:[#allocation8 + $0x3d8] sm:$0xff]
    %v2232 = vld [vmem:[#allocation8 + $0x3e0] sm:$0xff]
    %v2233 = vld [vmem:[#allocation8 + $0x3e8] sm:$0xff]
    %v2234 = vld [vmem:[#allocation8 + $0x3f0] sm:$0xff]
    %v2235 = vld [vmem:[#allocation8 + $0x3f8] sm:$0xff]
    %v2236 = vld [vmem:[%s5] sm:$0xf]
    %v2238 = vlaneseq
    %v2239 = vshrl.u32 %v2238, 7
    %v2240 = vsub.s32 0, %v2239
    %v2241 = vrot.slane %v2236, %v2240
    %v2242 = vlaneseq
    %v2243 = vshrl.u32 %v2242, 7
    %v2244 = vsub.s32 1, %v2243
    %v2245 = vrot.slane %v2236, %v2244
    %v2246 = vlaneseq
    %v2247 = vshrl.u32 %v2246, 7
    %v2248 = vsub.s32 2, %v2247
    %v2249 = vrot.slane %v2236, %v2248
    %v2250 = vlaneseq
    %v2251 = vshrl.u32 %v2250, 7
    %v2252 = vsub.s32 3, %v2251
    %v2253 = vrot.slane %v2236, %v2252
    %v2386 = vunpack.c.l.b16 %v2108
    %v2387 = vunpack.c.h.b16 %v2108
    %v2388 = vunpack.c.l.b16 %v2109
    %v2389 = vunpack.c.h.b16 %v2109
    %v2390 = vunpack.c.l.b16 %v2110
    %v2391 = vunpack.c.h.b16 %v2110
    %v2392 = vunpack.c.l.b16 %v2111
    %v2393 = vunpack.c.h.b16 %v2111
    %v2394 = vunpack.c.l.b16 %v2112
    %v2395 = vunpack.c.h.b16 %v2112
    %v2396 = vunpack.c.l.b16 %v2113
    %v2397 = vunpack.c.h.b16 %v2113
    %v2398 = vunpack.c.l.b16 %v2114
    %v2399 = vunpack.c.h.b16 %v2114
    %v2400 = vunpack.c.l.b16 %v2115
    %v2401 = vunpack.c.h.b16 %v2115
    %v2402 = vunpack.c.l.b16 %v2116
    %v2403 = vunpack.c.h.b16 %v2116
    %v2404 = vunpack.c.l.b16 %v2117
    %v2405 = vunpack.c.h.b16 %v2117
    %v2406 = vunpack.c.l.b16 %v2118
    %v2407 = vunpack.c.h.b16 %v2118
    %v2408 = vunpack.c.l.b16 %v2119
    %v2409 = vunpack.c.h.b16 %v2119
    %v2410 = vunpack.c.l.b16 %v2120
    %v2411 = vunpack.c.h.b16 %v2120
    %v2412 = vunpack.c.l.b16 %v2121
    %v2413 = vunpack.c.h.b16 %v2121
    %v2414 = vunpack.c.l.b16 %v2122
    %v2415 = vunpack.c.h.b16 %v2122
    %v2416 = vunpack.c.l.b16 %v2123
    %v2417 = vunpack.c.h.b16 %v2123
    %v2418 = vunpack.c.l.b16 %v2124
    %v2419 = vunpack.c.h.b16 %v2124
    %v2420 = vunpack.c.l.b16 %v2125
    %v2421 = vunpack.c.h.b16 %v2125
    %v2422 = vunpack.c.l.b16 %v2126
    %v2423 = vunpack.c.h.b16 %v2126
    %v2424 = vunpack.c.l.b16 %v2127
    %v2425 = vunpack.c.h.b16 %v2127
    %v2426 = vunpack.c.l.b16 %v2128
    %v2427 = vunpack.c.h.b16 %v2128
    %v2428 = vunpack.c.l.b16 %v2129
    %v2429 = vunpack.c.h.b16 %v2129
    %v2430 = vunpack.c.l.b16 %v2130
    %v2431 = vunpack.c.h.b16 %v2130
    %v2432 = vunpack.c.l.b16 %v2131
    %v2433 = vunpack.c.h.b16 %v2131
    %v2434 = vunpack.c.l.b16 %v2132
    %v2435 = vunpack.c.h.b16 %v2132
    %v2436 = vunpack.c.l.b16 %v2133
    %v2437 = vunpack.c.h.b16 %v2133
    %v2438 = vunpack.c.l.b16 %v2134
    %v2439 = vunpack.c.h.b16 %v2134
    %v2440 = vunpack.c.l.b16 %v2135
    %v2441 = vunpack.c.h.b16 %v2135
    %v2442 = vunpack.c.l.b16 %v2136
    %v2443 = vunpack.c.h.b16 %v2136
    %v2444 = vunpack.c.l.b16 %v2137
    %v2445 = vunpack.c.h.b16 %v2137
    %v2446 = vunpack.c.l.b16 %v2138
    %v2447 = vunpack.c.h.b16 %v2138
    %v2448 = vunpack.c.l.b16 %v2139
    %v2449 = vunpack.c.h.b16 %v2139
    %v2450 = vunpack.c.l.b16 %v2140
    %v2451 = vunpack.c.h.b16 %v2140
    %v2452 = vunpack.c.l.b16 %v2141
    %v2453 = vunpack.c.h.b16 %v2141
    %v2454 = vunpack.c.l.b16 %v2142
    %v2455 = vunpack.c.h.b16 %v2142
    %v2456 = vunpack.c.l.b16 %v2143
    %v2457 = vunpack.c.h.b16 %v2143
    %v2458 = vunpack.c.l.b16 %v2144
    %v2459 = vunpack.c.h.b16 %v2144
    %v2460 = vunpack.c.l.b16 %v2145
    %v2461 = vunpack.c.h.b16 %v2145
    %v2462 = vunpack.c.l.b16 %v2146
    %v2463 = vunpack.c.h.b16 %v2146
    %v2464 = vunpack.c.l.b16 %v2147
    %v2465 = vunpack.c.h.b16 %v2147
    %v2466 = vunpack.c.l.b16 %v2148
    %v2467 = vunpack.c.h.b16 %v2148
    %v2468 = vunpack.c.l.b16 %v2149
    %v2469 = vunpack.c.h.b16 %v2149
    %v2470 = vunpack.c.l.b16 %v2150
    %v2471 = vunpack.c.h.b16 %v2150
    %v2472 = vunpack.c.l.b16 %v2151
    %v2473 = vunpack.c.h.b16 %v2151
    %v2474 = vunpack.c.l.b16 %v2152
    %v2475 = vunpack.c.h.b16 %v2152
    %v2476 = vunpack.c.l.b16 %v2153
    %v2477 = vunpack.c.h.b16 %v2153
    %v2478 = vunpack.c.l.b16 %v2154
    %v2479 = vunpack.c.h.b16 %v2154
    %v2480 = vunpack.c.l.b16 %v2155
    %v2481 = vunpack.c.h.b16 %v2155
    %v2482 = vunpack.c.l.b16 %v2156
    %v2483 = vunpack.c.h.b16 %v2156
    %v2484 = vunpack.c.l.b16 %v2157
    %v2485 = vunpack.c.h.b16 %v2157
    %v2486 = vunpack.c.l.b16 %v2158
    %v2487 = vunpack.c.h.b16 %v2158
    %v2488 = vunpack.c.l.b16 %v2159
    %v2489 = vunpack.c.h.b16 %v2159
    %v2490 = vunpack.c.l.b16 %v2160
    %v2491 = vunpack.c.h.b16 %v2160
    %v2492 = vunpack.c.l.b16 %v2161
    %v2493 = vunpack.c.h.b16 %v2161
    %v2494 = vunpack.c.l.b16 %v2162
    %v2495 = vunpack.c.h.b16 %v2162
    %v2496 = vunpack.c.l.b16 %v2163
    %v2497 = vunpack.c.h.b16 %v2163
    %v2498 = vunpack.c.l.b16 %v2164
    %v2499 = vunpack.c.h.b16 %v2164
    %v2500 = vunpack.c.l.b16 %v2165
    %v2501 = vunpack.c.h.b16 %v2165
    %v2502 = vunpack.c.l.b16 %v2166
    %v2503 = vunpack.c.h.b16 %v2166
    %v2504 = vunpack.c.l.b16 %v2167
    %v2505 = vunpack.c.h.b16 %v2167
    %v2506 = vunpack.c.l.b16 %v2168
    %v2507 = vunpack.c.h.b16 %v2168
    %v2508 = vunpack.c.l.b16 %v2169
    %v2509 = vunpack.c.h.b16 %v2169
    %v2510 = vunpack.c.l.b16 %v2170
    %v2511 = vunpack.c.h.b16 %v2170
    %v2512 = vunpack.c.l.b16 %v2171
    %v2513 = vunpack.c.h.b16 %v2171
    %v2514 = vunpack.c.l.b16 %v2172
    %v2515 = vunpack.c.h.b16 %v2172
    %v2516 = vunpack.c.l.b16 %v2173
    %v2517 = vunpack.c.h.b16 %v2173
    %v2518 = vunpack.c.l.b16 %v2174
    %v2519 = vunpack.c.h.b16 %v2174
    %v2520 = vunpack.c.l.b16 %v2175
    %v2521 = vunpack.c.h.b16 %v2175
    %v2522 = vunpack.c.l.b16 %v2176
    %v2523 = vunpack.c.h.b16 %v2176
    %v2524 = vunpack.c.l.b16 %v2177
    %v2525 = vunpack.c.h.b16 %v2177
    %v2526 = vunpack.c.l.b16 %v2178
    %v2527 = vunpack.c.h.b16 %v2178
    %v2528 = vunpack.c.l.b16 %v2179
    %v2529 = vunpack.c.h.b16 %v2179
    %v2530 = vunpack.c.l.b16 %v2180
    %v2531 = vunpack.c.h.b16 %v2180
    %v2532 = vunpack.c.l.b16 %v2181
    %v2533 = vunpack.c.h.b16 %v2181
    %v2534 = vunpack.c.l.b16 %v2182
    %v2535 = vunpack.c.h.b16 %v2182
    %v2536 = vunpack.c.l.b16 %v2183
    %v2537 = vunpack.c.h.b16 %v2183
    %v2538 = vunpack.c.l.b16 %v2184
    %v2539 = vunpack.c.h.b16 %v2184
    %v2540 = vunpack.c.l.b16 %v2185
    %v2541 = vunpack.c.h.b16 %v2185
    %v2542 = vunpack.c.l.b16 %v2186
    %v2543 = vunpack.c.h.b16 %v2186
    %v2544 = vunpack.c.l.b16 %v2187
    %v2545 = vunpack.c.h.b16 %v2187
    %v2546 = vunpack.c.l.b16 %v2188
    %v2547 = vunpack.c.h.b16 %v2188
    %v2548 = vunpack.c.l.b16 %v2189
    %v2549 = vunpack.c.h.b16 %v2189
    %v2550 = vunpack.c.l.b16 %v2190
    %v2551 = vunpack.c.h.b16 %v2190
    %v2552 = vunpack.c.l.b16 %v2191
    %v2553 = vunpack.c.h.b16 %v2191
    %v2554 = vunpack.c.l.b16 %v2192
    %v2555 = vunpack.c.h.b16 %v2192
    %v2556 = vunpack.c.l.b16 %v2193
    %v2557 = vunpack.c.h.b16 %v2193
    %v2558 = vunpack.c.l.b16 %v2194
    %v2559 = vunpack.c.h.b16 %v2194
    %v2560 = vunpack.c.l.b16 %v2195
    %v2561 = vunpack.c.h.b16 %v2195
    %v2562 = vunpack.c.l.b16 %v2196
    %v2563 = vunpack.c.h.b16 %v2196
    %v2564 = vunpack.c.l.b16 %v2197
    %v2565 = vunpack.c.h.b16 %v2197
    %v2566 = vunpack.c.l.b16 %v2198
    %v2567 = vunpack.c.h.b16 %v2198
    %v2568 = vunpack.c.l.b16 %v2199
    %v2569 = vunpack.c.h.b16 %v2199
    %v2570 = vunpack.c.l.b16 %v2200
    %v2571 = vunpack.c.h.b16 %v2200
    %v2572 = vunpack.c.l.b16 %v2201
    %v2573 = vunpack.c.h.b16 %v2201
    %v2574 = vunpack.c.l.b16 %v2202
    %v2575 = vunpack.c.h.b16 %v2202
    %v2576 = vunpack.c.l.b16 %v2203
    %v2577 = vunpack.c.h.b16 %v2203
    %v2578 = vunpack.c.l.b16 %v2204
    %v2579 = vunpack.c.h.b16 %v2204
    %v2580 = vunpack.c.l.b16 %v2205
    %v2581 = vunpack.c.h.b16 %v2205
    %v2582 = vunpack.c.l.b16 %v2206
    %v2583 = vunpack.c.h.b16 %v2206
    %v2584 = vunpack.c.l.b16 %v2207
    %v2585 = vunpack.c.h.b16 %v2207
    %v2586 = vunpack.c.l.b16 %v2208
    %v2587 = vunpack.c.h.b16 %v2208
    %v2588 = vunpack.c.l.b16 %v2209
    %v2589 = vunpack.c.h.b16 %v2209
    %v2590 = vunpack.c.l.b16 %v2210
    %v2591 = vunpack.c.h.b16 %v2210
    %v2592 = vunpack.c.l.b16 %v2211
    %v2593 = vunpack.c.h.b16 %v2211
    %v2594 = vunpack.c.l.b16 %v2212
    %v2595 = vunpack.c.h.b16 %v2212
    %v2596 = vunpack.c.l.b16 %v2213
    %v2597 = vunpack.c.h.b16 %v2213
    %v2598 = vunpack.c.l.b16 %v2214
    %v2599 = vunpack.c.h.b16 %v2214
    %v2600 = vunpack.c.l.b16 %v2215
    %v2601 = vunpack.c.h.b16 %v2215
    %v2602 = vunpack.c.l.b16 %v2216
    %v2603 = vunpack.c.h.b16 %v2216
    %v2604 = vunpack.c.l.b16 %v2217
    %v2605 = vunpack.c.h.b16 %v2217
    %v2606 = vunpack.c.l.b16 %v2218
    %v2607 = vunpack.c.h.b16 %v2218
    %v2608 = vunpack.c.l.b16 %v2219
    %v2609 = vunpack.c.h.b16 %v2219
    %v2610 = vunpack.c.l.b16 %v2220
    %v2611 = vunpack.c.h.b16 %v2220
    %v2612 = vunpack.c.l.b16 %v2221
    %v2613 = vunpack.c.h.b16 %v2221
    %v2614 = vunpack.c.l.b16 %v2222
    %v2615 = vunpack.c.h.b16 %v2222
    %v2616 = vunpack.c.l.b16 %v2223
    %v2617 = vunpack.c.h.b16 %v2223
    %v2618 = vunpack.c.l.b16 %v2224
    %v2619 = vunpack.c.h.b16 %v2224
    %v2620 = vunpack.c.l.b16 %v2225
    %v2621 = vunpack.c.h.b16 %v2225
    %v2622 = vunpack.c.l.b16 %v2226
    %v2623 = vunpack.c.h.b16 %v2226
    %v2624 = vunpack.c.l.b16 %v2227
    %v2625 = vunpack.c.h.b16 %v2227
    %v2626 = vunpack.c.l.b16 %v2228
    %v2627 = vunpack.c.h.b16 %v2228
    %v2628 = vunpack.c.l.b16 %v2229
    %v2629 = vunpack.c.h.b16 %v2229
    %v2630 = vunpack.c.l.b16 %v2230
    %v2631 = vunpack.c.h.b16 %v2230
    %v2632 = vunpack.c.l.b16 %v2231
    %v2633 = vunpack.c.h.b16 %v2231
    %v2634 = vunpack.c.l.b16 %v2232
    %v2635 = vunpack.c.h.b16 %v2232
    %v2636 = vunpack.c.l.b16 %v2233
    %v2637 = vunpack.c.h.b16 %v2233
    %v2638 = vunpack.c.l.b16 %v2234
    %v2639 = vunpack.c.h.b16 %v2234
    %v2640 = vunpack.c.l.b16 %v2235
    %v2641 = vunpack.c.h.b16 %v2235
    %v2642 = vpack.c.b16 %v2390, %v2386
    %v2643 = vpack.c.b16 %v2391, %v2387
    %v2644 = vpack.c.b16 %v2392, %v2388
    %v2645 = vpack.c.b16 %v2393, %v2389
    %v2646 = vpack.c.b16 %v2398, %v2394
    %v2647 = vpack.c.b16 %v2399, %v2395
    %v2648 = vpack.c.b16 %v2400, %v2396
    %v2649 = vpack.c.b16 %v2401, %v2397
    %v2650 = vpack.c.b16 %v2406, %v2402
    %v2651 = vpack.c.b16 %v2407, %v2403
    %v2652 = vpack.c.b16 %v2408, %v2404
    %v2653 = vpack.c.b16 %v2409, %v2405
    %v2654 = vpack.c.b16 %v2414, %v2410
    %v2655 = vpack.c.b16 %v2415, %v2411
    %v2656 = vpack.c.b16 %v2416, %v2412
    %v2657 = vpack.c.b16 %v2417, %v2413
    %v2658 = vpack.c.b16 %v2422, %v2418
    %v2659 = vpack.c.b16 %v2423, %v2419
    %v2660 = vpack.c.b16 %v2424, %v2420
    %v2661 = vpack.c.b16 %v2425, %v2421
    %v2662 = vpack.c.b16 %v2430, %v2426
    %v2663 = vpack.c.b16 %v2431, %v2427
    %v2664 = vpack.c.b16 %v2432, %v2428
    %v2665 = vpack.c.b16 %v2433, %v2429
    %v2666 = vpack.c.b16 %v2438, %v2434
    %v2667 = vpack.c.b16 %v2439, %v2435
    %v2668 = vpack.c.b16 %v2440, %v2436
    %v2669 = vpack.c.b16 %v2441, %v2437
    %v2670 = vpack.c.b16 %v2446, %v2442
    %v2671 = vpack.c.b16 %v2447, %v2443
    %v2672 = vpack.c.b16 %v2448, %v2444
    %v2673 = vpack.c.b16 %v2449, %v2445
    %v2674 = vpack.c.b16 %v2454, %v2450
    %v2675 = vpack.c.b16 %v2455, %v2451
    %v2676 = vpack.c.b16 %v2456, %v2452
    %v2677 = vpack.c.b16 %v2457, %v2453
    %v2678 = vpack.c.b16 %v2462, %v2458
    %v2679 = vpack.c.b16 %v2463, %v2459
    %v2680 = vpack.c.b16 %v2464, %v2460
    %v2681 = vpack.c.b16 %v2465, %v2461
    %v2682 = vpack.c.b16 %v2470, %v2466
    %v2683 = vpack.c.b16 %v2471, %v2467
    %v2684 = vpack.c.b16 %v2472, %v2468
    %v2685 = vpack.c.b16 %v2473, %v2469
    %v2686 = vpack.c.b16 %v2478, %v2474
    %v2687 = vpack.c.b16 %v2479, %v2475
    %v2688 = vpack.c.b16 %v2480, %v2476
    %v2689 = vpack.c.b16 %v2481, %v2477
    %v2690 = vpack.c.b16 %v2486, %v2482
    %v2691 = vpack.c.b16 %v2487, %v2483
    %v2692 = vpack.c.b16 %v2488, %v2484
    %v2693 = vpack.c.b16 %v2489, %v2485
    %v2694 = vpack.c.b16 %v2494, %v2490
    %v2695 = vpack.c.b16 %v2495, %v2491
    %v2696 = vpack.c.b16 %v2496, %v2492
    %v2697 = vpack.c.b16 %v2497, %v2493
    %v2698 = vpack.c.b16 %v2502, %v2498
    %v2699 = vpack.c.b16 %v2503, %v2499
    %v2700 = vpack.c.b16 %v2504, %v2500
    %v2701 = vpack.c.b16 %v2505, %v2501
    %v2702 = vpack.c.b16 %v2510, %v2506
    %v2703 = vpack.c.b16 %v2511, %v2507
    %v2704 = vpack.c.b16 %v2512, %v2508
    %v2705 = vpack.c.b16 %v2513, %v2509
    %v2706 = vpack.c.b16 %v2518, %v2514
    %v2707 = vpack.c.b16 %v2519, %v2515
    %v2708 = vpack.c.b16 %v2520, %v2516
    %v2709 = vpack.c.b16 %v2521, %v2517
    %v2710 = vpack.c.b16 %v2526, %v2522
    %v2711 = vpack.c.b16 %v2527, %v2523
    %v2712 = vpack.c.b16 %v2528, %v2524
    %v2713 = vpack.c.b16 %v2529, %v2525
    %v2714 = vpack.c.b16 %v2534, %v2530
    %v2715 = vpack.c.b16 %v2535, %v2531
    %v2716 = vpack.c.b16 %v2536, %v2532
    %v2717 = vpack.c.b16 %v2537, %v2533
    %v2718 = vpack.c.b16 %v2542, %v2538
    %v2719 = vpack.c.b16 %v2543, %v2539
    %v2720 = vpack.c.b16 %v2544, %v2540
    %v2721 = vpack.c.b16 %v2545, %v2541
    %v2722 = vpack.c.b16 %v2550, %v2546
    %v2723 = vpack.c.b16 %v2551, %v2547
    %v2724 = vpack.c.b16 %v2552, %v2548
    %v2725 = vpack.c.b16 %v2553, %v2549
    %v2726 = vpack.c.b16 %v2558, %v2554
    %v2727 = vpack.c.b16 %v2559, %v2555
    %v2728 = vpack.c.b16 %v2560, %v2556
    %v2729 = vpack.c.b16 %v2561, %v2557
    %v2730 = vpack.c.b16 %v2566, %v2562
    %v2731 = vpack.c.b16 %v2567, %v2563
    %v2732 = vpack.c.b16 %v2568, %v2564
    %v2733 = vpack.c.b16 %v2569, %v2565
    %v2734 = vpack.c.b16 %v2574, %v2570
    %v2735 = vpack.c.b16 %v2575, %v2571
    %v2736 = vpack.c.b16 %v2576, %v2572
    %v2737 = vpack.c.b16 %v2577, %v2573
    %v2738 = vpack.c.b16 %v2582, %v2578
    %v2739 = vpack.c.b16 %v2583, %v2579
    %v2740 = vpack.c.b16 %v2584, %v2580
    %v2741 = vpack.c.b16 %v2585, %v2581
    %v2742 = vpack.c.b16 %v2590, %v2586
    %v2743 = vpack.c.b16 %v2591, %v2587
    %v2744 = vpack.c.b16 %v2592, %v2588
    %v2745 = vpack.c.b16 %v2593, %v2589
    %v2746 = vpack.c.b16 %v2598, %v2594
    %v2747 = vpack.c.b16 %v2599, %v2595
    %v2748 = vpack.c.b16 %v2600, %v2596
    %v2749 = vpack.c.b16 %v2601, %v2597
    %v2750 = vpack.c.b16 %v2606, %v2602
    %v2751 = vpack.c.b16 %v2607, %v2603
    %v2752 = vpack.c.b16 %v2608, %v2604
    %v2753 = vpack.c.b16 %v2609, %v2605
    %v2754 = vpack.c.b16 %v2614, %v2610
    %v2755 = vpack.c.b16 %v2615, %v2611
    %v2756 = vpack.c.b16 %v2616, %v2612
    %v2757 = vpack.c.b16 %v2617, %v2613
    %v2758 = vpack.c.b16 %v2622, %v2618
    %v2759 = vpack.c.b16 %v2623, %v2619
    %v2760 = vpack.c.b16 %v2624, %v2620
    %v2761 = vpack.c.b16 %v2625, %v2621
    %v2762 = vpack.c.b16 %v2630, %v2626
    %v2763 = vpack.c.b16 %v2631, %v2627
    %v2764 = vpack.c.b16 %v2632, %v2628
    %v2765 = vpack.c.b16 %v2633, %v2629
    %v2766 = vpack.c.b16 %v2638, %v2634
    %v2767 = vpack.c.b16 %v2639, %v2635
    %v2768 = vpack.c.b16 %v2640, %v2636
    %v2769 = vpack.c.b16 %v2641, %v2637
    %2898 = vmatprep.subr.bf16.mxu0 %v2643
    %2899 = vmatpush1.bf16.msra.mxu0 %v2642
    %2900 = vmatprep.subr.bf16.mxu0 %v2647
    %2901 = vmatpush1.bf16.msra.mxu0 %v2646
    %2902 = vmatprep.subr.bf16.mxu0 %v2651
    %2903 = vmatpush1.bf16.msra.mxu0 %v2650
    %2904 = vmatprep.subr.bf16.mxu0 %v2655
    %2905 = vmatpush1.bf16.msra.mxu0 %v2654
    %2906 = vmatprep.subr.bf16.mxu0 %v2659
    %2907 = vmatpush1.bf16.msra.mxu0 %v2658
    %2908 = vmatprep.subr.bf16.mxu0 %v2663
    %2909 = vmatpush1.bf16.msra.mxu0 %v2662
    %2910 = vmatprep.subr.bf16.mxu0 %v2667
    %2911 = vmatpush1.bf16.msra.mxu0 %v2666
    %2912 = vmatprep.subr.bf16.mxu0 %v2671
    %2913 = vmatpush1.bf16.msra.mxu0 %v2670
    %2914 = vmatprep.subr.bf16.mxu0 %v2675
    %2915 = vmatpush1.bf16.msra.mxu0 %v2674
    %2916 = vmatprep.subr.bf16.mxu0 %v2679
    %2917 = vmatpush1.bf16.msra.mxu0 %v2678
    %2918 = vmatprep.subr.bf16.mxu0 %v2683
    %2919 = vmatpush1.bf16.msra.mxu0 %v2682
    %2920 = vmatprep.subr.bf16.mxu0 %v2687
    %2921 = vmatpush1.bf16.msra.mxu0 %v2686
    %2922 = vmatprep.subr.bf16.mxu0 %v2691
    %2923 = vmatpush1.bf16.msra.mxu0 %v2690
    %2924 = vmatprep.subr.bf16.mxu0 %v2695
    %2925 = vmatpush1.bf16.msra.mxu0 %v2694
    %2926 = vmatprep.subr.bf16.mxu0 %v2699
    %2927 = vmatpush1.bf16.msra.mxu0 %v2698
    %2928 = vmatprep.subr.bf16.mxu0 %v2703
    %2929 = vmatpush1.bf16.msra.mxu0 %v2702
    %2930 = vmatprep.mubr.bf16.mxu0 %v2105
    %2931 = vmatmul.mubr.bf16.gmra.mrb[0].mxu0 %v2104
    %v2932 = vpop.f32.mrb[0].mxu0
    %v2933 = vadd.f32 %v2241, %v2932
    %v2934 = vpop.f32.mrb[0].mxu0
    %v2935 = vadd.f32 %v2245, %v2934
    %v2936 = vpop.f32.mrb[0].mxu0
    %v2937 = vpop.f32.mrb[0].mxu0
    %2938 = vdwg.mxu0
    %2939 = vmatprep.subr.bf16.mxu0 %v2707
    %2940 = vmatpush1.bf16.msra.mxu0 %v2706
    %2941 = vmatprep.subr.bf16.mxu0 %v2711
    %2942 = vmatpush1.bf16.msra.mxu0 %v2710
    %2943 = vmatprep.subr.bf16.mxu0 %v2715
    %2944 = vmatpush1.bf16.msra.mxu0 %v2714
    %2945 = vmatprep.subr.bf16.mxu0 %v2719
    %2946 = vmatpush1.bf16.msra.mxu0 %v2718
    %2947 = vmatprep.subr.bf16.mxu0 %v2723
    %2948 = vmatpush1.bf16.msra.mxu0 %v2722
    %2949 = vmatprep.subr.bf16.mxu0 %v2727
    %2950 = vmatpush1.bf16.msra.mxu0 %v2726
    %2951 = vmatprep.subr.bf16.mxu0 %v2731
    %2952 = vmatpush1.bf16.msra.mxu0 %v2730
    %2953 = vmatprep.subr.bf16.mxu0 %v2735
    %2954 = vmatpush1.bf16.msra.mxu0 %v2734
    %2955 = vmatprep.subr.bf16.mxu0 %v2739
    %2956 = vmatpush1.bf16.msra.mxu0 %v2738
    %2957 = vmatprep.subr.bf16.mxu0 %v2743
    %2958 = vmatpush1.bf16.msra.mxu0 %v2742
    %2959 = vmatprep.subr.bf16.mxu0 %v2747
    %2960 = vmatpush1.bf16.msra.mxu0 %v2746
    %2961 = vmatprep.subr.bf16.mxu0 %v2751
    %2962 = vmatpush1.bf16.msra.mxu0 %v2750
    %2963 = vmatprep.subr.bf16.mxu0 %v2755
    %2964 = vmatpush1.bf16.msra.mxu0 %v2754
    %2965 = vmatprep.subr.bf16.mxu0 %v2759
    %2966 = vmatpush1.bf16.msra.mxu0 %v2758
    %2967 = vmatprep.subr.bf16.mxu0 %v2763
    %2968 = vmatpush1.bf16.msra.mxu0 %v2762
    %2969 = vmatprep.subr.bf16.mxu0 %v2767
    %2970 = vmatpush1.bf16.msra.mxu0 %v2766
    %2971 = vmatprep.mubr.bf16.mxu0 %v2107
    %2972 = vmatmul.mubr.bf16.gmra.mrb[0].mxu0 %v2106
    %v2973 = vpop.f32.mrb[0].mxu0
    %v2974 = vadd.f32 %v2933, %v2973
    %v2975 = vpop.f32.mrb[0].mxu0
    %v2976 = vadd.f32 %v2935, %v2975
    %v2977 = vpop.f32.mrb[0].mxu0
    %v2978 = vpop.f32.mrb[0].mxu0
    %2979 = vdwg.mxu0
    %2980 = vmatprep.subr.bf16.mxu0 %v2645
    %2981 = vmatpush1.bf16.msra.mxu0 %v2644
    %2982 = vmatprep.subr.bf16.mxu0 %v2649
    %2983 = vmatpush1.bf16.msra.mxu0 %v2648
    %2984 = vmatprep.subr.bf16.mxu0 %v2653
    %2985 = vmatpush1.bf16.msra.mxu0 %v2652
    %2986 = vmatprep.subr.bf16.mxu0 %v2657
    %2987 = vmatpush1.bf16.msra.mxu0 %v2656
    %2988 = vmatprep.subr.bf16.mxu0 %v2661
    %2989 = vmatpush1.bf16.msra.mxu0 %v2660
    %2990 = vmatprep.subr.bf16.mxu0 %v2665
    %2991 = vmatpush1.bf16.msra.mxu0 %v2664
    %2992 = vmatprep.subr.bf16.mxu0 %v2669
    %2993 = vmatpush1.bf16.msra.mxu0 %v2668
    %2994 = vmatprep.subr.bf16.mxu0 %v2673
    %2995 = vmatpush1.bf16.msra.mxu0 %v2672
    %2996 = vmatprep.subr.bf16.mxu0 %v2677
    %2997 = vmatpush1.bf16.msra.mxu0 %v2676
    %2998 = vmatprep.subr.bf16.mxu0 %v2681
    %2999 = vmatpush1.bf16.msra.mxu0 %v2680
    %3000 = vmatprep.subr.bf16.mxu0 %v2685
    %3001 = vmatpush1.bf16.msra.mxu0 %v2684
    %3002 = vmatprep.subr.bf16.mxu0 %v2689
    %3003 = vmatpush1.bf16.msra.mxu0 %v2688
    %3004 = vmatprep.subr.bf16.mxu0 %v2693
    %3005 = vmatpush1.bf16.msra.mxu0 %v2692
    %3006 = vmatprep.subr.bf16.mxu0 %v2697
    %3007 = vmatpush1.bf16.msra.mxu0 %v2696
    %3008 = vmatprep.subr.bf16.mxu0 %v2701
    %3009 = vmatpush1.bf16.msra.mxu0 %v2700
    %3010 = vmatprep.subr.bf16.mxu0 %v2705
    %3011 = vmatpush1.bf16.msra.mxu0 %v2704
    %3012 = vmatprep.mubr.bf16.mxu0 %v2105
    %3013 = vmatmul.mubr.bf16.gmra.mrb[0].mxu0 %v2104
    %v3014 = vpop.f32.mrb[0].mxu0
    %v3015 = vadd.f32 %v2249, %v3014
    %v3016 = vpop.f32.mrb[0].mxu0
    %v3017 = vadd.f32 %v2253, %v3016
    %v3018 = vpop.f32.mrb[0].mxu0
    %v3019 = vpop.f32.mrb[0].mxu0
    %3020 = vdwg.mxu0
    %3021 = vmatprep.subr.bf16.mxu0 %v2709
    %3022 = vmatpush1.bf16.msra.mxu0 %v2708
    %3023 = vmatprep.subr.bf16.mxu0 %v2713
    %3024 = vmatpush1.bf16.msra.mxu0 %v2712
    %3025 = vmatprep.subr.bf16.mxu0 %v2717
    %3026 = vmatpush1.bf16.msra.mxu0 %v2716
    %3027 = vmatprep.subr.bf16.mxu0 %v2721
    %3028 = vmatpush1.bf16.msra.mxu0 %v2720
    %3029 = vmatprep.subr.bf16.mxu0 %v2725
    %3030 = vmatpush1.bf16.msra.mxu0 %v2724
    %3031 = vmatprep.subr.bf16.mxu0 %v2729
    %3032 = vmatpush1.bf16.msra.mxu0 %v2728
    %3033 = vmatprep.subr.bf16.mxu0 %v2733
    %3034 = vmatpush1.bf16.msra.mxu0 %v2732
    %3035 = vmatprep.subr.bf16.mxu0 %v2737
    %3036 = vmatpush1.bf16.msra.mxu0 %v2736
    %3037 = vmatprep.subr.bf16.mxu0 %v2741
    %3038 = vmatpush1.bf16.msra.mxu0 %v2740
    %3039 = vmatprep.subr.bf16.mxu0 %v2745
    %3040 = vmatpush1.bf16.msra.mxu0 %v2744
    %3041 = vmatprep.subr.bf16.mxu0 %v2749
    %3042 = vmatpush1.bf16.msra.mxu0 %v2748
    %3043 = vmatprep.subr.bf16.mxu0 %v2753
    %3044 = vmatpush1.bf16.msra.mxu0 %v2752
    %3045 = vmatprep.subr.bf16.mxu0 %v2757
    %3046 = vmatpush1.bf16.msra.mxu0 %v2756
    %3047 = vmatprep.subr.bf16.mxu0 %v2761
    %3048 = vmatpush1.bf16.msra.mxu0 %v2760
    %3049 = vmatprep.subr.bf16.mxu0 %v2765
    %3050 = vmatpush1.bf16.msra.mxu0 %v2764
    %3051 = vmatprep.subr.bf16.mxu0 %v2769
    %3052 = vmatpush1.bf16.msra.mxu0 %v2768
    %3053 = vmatprep.mubr.bf16.mxu0 %v2107
    %3054 = vmatmul.mubr.bf16.gmra.mrb[0].mxu0 %v2106
    %v3055 = vpop.f32.mrb[0].mxu0
    %v3056 = vadd.f32 %v3015, %v3055
    %v3057 = vpop.f32.mrb[0].mxu0
    %v3058 = vadd.f32 %v3017, %v3057
    %v3059 = vpop.f32.mrb[0].mxu0
    %v3060 = vpop.f32.mrb[0].mxu0
    %3061 = vdwg.mxu0
    %v3062 = vmax.f32 %v2974, 0.0
    %v3063 = vmax.f32 %v2976, 0.0
    %v3064 = vmax.f32 %v3056, 0.0
    %v3065 = vmax.f32 %v3058, 0.0
    %v3066 = vpack.c.bf16 %v3062, %v3062
    %v3067 = vpack.c.bf16 %v3063, %v3063
    %v3068 = vpack.c.bf16 %v3064, %v3064
    %v3069 = vpack.c.bf16 %v3065, %v3065
    %v3070 = vld [vmem:[#allocation10] sm:$0xff]
    %v3071 = vld [vmem:[#allocation10 + $0x8] sm:$0xff]
    %v3072 = vld [vmem:[#allocation10 + $0x10] sm:$0xff]
    %v3073 = vld [vmem:[#allocation10 + $0x18] sm:$0xff]
    %v3074 = vld [vmem:[#allocation10 + $0x20] sm:$0xff]
    %v3075 = vld [vmem:[#allocation10 + $0x28] sm:$0xff]
    %v3076 = vld [vmem:[#allocation10 + $0x30] sm:$0xff]
    %v3077 = vld [vmem:[#allocation10 + $0x38] sm:$0xff]
    %v3078 = vld [vmem:[#allocation10 + $0x40] sm:$0xff]
    %v3079 = vld [vmem:[#allocation10 + $0x48] sm:$0xff]
    %v3080 = vld [vmem:[#allocation10 + $0x50] sm:$0xff]
    %v3081 = vld [vmem:[#allocation10 + $0x58] sm:$0xff]
    %v3082 = vld [vmem:[#allocation10 + $0x60] sm:$0xff]
    %v3083 = vld [vmem:[#allocation10 + $0x68] sm:$0xff]
    %v3084 = vld [vmem:[#allocation10 + $0x70] sm:$0xff]
    %v3085 = vld [vmem:[#allocation10 + $0x78] sm:$0xff]
    %v3086 = vld [vmem:[#allocation10 + $0x80] sm:$0xff]
    %v3087 = vld [vmem:[#allocation10 + $0x88] sm:$0xff]
    %v3088 = vld [vmem:[#allocation10 + $0x90] sm:$0xff]
    %v3089 = vld [vmem:[#allocation10 + $0x98] sm:$0xff]
    %v3090 = vld [vmem:[#allocation10 + $0xa0] sm:$0xff]
    %v3091 = vld [vmem:[#allocation10 + $0xa8] sm:$0xff]
    %v3092 = vld [vmem:[#allocation10 + $0xb0] sm:$0xff]
    %v3093 = vld [vmem:[#allocation10 + $0xb8] sm:$0xff]
    %v3094 = vld [vmem:[#allocation10 + $0xc0] sm:$0xff]
    %v3095 = vld [vmem:[#allocation10 + $0xc8] sm:$0xff]
    %v3096 = vld [vmem:[#allocation10 + $0xd0] sm:$0xff]
    %v3097 = vld [vmem:[#allocation10 + $0xd8] sm:$0xff]
    %v3098 = vld [vmem:[#allocation10 + $0xe0] sm:$0xff]
    %v3099 = vld [vmem:[#allocation10 + $0xe8] sm:$0xff]
    %v3100 = vld [vmem:[#allocation10 + $0xf0] sm:$0xff]
    %v3101 = vld [vmem:[#allocation10 + $0xf8] sm:$0xff]
    %v3102 = vld [vmem:[#allocation10 + $0x100] sm:$0xff]
    %v3103 = vld [vmem:[#allocation10 + $0x108] sm:$0xff]
    %v3104 = vld [vmem:[#allocation10 + $0x110] sm:$0xff]
    %v3105 = vld [vmem:[#allocation10 + $0x118] sm:$0xff]
    %v3106 = vld [vmem:[#allocation10 + $0x120] sm:$0xff]
    %v3107 = vld [vmem:[#allocation10 + $0x128] sm:$0xff]
    %v3108 = vld [vmem:[#allocation10 + $0x130] sm:$0xff]
    %v3109 = vld [vmem:[#allocation10 + $0x138] sm:$0xff]
    %v3110 = vld [vmem:[#allocation10 + $0x140] sm:$0xff]
    %v3111 = vld [vmem:[#allocation10 + $0x148] sm:$0xff]
    %v3112 = vld [vmem:[#allocation10 + $0x150] sm:$0xff]
    %v3113 = vld [vmem:[#allocation10 + $0x158] sm:$0xff]
    %v3114 = vld [vmem:[#allocation10 + $0x160] sm:$0xff]
    %v3115 = vld [vmem:[#allocation10 + $0x168] sm:$0xff]
    %v3116 = vld [vmem:[#allocation10 + $0x170] sm:$0xff]
    %v3117 = vld [vmem:[#allocation10 + $0x178] sm:$0xff]
    %v3118 = vld [vmem:[#allocation10 + $0x180] sm:$0xff]
    %v3119 = vld [vmem:[#allocation10 + $0x188] sm:$0xff]
    %v3120 = vld [vmem:[#allocation10 + $0x190] sm:$0xff]
    %v3121 = vld [vmem:[#allocation10 + $0x198] sm:$0xff]
    %v3122 = vld [vmem:[#allocation10 + $0x1a0] sm:$0xff]
    %v3123 = vld [vmem:[#allocation10 + $0x1a8] sm:$0xff]
    %v3124 = vld [vmem:[#allocation10 + $0x1b0] sm:$0xff]
    %v3125 = vld [vmem:[#allocation10 + $0x1b8] sm:$0xff]
    %v3126 = vld [vmem:[#allocation10 + $0x1c0] sm:$0xff]
    %v3127 = vld [vmem:[#allocation10 + $0x1c8] sm:$0xff]
    %v3128 = vld [vmem:[#allocation10 + $0x1d0] sm:$0xff]
    %v3129 = vld [vmem:[#allocation10 + $0x1d8] sm:$0xff]
    %v3130 = vld [vmem:[#allocation10 + $0x1e0] sm:$0xff]
    %v3131 = vld [vmem:[#allocation10 + $0x1e8] sm:$0xff]
    %v3132 = vld [vmem:[#allocation10 + $0x1f0] sm:$0xff]
    %v3133 = vld [vmem:[#allocation10 + $0x1f8] sm:$0xff]
    %v3134 = vld [vmem:[#allocation10 + $0x200] sm:$0xff]
    %v3135 = vld [vmem:[#allocation10 + $0x208] sm:$0xff]
    %v3136 = vld [vmem:[#allocation10 + $0x210] sm:$0xff]
    %v3137 = vld [vmem:[#allocation10 + $0x218] sm:$0xff]
    %v3138 = vld [vmem:[#allocation10 + $0x220] sm:$0xff]
    %v3139 = vld [vmem:[#allocation10 + $0x228] sm:$0xff]
    %v3140 = vld [vmem:[#allocation10 + $0x230] sm:$0xff]
    %v3141 = vld [vmem:[#allocation10 + $0x238] sm:$0xff]
    %v3142 = vld [vmem:[#allocation10 + $0x240] sm:$0xff]
    %v3143 = vld [vmem:[#allocation10 + $0x248] sm:$0xff]
    %v3144 = vld [vmem:[#allocation10 + $0x250] sm:$0xff]
    %v3145 = vld [vmem:[#allocation10 + $0x258] sm:$0xff]
    %v3146 = vld [vmem:[#allocation10 + $0x260] sm:$0xff]
    %v3147 = vld [vmem:[#allocation10 + $0x268] sm:$0xff]
    %v3148 = vld [vmem:[#allocation10 + $0x270] sm:$0xff]
    %v3149 = vld [vmem:[#allocation10 + $0x278] sm:$0xff]
    %v3150 = vld [vmem:[#allocation10 + $0x280] sm:$0xff]
    %v3151 = vld [vmem:[#allocation10 + $0x288] sm:$0xff]
    %v3152 = vld [vmem:[#allocation10 + $0x290] sm:$0xff]
    %v3153 = vld [vmem:[#allocation10 + $0x298] sm:$0xff]
    %v3154 = vld [vmem:[#allocation10 + $0x2a0] sm:$0xff]
    %v3155 = vld [vmem:[#allocation10 + $0x2a8] sm:$0xff]
    %v3156 = vld [vmem:[#allocation10 + $0x2b0] sm:$0xff]
    %v3157 = vld [vmem:[#allocation10 + $0x2b8] sm:$0xff]
    %v3158 = vld [vmem:[#allocation10 + $0x2c0] sm:$0xff]
    %v3159 = vld [vmem:[#allocation10 + $0x2c8] sm:$0xff]
    %v3160 = vld [vmem:[#allocation10 + $0x2d0] sm:$0xff]
    %v3161 = vld [vmem:[#allocation10 + $0x2d8] sm:$0xff]
    %v3162 = vld [vmem:[#allocation10 + $0x2e0] sm:$0xff]
    %v3163 = vld [vmem:[#allocation10 + $0x2e8] sm:$0xff]
    %v3164 = vld [vmem:[#allocation10 + $0x2f0] sm:$0xff]
    %v3165 = vld [vmem:[#allocation10 + $0x2f8] sm:$0xff]
    %v3166 = vld [vmem:[#allocation10 + $0x300] sm:$0xff]
    %v3167 = vld [vmem:[#allocation10 + $0x308] sm:$0xff]
    %v3168 = vld [vmem:[#allocation10 + $0x310] sm:$0xff]
    %v3169 = vld [vmem:[#allocation10 + $0x318] sm:$0xff]
    %v3170 = vld [vmem:[#allocation10 + $0x320] sm:$0xff]
    %v3171 = vld [vmem:[#allocation10 + $0x328] sm:$0xff]
    %v3172 = vld [vmem:[#allocation10 + $0x330] sm:$0xff]
    %v3173 = vld [vmem:[#allocation10 + $0x338] sm:$0xff]
    %v3174 = vld [vmem:[#allocation10 + $0x340] sm:$0xff]
    %v3175 = vld [vmem:[#allocation10 + $0x348] sm:$0xff]
    %v3176 = vld [vmem:[#allocation10 + $0x350] sm:$0xff]
    %v3177 = vld [vmem:[#allocation10 + $0x358] sm:$0xff]
    %v3178 = vld [vmem:[#allocation10 + $0x360] sm:$0xff]
    %v3179 = vld [vmem:[#allocation10 + $0x368] sm:$0xff]
    %v3180 = vld [vmem:[#allocation10 + $0x370] sm:$0xff]
    %v3181 = vld [vmem:[#allocation10 + $0x378] sm:$0xff]
    %v3182 = vld [vmem:[#allocation10 + $0x380] sm:$0xff]
    %v3183 = vld [vmem:[#allocation10 + $0x388] sm:$0xff]
    %v3184 = vld [vmem:[#allocation10 + $0x390] sm:$0xff]
    %v3185 = vld [vmem:[#allocation10 + $0x398] sm:$0xff]
    %v3186 = vld [vmem:[#allocation10 + $0x3a0] sm:$0xff]
    %v3187 = vld [vmem:[#allocation10 + $0x3a8] sm:$0xff]
    %v3188 = vld [vmem:[#allocation10 + $0x3b0] sm:$0xff]
    %v3189 = vld [vmem:[#allocation10 + $0x3b8] sm:$0xff]
    %v3190 = vld [vmem:[#allocation10 + $0x3c0] sm:$0xff]
    %v3191 = vld [vmem:[#allocation10 + $0x3c8] sm:$0xff]
    %v3192 = vld [vmem:[#allocation10 + $0x3d0] sm:$0xff]
    %v3193 = vld [vmem:[#allocation10 + $0x3d8] sm:$0xff]
    %v3194 = vld [vmem:[#allocation10 + $0x3e0] sm:$0xff]
    %v3195 = vld [vmem:[#allocation10 + $0x3e8] sm:$0xff]
    %v3196 = vld [vmem:[#allocation10 + $0x3f0] sm:$0xff]
    %v3197 = vld [vmem:[#allocation10 + $0x3f8] sm:$0xff]
    %v3198 = vld [vmem:[%s7] sm:$0xf]
    %v3200 = vlaneseq
    %v3201 = vshrl.u32 %v3200, 7
    %v3202 = vsub.s32 0, %v3201
    %v3203 = vrot.slane %v3198, %v3202
    %v3204 = vlaneseq
    %v3205 = vshrl.u32 %v3204, 7
    %v3206 = vsub.s32 1, %v3205
    %v3207 = vrot.slane %v3198, %v3206
    %v3208 = vlaneseq
    %v3209 = vshrl.u32 %v3208, 7
    %v3210 = vsub.s32 2, %v3209
    %v3211 = vrot.slane %v3198, %v3210
    %v3212 = vlaneseq
    %v3213 = vshrl.u32 %v3212, 7
    %v3214 = vsub.s32 3, %v3213
    %v3215 = vrot.slane %v3198, %v3214
    %v3348 = vunpack.c.l.b16 %v3070
    %v3349 = vunpack.c.h.b16 %v3070
    %v3350 = vunpack.c.l.b16 %v3071
    %v3351 = vunpack.c.h.b16 %v3071
    %v3352 = vunpack.c.l.b16 %v3072
    %v3353 = vunpack.c.h.b16 %v3072
    %v3354 = vunpack.c.l.b16 %v3073
    %v3355 = vunpack.c.h.b16 %v3073
    %v3356 = vunpack.c.l.b16 %v3074
    %v3357 = vunpack.c.h.b16 %v3074
    %v3358 = vunpack.c.l.b16 %v3075
    %v3359 = vunpack.c.h.b16 %v3075
    %v3360 = vunpack.c.l.b16 %v3076
    %v3361 = vunpack.c.h.b16 %v3076
    %v3362 = vunpack.c.l.b16 %v3077
    %v3363 = vunpack.c.h.b16 %v3077
    %v3364 = vunpack.c.l.b16 %v3078
    %v3365 = vunpack.c.h.b16 %v3078
    %v3366 = vunpack.c.l.b16 %v3079
    %v3367 = vunpack.c.h.b16 %v3079
    %v3368 = vunpack.c.l.b16 %v3080
    %v3369 = vunpack.c.h.b16 %v3080
    %v3370 = vunpack.c.l.b16 %v3081
    %v3371 = vunpack.c.h.b16 %v3081
    %v3372 = vunpack.c.l.b16 %v3082
    %v3373 = vunpack.c.h.b16 %v3082
    %v3374 = vunpack.c.l.b16 %v3083
    %v3375 = vunpack.c.h.b16 %v3083
    %v3376 = vunpack.c.l.b16 %v3084
    %v3377 = vunpack.c.h.b16 %v3084
    %v3378 = vunpack.c.l.b16 %v3085
    %v3379 = vunpack.c.h.b16 %v3085
    %v3380 = vunpack.c.l.b16 %v3086
    %v3381 = vunpack.c.h.b16 %v3086
    %v3382 = vunpack.c.l.b16 %v3087
    %v3383 = vunpack.c.h.b16 %v3087
    %v3384 = vunpack.c.l.b16 %v3088
    %v3385 = vunpack.c.h.b16 %v3088
    %v3386 = vunpack.c.l.b16 %v3089
    %v3387 = vunpack.c.h.b16 %v3089
    %v3388 = vunpack.c.l.b16 %v3090
    %v3389 = vunpack.c.h.b16 %v3090
    %v3390 = vunpack.c.l.b16 %v3091
    %v3391 = vunpack.c.h.b16 %v3091
    %v3392 = vunpack.c.l.b16 %v3092
    %v3393 = vunpack.c.h.b16 %v3092
    %v3394 = vunpack.c.l.b16 %v3093
    %v3395 = vunpack.c.h.b16 %v3093
    %v3396 = vunpack.c.l.b16 %v3094
    %v3397 = vunpack.c.h.b16 %v3094
    %v3398 = vunpack.c.l.b16 %v3095
    %v3399 = vunpack.c.h.b16 %v3095
    %v3400 = vunpack.c.l.b16 %v3096
    %v3401 = vunpack.c.h.b16 %v3096
    %v3402 = vunpack.c.l.b16 %v3097
    %v3403 = vunpack.c.h.b16 %v3097
    %v3404 = vunpack.c.l.b16 %v3098
    %v3405 = vunpack.c.h.b16 %v3098
    %v3406 = vunpack.c.l.b16 %v3099
    %v3407 = vunpack.c.h.b16 %v3099
    %v3408 = vunpack.c.l.b16 %v3100
    %v3409 = vunpack.c.h.b16 %v3100
    %v3410 = vunpack.c.l.b16 %v3101
    %v3411 = vunpack.c.h.b16 %v3101
    %v3412 = vunpack.c.l.b16 %v3102
    %v3413 = vunpack.c.h.b16 %v3102
    %v3414 = vunpack.c.l.b16 %v3103
    %v3415 = vunpack.c.h.b16 %v3103
    %v3416 = vunpack.c.l.b16 %v3104
    %v3417 = vunpack.c.h.b16 %v3104
    %v3418 = vunpack.c.l.b16 %v3105
    %v3419 = vunpack.c.h.b16 %v3105
    %v3420 = vunpack.c.l.b16 %v3106
    %v3421 = vunpack.c.h.b16 %v3106
    %v3422 = vunpack.c.l.b16 %v3107
    %v3423 = vunpack.c.h.b16 %v3107
    %v3424 = vunpack.c.l.b16 %v3108
    %v3425 = vunpack.c.h.b16 %v3108
    %v3426 = vunpack.c.l.b16 %v3109
    %v3427 = vunpack.c.h.b16 %v3109
    %v3428 = vunpack.c.l.b16 %v3110
    %v3429 = vunpack.c.h.b16 %v3110
    %v3430 = vunpack.c.l.b16 %v3111
    %v3431 = vunpack.c.h.b16 %v3111
    %v3432 = vunpack.c.l.b16 %v3112
    %v3433 = vunpack.c.h.b16 %v3112
    %v3434 = vunpack.c.l.b16 %v3113
    %v3435 = vunpack.c.h.b16 %v3113
    %v3436 = vunpack.c.l.b16 %v3114
    %v3437 = vunpack.c.h.b16 %v3114
    %v3438 = vunpack.c.l.b16 %v3115
    %v3439 = vunpack.c.h.b16 %v3115
    %v3440 = vunpack.c.l.b16 %v3116
    %v3441 = vunpack.c.h.b16 %v3116
    %v3442 = vunpack.c.l.b16 %v3117
    %v3443 = vunpack.c.h.b16 %v3117
    %v3444 = vunpack.c.l.b16 %v3118
    %v3445 = vunpack.c.h.b16 %v3118
    %v3446 = vunpack.c.l.b16 %v3119
    %v3447 = vunpack.c.h.b16 %v3119
    %v3448 = vunpack.c.l.b16 %v3120
    %v3449 = vunpack.c.h.b16 %v3120
    %v3450 = vunpack.c.l.b16 %v3121
    %v3451 = vunpack.c.h.b16 %v3121
    %v3452 = vunpack.c.l.b16 %v3122
    %v3453 = vunpack.c.h.b16 %v3122
    %v3454 = vunpack.c.l.b16 %v3123
    %v3455 = vunpack.c.h.b16 %v3123
    %v3456 = vunpack.c.l.b16 %v3124
    %v3457 = vunpack.c.h.b16 %v3124
    %v3458 = vunpack.c.l.b16 %v3125
    %v3459 = vunpack.c.h.b16 %v3125
    %v3460 = vunpack.c.l.b16 %v3126
    %v3461 = vunpack.c.h.b16 %v3126
    %v3462 = vunpack.c.l.b16 %v3127
    %v3463 = vunpack.c.h.b16 %v3127
    %v3464 = vunpack.c.l.b16 %v3128
    %v3465 = vunpack.c.h.b16 %v3128
    %v3466 = vunpack.c.l.b16 %v3129
    %v3467 = vunpack.c.h.b16 %v3129
    %v3468 = vunpack.c.l.b16 %v3130
    %v3469 = vunpack.c.h.b16 %v3130
    %v3470 = vunpack.c.l.b16 %v3131
    %v3471 = vunpack.c.h.b16 %v3131
    %v3472 = vunpack.c.l.b16 %v3132
    %v3473 = vunpack.c.h.b16 %v3132
    %v3474 = vunpack.c.l.b16 %v3133
    %v3475 = vunpack.c.h.b16 %v3133
    %v3476 = vunpack.c.l.b16 %v3134
    %v3477 = vunpack.c.h.b16 %v3134
    %v3478 = vunpack.c.l.b16 %v3135
    %v3479 = vunpack.c.h.b16 %v3135
    %v3480 = vunpack.c.l.b16 %v3136
    %v3481 = vunpack.c.h.b16 %v3136
    %v3482 = vunpack.c.l.b16 %v3137
    %v3483 = vunpack.c.h.b16 %v3137
    %v3484 = vunpack.c.l.b16 %v3138
    %v3485 = vunpack.c.h.b16 %v3138
    %v3486 = vunpack.c.l.b16 %v3139
    %v3487 = vunpack.c.h.b16 %v3139
    %v3488 = vunpack.c.l.b16 %v3140
    %v3489 = vunpack.c.h.b16 %v3140
    %v3490 = vunpack.c.l.b16 %v3141
    %v3491 = vunpack.c.h.b16 %v3141
    %v3492 = vunpack.c.l.b16 %v3142
    %v3493 = vunpack.c.h.b16 %v3142
    %v3494 = vunpack.c.l.b16 %v3143
    %v3495 = vunpack.c.h.b16 %v3143
    %v3496 = vunpack.c.l.b16 %v3144
    %v3497 = vunpack.c.h.b16 %v3144
    %v3498 = vunpack.c.l.b16 %v3145
    %v3499 = vunpack.c.h.b16 %v3145
    %v3500 = vunpack.c.l.b16 %v3146
    %v3501 = vunpack.c.h.b16 %v3146
    %v3502 = vunpack.c.l.b16 %v3147
    %v3503 = vunpack.c.h.b16 %v3147
    %v3504 = vunpack.c.l.b16 %v3148
    %v3505 = vunpack.c.h.b16 %v3148
    %v3506 = vunpack.c.l.b16 %v3149
    %v3507 = vunpack.c.h.b16 %v3149
    %v3508 = vunpack.c.l.b16 %v3150
    %v3509 = vunpack.c.h.b16 %v3150
    %v3510 = vunpack.c.l.b16 %v3151
    %v3511 = vunpack.c.h.b16 %v3151
    %v3512 = vunpack.c.l.b16 %v3152
    %v3513 = vunpack.c.h.b16 %v3152
    %v3514 = vunpack.c.l.b16 %v3153
    %v3515 = vunpack.c.h.b16 %v3153
    %v3516 = vunpack.c.l.b16 %v3154
    %v3517 = vunpack.c.h.b16 %v3154
    %v3518 = vunpack.c.l.b16 %v3155
    %v3519 = vunpack.c.h.b16 %v3155
    %v3520 = vunpack.c.l.b16 %v3156
    %v3521 = vunpack.c.h.b16 %v3156
    %v3522 = vunpack.c.l.b16 %v3157
    %v3523 = vunpack.c.h.b16 %v3157
    %v3524 = vunpack.c.l.b16 %v3158
    %v3525 = vunpack.c.h.b16 %v3158
    %v3526 = vunpack.c.l.b16 %v3159
    %v3527 = vunpack.c.h.b16 %v3159
    %v3528 = vunpack.c.l.b16 %v3160
    %v3529 = vunpack.c.h.b16 %v3160
    %v3530 = vunpack.c.l.b16 %v3161
    %v3531 = vunpack.c.h.b16 %v3161
    %v3532 = vunpack.c.l.b16 %v3162
    %v3533 = vunpack.c.h.b16 %v3162
    %v3534 = vunpack.c.l.b16 %v3163
    %v3535 = vunpack.c.h.b16 %v3163
    %v3536 = vunpack.c.l.b16 %v3164
    %v3537 = vunpack.c.h.b16 %v3164
    %v3538 = vunpack.c.l.b16 %v3165
    %v3539 = vunpack.c.h.b16 %v3165
    %v3540 = vunpack.c.l.b16 %v3166
    %v3541 = vunpack.c.h.b16 %v3166
    %v3542 = vunpack.c.l.b16 %v3167
    %v3543 = vunpack.c.h.b16 %v3167
    %v3544 = vunpack.c.l.b16 %v3168
    %v3545 = vunpack.c.h.b16 %v3168
    %v3546 = vunpack.c.l.b16 %v3169
    %v3547 = vunpack.c.h.b16 %v3169
    %v3548 = vunpack.c.l.b16 %v3170
    %v3549 = vunpack.c.h.b16 %v3170
    %v3550 = vunpack.c.l.b16 %v3171
    %v3551 = vunpack.c.h.b16 %v3171
    %v3552 = vunpack.c.l.b16 %v3172
    %v3553 = vunpack.c.h.b16 %v3172
    %v3554 = vunpack.c.l.b16 %v3173
    %v3555 = vunpack.c.h.b16 %v3173
    %v3556 = vunpack.c.l.b16 %v3174
    %v3557 = vunpack.c.h.b16 %v3174
    %v3558 = vunpack.c.l.b16 %v3175
    %v3559 = vunpack.c.h.b16 %v3175
    %v3560 = vunpack.c.l.b16 %v3176
    %v3561 = vunpack.c.h.b16 %v3176
    %v3562 = vunpack.c.l.b16 %v3177
    %v3563 = vunpack.c.h.b16 %v3177
    %v3564 = vunpack.c.l.b16 %v3178
    %v3565 = vunpack.c.h.b16 %v3178
    %v3566 = vunpack.c.l.b16 %v3179
    %v3567 = vunpack.c.h.b16 %v3179
    %v3568 = vunpack.c.l.b16 %v3180
    %v3569 = vunpack.c.h.b16 %v3180
    %v3570 = vunpack.c.l.b16 %v3181
    %v3571 = vunpack.c.h.b16 %v3181
    %v3572 = vunpack.c.l.b16 %v3182
    %v3573 = vunpack.c.h.b16 %v3182
    %v3574 = vunpack.c.l.b16 %v3183
    %v3575 = vunpack.c.h.b16 %v3183
    %v3576 = vunpack.c.l.b16 %v3184
    %v3577 = vunpack.c.h.b16 %v3184
    %v3578 = vunpack.c.l.b16 %v3185
    %v3579 = vunpack.c.h.b16 %v3185
    %v3580 = vunpack.c.l.b16 %v3186
    %v3581 = vunpack.c.h.b16 %v3186
    %v3582 = vunpack.c.l.b16 %v3187
    %v3583 = vunpack.c.h.b16 %v3187
    %v3584 = vunpack.c.l.b16 %v3188
    %v3585 = vunpack.c.h.b16 %v3188
    %v3586 = vunpack.c.l.b16 %v3189
    %v3587 = vunpack.c.h.b16 %v3189
    %v3588 = vunpack.c.l.b16 %v3190
    %v3589 = vunpack.c.h.b16 %v3190
    %v3590 = vunpack.c.l.b16 %v3191
    %v3591 = vunpack.c.h.b16 %v3191
    %v3592 = vunpack.c.l.b16 %v3192
    %v3593 = vunpack.c.h.b16 %v3192
    %v3594 = vunpack.c.l.b16 %v3193
    %v3595 = vunpack.c.h.b16 %v3193
    %v3596 = vunpack.c.l.b16 %v3194
    %v3597 = vunpack.c.h.b16 %v3194
    %v3598 = vunpack.c.l.b16 %v3195
    %v3599 = vunpack.c.h.b16 %v3195
    %v3600 = vunpack.c.l.b16 %v3196
    %v3601 = vunpack.c.h.b16 %v3196
    %v3602 = vunpack.c.l.b16 %v3197
    %v3603 = vunpack.c.h.b16 %v3197
    %v3604 = vpack.c.b16 %v3352, %v3348
    %v3605 = vpack.c.b16 %v3353, %v3349
    %v3606 = vpack.c.b16 %v3354, %v3350
    %v3607 = vpack.c.b16 %v3355, %v3351
    %v3608 = vpack.c.b16 %v3360, %v3356
    %v3609 = vpack.c.b16 %v3361, %v3357
    %v3610 = vpack.c.b16 %v3362, %v3358
    %v3611 = vpack.c.b16 %v3363, %v3359
    %v3612 = vpack.c.b16 %v3368, %v3364
    %v3613 = vpack.c.b16 %v3369, %v3365
    %v3614 = vpack.c.b16 %v3370, %v3366
    %v3615 = vpack.c.b16 %v3371, %v3367
    %v3616 = vpack.c.b16 %v3376, %v3372
    %v3617 = vpack.c.b16 %v3377, %v3373
    %v3618 = vpack.c.b16 %v3378, %v3374
    %v3619 = vpack.c.b16 %v3379, %v3375
    %v3620 = vpack.c.b16 %v3384, %v3380
    %v3621 = vpack.c.b16 %v3385, %v3381
    %v3622 = vpack.c.b16 %v3386, %v3382
    %v3623 = vpack.c.b16 %v3387, %v3383
    %v3624 = vpack.c.b16 %v3392, %v3388
    %v3625 = vpack.c.b16 %v3393, %v3389
    %v3626 = vpack.c.b16 %v3394, %v3390
    %v3627 = vpack.c.b16 %v3395, %v3391
    %v3628 = vpack.c.b16 %v3400, %v3396
    %v3629 = vpack.c.b16 %v3401, %v3397
    %v3630 = vpack.c.b16 %v3402, %v3398
    %v3631 = vpack.c.b16 %v3403, %v3399
    %v3632 = vpack.c.b16 %v3408, %v3404
    %v3633 = vpack.c.b16 %v3409, %v3405
    %v3634 = vpack.c.b16 %v3410, %v3406
    %v3635 = vpack.c.b16 %v3411, %v3407
    %v3636 = vpack.c.b16 %v3416, %v3412
    %v3637 = vpack.c.b16 %v3417, %v3413
    %v3638 = vpack.c.b16 %v3418, %v3414
    %v3639 = vpack.c.b16 %v3419, %v3415
    %v3640 = vpack.c.b16 %v3424, %v3420
    %v3641 = vpack.c.b16 %v3425, %v3421
    %v3642 = vpack.c.b16 %v3426, %v3422
    %v3643 = vpack.c.b16 %v3427, %v3423
    %v3644 = vpack.c.b16 %v3432, %v3428
    %v3645 = vpack.c.b16 %v3433, %v3429
    %v3646 = vpack.c.b16 %v3434, %v3430
    %v3647 = vpack.c.b16 %v3435, %v3431
    %v3648 = vpack.c.b16 %v3440, %v3436
    %v3649 = vpack.c.b16 %v3441, %v3437
    %v3650 = vpack.c.b16 %v3442, %v3438
    %v3651 = vpack.c.b16 %v3443, %v3439
    %v3652 = vpack.c.b16 %v3448, %v3444
    %v3653 = vpack.c.b16 %v3449, %v3445
    %v3654 = vpack.c.b16 %v3450, %v3446
    %v3655 = vpack.c.b16 %v3451, %v3447
    %v3656 = vpack.c.b16 %v3456, %v3452
    %v3657 = vpack.c.b16 %v3457, %v3453
    %v3658 = vpack.c.b16 %v3458, %v3454
    %v3659 = vpack.c.b16 %v3459, %v3455
    %v3660 = vpack.c.b16 %v3464, %v3460
    %v3661 = vpack.c.b16 %v3465, %v3461
    %v3662 = vpack.c.b16 %v3466, %v3462
    %v3663 = vpack.c.b16 %v3467, %v3463
    %v3664 = vpack.c.b16 %v3472, %v3468
    %v3665 = vpack.c.b16 %v3473, %v3469
    %v3666 = vpack.c.b16 %v3474, %v3470
    %v3667 = vpack.c.b16 %v3475, %v3471
    %v3668 = vpack.c.b16 %v3480, %v3476
    %v3669 = vpack.c.b16 %v3481, %v3477
    %v3670 = vpack.c.b16 %v3482, %v3478
    %v3671 = vpack.c.b16 %v3483, %v3479
    %v3672 = vpack.c.b16 %v3488, %v3484
    %v3673 = vpack.c.b16 %v3489, %v3485
    %v3674 = vpack.c.b16 %v3490, %v3486
    %v3675 = vpack.c.b16 %v3491, %v3487
    %v3676 = vpack.c.b16 %v3496, %v3492
    %v3677 = vpack.c.b16 %v3497, %v3493
    %v3678 = vpack.c.b16 %v3498, %v3494
    %v3679 = vpack.c.b16 %v3499, %v3495
    %v3680 = vpack.c.b16 %v3504, %v3500
    %v3681 = vpack.c.b16 %v3505, %v3501
    %v3682 = vpack.c.b16 %v3506, %v3502
    %v3683 = vpack.c.b16 %v3507, %v3503
    %v3684 = vpack.c.b16 %v3512, %v3508
    %v3685 = vpack.c.b16 %v3513, %v3509
    %v3686 = vpack.c.b16 %v3514, %v3510
    %v3687 = vpack.c.b16 %v3515, %v3511
    %v3688 = vpack.c.b16 %v3520, %v3516
    %v3689 = vpack.c.b16 %v3521, %v3517
    %v3690 = vpack.c.b16 %v3522, %v3518
    %v3691 = vpack.c.b16 %v3523, %v3519
    %v3692 = vpack.c.b16 %v3528, %v3524
    %v3693 = vpack.c.b16 %v3529, %v3525
    %v3694 = vpack.c.b16 %v3530, %v3526
    %v3695 = vpack.c.b16 %v3531, %v3527
    %v3696 = vpack.c.b16 %v3536, %v3532
    %v3697 = vpack.c.b16 %v3537, %v3533
    %v3698 = vpack.c.b16 %v3538, %v3534
    %v3699 = vpack.c.b16 %v3539, %v3535
    %v3700 = vpack.c.b16 %v3544, %v3540
    %v3701 = vpack.c.b16 %v3545, %v3541
    %v3702 = vpack.c.b16 %v3546, %v3542
    %v3703 = vpack.c.b16 %v3547, %v3543
    %v3704 = vpack.c.b16 %v3552, %v3548
    %v3705 = vpack.c.b16 %v3553, %v3549
    %v3706 = vpack.c.b16 %v3554, %v3550
    %v3707 = vpack.c.b16 %v3555, %v3551
    %v3708 = vpack.c.b16 %v3560, %v3556
    %v3709 = vpack.c.b16 %v3561, %v3557
    %v3710 = vpack.c.b16 %v3562, %v3558
    %v3711 = vpack.c.b16 %v3563, %v3559
    %v3712 = vpack.c.b16 %v3568, %v3564
    %v3713 = vpack.c.b16 %v3569, %v3565
    %v3714 = vpack.c.b16 %v3570, %v3566
    %v3715 = vpack.c.b16 %v3571, %v3567
    %v3716 = vpack.c.b16 %v3576, %v3572
    %v3717 = vpack.c.b16 %v3577, %v3573
    %v3718 = vpack.c.b16 %v3578, %v3574
    %v3719 = vpack.c.b16 %v3579, %v3575
    %v3720 = vpack.c.b16 %v3584, %v3580
    %v3721 = vpack.c.b16 %v3585, %v3581
    %v3722 = vpack.c.b16 %v3586, %v3582
    %v3723 = vpack.c.b16 %v3587, %v3583
    %v3724 = vpack.c.b16 %v3592, %v3588
    %v3725 = vpack.c.b16 %v3593, %v3589
    %v3726 = vpack.c.b16 %v3594, %v3590
    %v3727 = vpack.c.b16 %v3595, %v3591
    %v3728 = vpack.c.b16 %v3600, %v3596
    %v3729 = vpack.c.b16 %v3601, %v3597
    %v3730 = vpack.c.b16 %v3602, %v3598
    %v3731 = vpack.c.b16 %v3603, %v3599
    %3860 = vmatprep.subr.bf16.mxu0 %v3605
    %3861 = vmatpush1.bf16.msra.mxu0 %v3604
    %3862 = vmatprep.subr.bf16.mxu0 %v3609
    %3863 = vmatpush1.bf16.msra.mxu0 %v3608
    %3864 = vmatprep.subr.bf16.mxu0 %v3613
    %3865 = vmatpush1.bf16.msra.mxu0 %v3612
    %3866 = vmatprep.subr.bf16.mxu0 %v3617
    %3867 = vmatpush1.bf16.msra.mxu0 %v3616
    %3868 = vmatprep.subr.bf16.mxu0 %v3621
    %3869 = vmatpush1.bf16.msra.mxu0 %v3620
    %3870 = vmatprep.subr.bf16.mxu0 %v3625
    %3871 = vmatpush1.bf16.msra.mxu0 %v3624
    %3872 = vmatprep.subr.bf16.mxu0 %v3629
    %3873 = vmatpush1.bf16.msra.mxu0 %v3628
    %3874 = vmatprep.subr.bf16.mxu0 %v3633
    %3875 = vmatpush1.bf16.msra.mxu0 %v3632
    %3876 = vmatprep.subr.bf16.mxu0 %v3637
    %3877 = vmatpush1.bf16.msra.mxu0 %v3636
    %3878 = vmatprep.subr.bf16.mxu0 %v3641
    %3879 = vmatpush1.bf16.msra.mxu0 %v3640
    %3880 = vmatprep.subr.bf16.mxu0 %v3645
    %3881 = vmatpush1.bf16.msra.mxu0 %v3644
    %3882 = vmatprep.subr.bf16.mxu0 %v3649
    %3883 = vmatpush1.bf16.msra.mxu0 %v3648
    %3884 = vmatprep.subr.bf16.mxu0 %v3653
    %3885 = vmatpush1.bf16.msra.mxu0 %v3652
    %3886 = vmatprep.subr.bf16.mxu0 %v3657
    %3887 = vmatpush1.bf16.msra.mxu0 %v3656
    %3888 = vmatprep.subr.bf16.mxu0 %v3661
    %3889 = vmatpush1.bf16.msra.mxu0 %v3660
    %3890 = vmatprep.subr.bf16.mxu0 %v3665
    %3891 = vmatpush1.bf16.msra.mxu0 %v3664
    %3892 = vmatprep.mubr.bf16.mxu0 %v3067
    %3893 = vmatmul.mubr.bf16.gmra.mrb[0].mxu0 %v3066
    %v3894 = vpop.f32.mrb[0].mxu0
    %v3895 = vadd.f32 %v3203, %v3894
    %v3896 = vpop.f32.mrb[0].mxu0
    %v3897 = vadd.f32 %v3207, %v3896
    %v3898 = vpop.f32.mrb[0].mxu0
    %v3899 = vpop.f32.mrb[0].mxu0
    %3900 = vdwg.mxu0
    %3901 = vmatprep.subr.bf16.mxu0 %v3669
    %3902 = vmatpush1.bf16.msra.mxu0 %v3668
    %3903 = vmatprep.subr.bf16.mxu0 %v3673
    %3904 = vmatpush1.bf16.msra.mxu0 %v3672
    %3905 = vmatprep.subr.bf16.mxu0 %v3677
    %3906 = vmatpush1.bf16.msra.mxu0 %v3676
    %3907 = vmatprep.subr.bf16.mxu0 %v3681
    %3908 = vmatpush1.bf16.msra.mxu0 %v3680
    %3909 = vmatprep.subr.bf16.mxu0 %v3685
    %3910 = vmatpush1.bf16.msra.mxu0 %v3684
    %3911 = vmatprep.subr.bf16.mxu0 %v3689
    %3912 = vmatpush1.bf16.msra.mxu0 %v3688
    %3913 = vmatprep.subr.bf16.mxu0 %v3693
    %3914 = vmatpush1.bf16.msra.mxu0 %v3692
    %3915 = vmatprep.subr.bf16.mxu0 %v3697
    %3916 = vmatpush1.bf16.msra.mxu0 %v3696
    %3917 = vmatprep.subr.bf16.mxu0 %v3701
    %3918 = vmatpush1.bf16.msra.mxu0 %v3700
    %3919 = vmatprep.subr.bf16.mxu0 %v3705
    %3920 = vmatpush1.bf16.msra.mxu0 %v3704
    %3921 = vmatprep.subr.bf16.mxu0 %v3709
    %3922 = vmatpush1.bf16.msra.mxu0 %v3708
    %3923 = vmatprep.subr.bf16.mxu0 %v3713
    %3924 = vmatpush1.bf16.msra.mxu0 %v3712
    %3925 = vmatprep.subr.bf16.mxu0 %v3717
    %3926 = vmatpush1.bf16.msra.mxu0 %v3716
    %3927 = vmatprep.subr.bf16.mxu0 %v3721
    %3928 = vmatpush1.bf16.msra.mxu0 %v3720
    %3929 = vmatprep.subr.bf16.mxu0 %v3725
    %3930 = vmatpush1.bf16.msra.mxu0 %v3724
    %3931 = vmatprep.subr.bf16.mxu0 %v3729
    %3932 = vmatpush1.bf16.msra.mxu0 %v3728
    %3933 = vmatprep.mubr.bf16.mxu0 %v3069
    %3934 = vmatmul.mubr.bf16.gmra.mrb[0].mxu0 %v3068
    %v3935 = vpop.f32.mrb[0].mxu0
    %v3936 = vadd.f32 %v3895, %v3935
    %v3937 = vpop.f32.mrb[0].mxu0
    %v3938 = vadd.f32 %v3897, %v3937
    %v3939 = vpop.f32.mrb[0].mxu0
    %v3940 = vpop.f32.mrb[0].mxu0
    %3941 = vdwg.mxu0
    %3942 = vmatprep.subr.bf16.mxu0 %v3607
    %3943 = vmatpush1.bf16.msra.mxu0 %v3606
    %3944 = vmatprep.subr.bf16.mxu0 %v3611
    %3945 = vmatpush1.bf16.msra.mxu0 %v3610
    %3946 = vmatprep.subr.bf16.mxu0 %v3615
    %3947 = vmatpush1.bf16.msra.mxu0 %v3614
    %3948 = vmatprep.subr.bf16.mxu0 %v3619
    %3949 = vmatpush1.bf16.msra.mxu0 %v3618
    %3950 = vmatprep.subr.bf16.mxu0 %v3623
    %3951 = vmatpush1.bf16.msra.mxu0 %v3622
    %3952 = vmatprep.subr.bf16.mxu0 %v3627
    %3953 = vmatpush1.bf16.msra.mxu0 %v3626
    %3954 = vmatprep.subr.bf16.mxu0 %v3631
    %3955 = vmatpush1.bf16.msra.mxu0 %v3630
    %3956 = vmatprep.subr.bf16.mxu0 %v3635
    %3957 = vmatpush1.bf16.msra.mxu0 %v3634
    %3958 = vmatprep.subr.bf16.mxu0 %v3639
    %3959 = vmatpush1.bf16.msra.mxu0 %v3638
    %3960 = vmatprep.subr.bf16.mxu0 %v3643
    %3961 = vmatpush1.bf16.msra.mxu0 %v3642
    %3962 = vmatprep.subr.bf16.mxu0 %v3647
    %3963 = vmatpush1.bf16.msra.mxu0 %v3646
    %3964 = vmatprep.subr.bf16.mxu0 %v3651
    %3965 = vmatpush1.bf16.msra.mxu0 %v3650
    %3966 = vmatprep.subr.bf16.mxu0 %v3655
    %3967 = vmatpush1.bf16.msra.mxu0 %v3654
    %3968 = vmatprep.subr.bf16.mxu0 %v3659
    %3969 = vmatpush1.bf16.msra.mxu0 %v3658
    %3970 = vmatprep.subr.bf16.mxu0 %v3663
    %3971 = vmatpush1.bf16.msra.mxu0 %v3662
    %3972 = vmatprep.subr.bf16.mxu0 %v3667
    %3973 = vmatpush1.bf16.msra.mxu0 %v3666
    %3974 = vmatprep.mubr.bf16.mxu0 %v3067
    %3975 = vmatmul.mubr.bf16.gmra.mrb[0].mxu0 %v3066
    %v3976 = vpop.f32.mrb[0].mxu0
    %v3977 = vadd.f32 %v3211, %v3976
    %v3978 = vpop.f32.mrb[0].mxu0
    %v3979 = vadd.f32 %v3215, %v3978
    %v3980 = vpop.f32.mrb[0].mxu0
    %v3981 = vpop.f32.mrb[0].mxu0
    %3982 = vdwg.mxu0
    %3983 = vmatprep.subr.bf16.mxu0 %v3671
    %3984 = vmatpush1.bf16.msra.mxu0 %v3670
    %3985 = vmatprep.subr.bf16.mxu0 %v3675
    %3986 = vmatpush1.bf16.msra.mxu0 %v3674
    %3987 = vmatprep.subr.bf16.mxu0 %v3679
    %3988 = vmatpush1.bf16.msra.mxu0 %v3678
    %3989 = vmatprep.subr.bf16.mxu0 %v3683
    %3990 = vmatpush1.bf16.msra.mxu0 %v3682
    %3991 = vmatprep.subr.bf16.mxu0 %v3687
    %3992 = vmatpush1.bf16.msra.mxu0 %v3686
    %3993 = vmatprep.subr.bf16.mxu0 %v3691
    %3994 = vmatpush1.bf16.msra.mxu0 %v3690
    %3995 = vmatprep.subr.bf16.mxu0 %v3695
    %3996 = vmatpush1.bf16.msra.mxu0 %v3694
    %3997 = vmatprep.subr.bf16.mxu0 %v3699
    %3998 = vmatpush1.bf16.msra.mxu0 %v3698
    %3999 = vmatprep.subr.bf16.mxu0 %v3703
    %4000 = vmatpush1.bf16.msra.mxu0 %v3702
    %4001 = vmatprep.subr.bf16.mxu0 %v3707
    %4002 = vmatpush1.bf16.msra.mxu0 %v3706
    %4003 = vmatprep.subr.bf16.mxu0 %v3711
    %4004 = vmatpush1.bf16.msra.mxu0 %v3710
    %4005 = vmatprep.subr.bf16.mxu0 %v3715
    %4006 = vmatpush1.bf16.msra.mxu0 %v3714
    %4007 = vmatprep.subr.bf16.mxu0 %v3719
    %4008 = vmatpush1.bf16.msra.mxu0 %v3718
    %4009 = vmatprep.subr.bf16.mxu0 %v3723
    %4010 = vmatpush1.bf16.msra.mxu0 %v3722
    %4011 = vmatprep.subr.bf16.mxu0 %v3727
    %4012 = vmatpush1.bf16.msra.mxu0 %v3726
    %4013 = vmatprep.subr.bf16.mxu0 %v3731
    %4014 = vmatpush1.bf16.msra.mxu0 %v3730
    %4015 = vmatprep.mubr.bf16.mxu0 %v3069
    %4016 = vmatmul.mubr.bf16.gmra.mrb[0].mxu0 %v3068
    %v4017 = vpop.f32.mrb[0].mxu0
    %v4018 = vadd.f32 %v3977, %v4017
    %v4019 = vpop.f32.mrb[0].mxu0
    %v4020 = vadd.f32 %v3979, %v4019
    %v4021 = vpop.f32.mrb[0].mxu0
    %v4022 = vpop.f32.mrb[0].mxu0
    %4023 = vdwg.mxu0
    %v4024 = vxor.u32 %v3936, 2147483648
    %v4025 = vxor.u32 %v3938, 2147483648
    %v4026 = vxor.u32 %v4018, 2147483648
    %v4027 = vxor.u32 %v4020, 2147483648
    %v4028 = vmul.f32 %v4024, 1.442695
    %v4029 = vpow.pop %v4028
    %v4030 = vmul.f32 %v4025, 1.442695
    %v4031 = vpow.pop %v4030
    %v4032 = vmul.f32 %v4026, 1.442695
    %v4033 = vpow.pop %v4032
    %v4034 = vmul.f32 %v4027, 1.442695
    %v4035 = vpow.pop %v4034
    %v4036 = vadd.f32 %v4029, 1.0
    %v4037 = vadd.f32 %v4031, 1.0
    %v4038 = vadd.f32 %v4033, 1.0
    %v4039 = vadd.f32 %v4035, 1.0
    %v4040 = vrcp.pop %v4036
    %v4041 = vmul.f32 1.0, %v4040
    %v4042 = vrcp.pop %v4037
    %v4043 = vmul.f32 1.0, %v4042
    %v4044 = vrcp.pop %v4038
    %v4045 = vmul.f32 1.0, %v4044
    %v4046 = vrcp.pop %v4039
    %v4047 = vmul.f32 1.0, %v4046
    %v4052 = vcombine.low %v4041, %v4043
    %v4053 = vcombine.low %v4045, %v4047
    %v4055 = vunpack.c.l.s4 1983009808
    %v4056 = vunpack.c.0.s8 %v4055
    %v4057 = vlaneseq
    %v4058 = vshrl.u32 %v4057, 7
    %v4059 = vsub.s32 %v4056, %v4058
    %v4060 = vrot.slane %v4052, %v4059
    %v4062 = vunpack.c.l.s4 1983009808
    %v4063 = vunpack.c.0.s8 %v4062
    %v4064 = vlaneseq
    %v4065 = vshrl.u32 %v4064, 7
    %v4066 = vsub.s32 %v4063, %v4065
    %v4067 = vrot.slane %v4053, %v4066
    %v4068 = vcombine.low %v4060, %v4067
    %v4070 = vmul.f32 %v2081, %v4068
    %v4072 = vcombine.high %v4070, %v4070
    %v4074 = vunpack.c.l.s4 1983009808
    %v4075 = vunpack.c.0.s8 %v4074
    %v4076 = vlaneseq
    %v4077 = vshrl.u32 %v4076, 7
    %v4078 = vsub.s32 %v4075, %v4077
    %v4079 = vrot.slane %v4070, %v4078
    %v4081 = vunpack.c.l.s4 1983009808
    %v4082 = vunpack.c.0.s8 %v4081
    %v4083 = vlaneseq
    %v4084 = vshrl.u32 %v4083, 7
    %v4085 = vsub.s32 %v4082, %v4084
    %v4086 = vrot.slane %v4072, %v4085
    %v4087 = vcombine.high %v4079, %v4079
    %v4088 = vcombine.high %v4086, %v4086
    %v4093 = vpack.c.bf16 %v4079, %v4079
    %v4094 = vpack.c.bf16 %v4087, %v4087
    %v4095 = vpack.c.bf16 %v4086, %v4086
    %v4096 = vpack.c.bf16 %v4088, %v4088
    %v4097 = vld [vmem:[#allocation11] sm:$0xf]
    %v4098 = vld [vmem:[#allocation11 + $0x4] sm:$0xf]
    %v4099 = vld [vmem:[#allocation11 + $0x8] sm:$0xf]
    %v4100 = vld [vmem:[#allocation11 + $0xc] sm:$0xf]
    %v4101 = vld [vmem:[#allocation11 + $0x10] sm:$0xf]
    %v4102 = vld [vmem:[#allocation11 + $0x14] sm:$0xf]
    %v4103 = vld [vmem:[#allocation11 + $0x18] sm:$0xf]
    %v4104 = vld [vmem:[#allocation11 + $0x1c] sm:$0xf]
    %v4105 = vld [vmem:[#allocation11 + $0x20] sm:$0xf]
    %v4106 = vld [vmem:[#allocation11 + $0x24] sm:$0xf]
    %v4107 = vld [vmem:[#allocation11 + $0x28] sm:$0xf]
    %v4108 = vld [vmem:[#allocation11 + $0x2c] sm:$0xf]
    %v4109 = vld [vmem:[#allocation11 + $0x30] sm:$0xf]
    %v4110 = vld [vmem:[#allocation11 + $0x34] sm:$0xf]
    %v4111 = vld [vmem:[#allocation11 + $0x38] sm:$0xf]
    %v4112 = vld [vmem:[#allocation11 + $0x3c] sm:$0xf]
    %v4113 = vld [vmem:[#allocation11 + $0x40] sm:$0xf]
    %v4114 = vld [vmem:[#allocation11 + $0x44] sm:$0xf]
    %v4115 = vld [vmem:[#allocation11 + $0x48] sm:$0xf]
    %v4116 = vld [vmem:[#allocation11 + $0x4c] sm:$0xf]
    %v4117 = vld [vmem:[#allocation11 + $0x50] sm:$0xf]
    %v4118 = vld [vmem:[#allocation11 + $0x54] sm:$0xf]
    %v4119 = vld [vmem:[#allocation11 + $0x58] sm:$0xf]
    %v4120 = vld [vmem:[#allocation11 + $0x5c] sm:$0xf]
    %v4121 = vld [vmem:[#allocation11 + $0x60] sm:$0xf]
    %v4122 = vld [vmem:[#allocation11 + $0x64] sm:$0xf]
    %v4123 = vld [vmem:[#allocation11 + $0x68] sm:$0xf]
    %v4124 = vld [vmem:[#allocation11 + $0x6c] sm:$0xf]
    %v4125 = vld [vmem:[#allocation11 + $0x70] sm:$0xf]
    %v4126 = vld [vmem:[#allocation11 + $0x74] sm:$0xf]
    %v4127 = vld [vmem:[#allocation11 + $0x78] sm:$0xf]
    %v4128 = vld [vmem:[#allocation11 + $0x7c] sm:$0xf]
    %v4129 = vld [vmem:[#allocation11 + $0x80] sm:$0xf]
    %v4130 = vld [vmem:[#allocation11 + $0x84] sm:$0xf]
    %v4131 = vld [vmem:[#allocation11 + $0x88] sm:$0xf]
    %v4132 = vld [vmem:[#allocation11 + $0x8c] sm:$0xf]
    %v4133 = vld [vmem:[#allocation11 + $0x90] sm:$0xf]
    %v4134 = vld [vmem:[#allocation11 + $0x94] sm:$0xf]
    %v4135 = vld [vmem:[#allocation11 + $0x98] sm:$0xf]
    %v4136 = vld [vmem:[#allocation11 + $0x9c] sm:$0xf]
    %v4137 = vld [vmem:[#allocation11 + $0xa0] sm:$0xf]
    %v4138 = vld [vmem:[#allocation11 + $0xa4] sm:$0xf]
    %v4139 = vld [vmem:[#allocation11 + $0xa8] sm:$0xf]
    %v4140 = vld [vmem:[#allocation11 + $0xac] sm:$0xf]
    %v4141 = vld [vmem:[#allocation11 + $0xb0] sm:$0xf]
    %v4142 = vld [vmem:[#allocation11 + $0xb4] sm:$0xf]
    %v4143 = vld [vmem:[#allocation11 + $0xb8] sm:$0xf]
    %v4144 = vld [vmem:[#allocation11 + $0xbc] sm:$0xf]
    %v4145 = vld [vmem:[#allocation11 + $0xc0] sm:$0xf]
    %v4146 = vld [vmem:[#allocation11 + $0xc4] sm:$0xf]
    %v4147 = vld [vmem:[#allocation11 + $0xc8] sm:$0xf]
    %v4148 = vld [vmem:[#allocation11 + $0xcc] sm:$0xf]
    %v4149 = vld [vmem:[#allocation11 + $0xd0] sm:$0xf]
    %v4150 = vld [vmem:[#allocation11 + $0xd4] sm:$0xf]
    %v4151 = vld [vmem:[#allocation11 + $0xd8] sm:$0xf]
    %v4152 = vld [vmem:[#allocation11 + $0xdc] sm:$0xf]
    %v4153 = vld [vmem:[#allocation11 + $0xe0] sm:$0xf]
    %v4154 = vld [vmem:[#allocation11 + $0xe4] sm:$0xf]
    %v4155 = vld [vmem:[#allocation11 + $0xe8] sm:$0xf]
    %v4156 = vld [vmem:[#allocation11 + $0xec] sm:$0xf]
    %v4157 = vld [vmem:[#allocation11 + $0xf0] sm:$0xf]
    %v4158 = vld [vmem:[#allocation11 + $0xf4] sm:$0xf]
    %v4159 = vld [vmem:[#allocation11 + $0xf8] sm:$0xf]
    %v4160 = vld [vmem:[#allocation11 + $0xfc] sm:$0xf]
    %v4161 = vld [vmem:[%s9] sm:$0x1]
    %v4163 = vlaneseq
    %v4164 = vshrl.u32 %v4163, 7
    %v4165 = vsub.s32 0, %v4164
    %v4166 = vrot.slane %v4161, %v4165
    %v4232 = vunpack.c.l.b16 %v4097
    %v4233 = vunpack.c.l.b16 %v4098
    %v4234 = vunpack.c.l.b16 %v4099
    %v4235 = vunpack.c.l.b16 %v4100
    %v4236 = vunpack.c.l.b16 %v4101
    %v4237 = vunpack.c.l.b16 %v4102
    %v4238 = vunpack.c.l.b16 %v4103
    %v4239 = vunpack.c.l.b16 %v4104
    %v4240 = vunpack.c.l.b16 %v4105
    %v4241 = vunpack.c.l.b16 %v4106
    %v4242 = vunpack.c.l.b16 %v4107
    %v4243 = vunpack.c.l.b16 %v4108
    %v4244 = vunpack.c.l.b16 %v4109
    %v4245 = vunpack.c.l.b16 %v4110
    %v4246 = vunpack.c.l.b16 %v4111
    %v4247 = vunpack.c.l.b16 %v4112
    %v4248 = vunpack.c.l.b16 %v4113
    %v4249 = vunpack.c.l.b16 %v4114
    %v4250 = vunpack.c.l.b16 %v4115
    %v4251 = vunpack.c.l.b16 %v4116
    %v4252 = vunpack.c.l.b16 %v4117
    %v4253 = vunpack.c.l.b16 %v4118
    %v4254 = vunpack.c.l.b16 %v4119
    %v4255 = vunpack.c.l.b16 %v4120
    %v4256 = vunpack.c.l.b16 %v4121
    %v4257 = vunpack.c.l.b16 %v4122
    %v4258 = vunpack.c.l.b16 %v4123
    %v4259 = vunpack.c.l.b16 %v4124
    %v4260 = vunpack.c.l.b16 %v4125
    %v4261 = vunpack.c.l.b16 %v4126
    %v4262 = vunpack.c.l.b16 %v4127
    %v4263 = vunpack.c.l.b16 %v4128
    %v4264 = vunpack.c.l.b16 %v4129
    %v4265 = vunpack.c.l.b16 %v4130
    %v4266 = vunpack.c.l.b16 %v4131
    %v4267 = vunpack.c.l.b16 %v4132
    %v4268 = vunpack.c.l.b16 %v4133
    %v4269 = vunpack.c.l.b16 %v4134
    %v4270 = vunpack.c.l.b16 %v4135
    %v4271 = vunpack.c.l.b16 %v4136
    %v4272 = vunpack.c.l.b16 %v4137
    %v4273 = vunpack.c.l.b16 %v4138
    %v4274 = vunpack.c.l.b16 %v4139
    %v4275 = vunpack.c.l.b16 %v4140
    %v4276 = vunpack.c.l.b16 %v4141
    %v4277 = vunpack.c.l.b16 %v4142
    %v4278 = vunpack.c.l.b16 %v4143
    %v4279 = vunpack.c.l.b16 %v4144
    %v4280 = vunpack.c.l.b16 %v4145
    %v4281 = vunpack.c.l.b16 %v4146
    %v4282 = vunpack.c.l.b16 %v4147
    %v4283 = vunpack.c.l.b16 %v4148
    %v4284 = vunpack.c.l.b16 %v4149
    %v4285 = vunpack.c.l.b16 %v4150
    %v4286 = vunpack.c.l.b16 %v4151
    %v4287 = vunpack.c.l.b16 %v4152
    %v4288 = vunpack.c.l.b16 %v4153
    %v4289 = vunpack.c.l.b16 %v4154
    %v4290 = vunpack.c.l.b16 %v4155
    %v4291 = vunpack.c.l.b16 %v4156
    %v4292 = vunpack.c.l.b16 %v4157
    %v4293 = vunpack.c.l.b16 %v4158
    %v4294 = vunpack.c.l.b16 %v4159
    %v4295 = vunpack.c.l.b16 %v4160
    %v4296 = vpack.c.b16 %v4233, %v4232
    %v4297 = vpack.c.b16 %v4235, %v4234
    %v4298 = vpack.c.b16 %v4237, %v4236
    %v4299 = vpack.c.b16 %v4239, %v4238
    %v4300 = vpack.c.b16 %v4241, %v4240
    %v4301 = vpack.c.b16 %v4243, %v4242
    %v4302 = vpack.c.b16 %v4245, %v4244
    %v4303 = vpack.c.b16 %v4247, %v4246
    %v4304 = vpack.c.b16 %v4249, %v4248
    %v4305 = vpack.c.b16 %v4251, %v4250
    %v4306 = vpack.c.b16 %v4253, %v4252
    %v4307 = vpack.c.b16 %v4255, %v4254
    %v4308 = vpack.c.b16 %v4257, %v4256
    %v4309 = vpack.c.b16 %v4259, %v4258
    %v4310 = vpack.c.b16 %v4261, %v4260
    %v4311 = vpack.c.b16 %v4263, %v4262
    %v4312 = vpack.c.b16 %v4265, %v4264
    %v4313 = vpack.c.b16 %v4267, %v4266
    %v4314 = vpack.c.b16 %v4269, %v4268
    %v4315 = vpack.c.b16 %v4271, %v4270
    %v4316 = vpack.c.b16 %v4273, %v4272
    %v4317 = vpack.c.b16 %v4275, %v4274
    %v4318 = vpack.c.b16 %v4277, %v4276
    %v4319 = vpack.c.b16 %v4279, %v4278
    %v4320 = vpack.c.b16 %v4281, %v4280
    %v4321 = vpack.c.b16 %v4283, %v4282
    %v4322 = vpack.c.b16 %v4285, %v4284
    %v4323 = vpack.c.b16 %v4287, %v4286
    %v4324 = vpack.c.b16 %v4289, %v4288
    %v4325 = vpack.c.b16 %v4291, %v4290
    %v4326 = vpack.c.b16 %v4293, %v4292
    %v4327 = vpack.c.b16 %v4295, %v4294
    %4360 = vmatprep.subr.bf16.mxu0 0
    %4361 = vmatpush1.bf16.msra.mxu0 %v4296
    %4362 = vmatprep.subr.bf16.mxu0 0
    %4363 = vmatpush1.bf16.msra.mxu0 %v4297
    %4364 = vmatprep.subr.bf16.mxu0 0
    %4365 = vmatpush1.bf16.msra.mxu0 %v4298
    %4366 = vmatprep.subr.bf16.mxu0 0
    %4367 = vmatpush1.bf16.msra.mxu0 %v4299
    %4368 = vmatprep.subr.bf16.mxu0 0
    %4369 = vmatpush1.bf16.msra.mxu0 %v4300
    %4370 = vmatprep.subr.bf16.mxu0 0
    %4371 = vmatpush1.bf16.msra.mxu0 %v4301
    %4372 = vmatprep.subr.bf16.mxu0 0
    %4373 = vmatpush1.bf16.msra.mxu0 %v4302
    %4374 = vmatprep.subr.bf16.mxu0 0
    %4375 = vmatpush1.bf16.msra.mxu0 %v4303
    %4376 = vmatprep.subr.bf16.mxu0 0
    %4377 = vmatpush1.bf16.msra.mxu0 %v4304
    %4378 = vmatprep.subr.bf16.mxu0 0
    %4379 = vmatpush1.bf16.msra.mxu0 %v4305
    %4380 = vmatprep.subr.bf16.mxu0 0
    %4381 = vmatpush1.bf16.msra.mxu0 %v4306
    %4382 = vmatprep.subr.bf16.mxu0 0
    %4383 = vmatpush1.bf16.msra.mxu0 %v4307
    %4384 = vmatprep.subr.bf16.mxu0 0
    %4385 = vmatpush1.bf16.msra.mxu0 %v4308
    %4386 = vmatprep.subr.bf16.mxu0 0
    %4387 = vmatpush1.bf16.msra.mxu0 %v4309
    %4388 = vmatprep.subr.bf16.mxu0 0
    %4389 = vmatpush1.bf16.msra.mxu0 %v4310
    %4390 = vmatprep.subr.bf16.mxu0 0
    %4391 = vmatpush1.bf16.msra.mxu0 %v4311
    %4392 = vmatprep.mubr.bf16.mxu0 %v4094
    %4393 = vmatmul.mubr.bf16.gmra.mrb[0].mxu0 %v4093
    %v4394 = vpop.f32.mrb[0].mxu0
    %v4395 = vadd.f32 %v4166, %v4394
    %v4396 = vpop.f32.mrb[0].mxu0
    %v4397 = vpop.f32.mrb[0].mxu0
    %v4398 = vpop.f32.mrb[0].mxu0
    %4399 = vdwg.mxu0
    %4400 = vmatprep.subr.bf16.mxu0 0
    %4401 = vmatpush1.bf16.msra.mxu0 %v4312
    %4402 = vmatprep.subr.bf16.mxu0 0
    %4403 = vmatpush1.bf16.msra.mxu0 %v4313
    %4404 = vmatprep.subr.bf16.mxu0 0
    %4405 = vmatpush1.bf16.msra.mxu0 %v4314
    %4406 = vmatprep.subr.bf16.mxu0 0
    %4407 = vmatpush1.bf16.msra.mxu0 %v4315
    %4408 = vmatprep.subr.bf16.mxu0 0
    %4409 = vmatpush1.bf16.msra.mxu0 %v4316
    %4410 = vmatprep.subr.bf16.mxu0 0
    %4411 = vmatpush1.bf16.msra.mxu0 %v4317
    %4412 = vmatprep.subr.bf16.mxu0 0
    %4413 = vmatpush1.bf16.msra.mxu0 %v4318
    %4414 = vmatprep.subr.bf16.mxu0 0
    %4415 = vmatpush1.bf16.msra.mxu0 %v4319
    %4416 = vmatprep.subr.bf16.mxu0 0
    %4417 = vmatpush1.bf16.msra.mxu0 %v4320
    %4418 = vmatprep.subr.bf16.mxu0 0
    %4419 = vmatpush1.bf16.msra.mxu0 %v4321
    %4420 = vmatprep.subr.bf16.mxu0 0
    %4421 = vmatpush1.bf16.msra.mxu0 %v4322
    %4422 = vmatprep.subr.bf16.mxu0 0
    %4423 = vmatpush1.bf16.msra.mxu0 %v4323
    %4424 = vmatprep.subr.bf16.mxu0 0
    %4425 = vmatpush1.bf16.msra.mxu0 %v4324
    %4426 = vmatprep.subr.bf16.mxu0 0
    %4427 = vmatpush1.bf16.msra.mxu0 %v4325
    %4428 = vmatprep.subr.bf16.mxu0 0
    %4429 = vmatpush1.bf16.msra.mxu0 %v4326
    %4430 = vmatprep.subr.bf16.mxu0 0
    %4431 = vmatpush1.bf16.msra.mxu0 %v4327
    %4432 = vmatprep.mubr.bf16.mxu0 %v4096
    %4433 = vmatmul.mubr.bf16.gmra.mrb[0].mxu0 %v4095
    %v4434 = vpop.f32.mrb[0].mxu0
    %v4435 = vadd.f32 %v4395, %v4434
    %v4436 = vpop.f32.mrb[0].mxu0
    %v4437 = vpop.f32.mrb[0].mxu0
    %v4438 = vpop.f32.mrb[0].mxu0
    %4439 = vdwg.mxu0
    %4440 = vst [vmem:[#allocation14] sm:$0x3] %v4435
    // Predicated region
    $region66: #{baseline_tail.1} parent=1 // pred_check
      _
    $region67: #{baseline_tail.1} parent=1 // pred_check_branch
      %4442 = sbr.rel (0) target = $region69
    $region68: #{baseline_tail.1} parent=1 // pred_region
      %s4444 = ssub.s32 128, 128
      %4445 = vsyncadd [#allocation4], %s4444
      %s4447 = sshll.u32 [#allocation13], 4
      %s4448 = int_to_ptr.vmem [resolvable:$true] %s4447
      %4450 = dma.vmem_to_hbm [thread:$0]  %s4448, 128, %s10, [#allocation4]
    $region69: #{baseline_tail.1} parent=1 // pred_fallthru
      _
    // Predicated region
    $region70: #{baseline_tail.1} parent=1 // pred_check
      _
    $region71: #{baseline_tail.1} parent=1 // pred_check_branch
      %4452 = sbr.rel (0) target = $region73
    $region72: #{baseline_tail.1} parent=1 // pred_region
      %s4454 = ssub.s32 32, 32
      %4455 = vsyncadd [#allocation15], %s4454
      %s4457 = sshll.u32 [#allocation14], 4
      %s4458 = int_to_ptr.vmem [resolvable:$true] %s4457
      %4460 = dma.vmem_to_hbm [thread:$0]  %s4458, 32, %s11, [#allocation15]
    $region73: #{baseline_tail.1} parent=1 // pred_fallthru
      _
    // Predicated region
    $region74: #{baseline_tail.1} parent=1 // pred_check
      _
    $region75: #{baseline_tail.1} parent=1 // pred_check_branch
      %4462 = sbr.rel (0) target = $region77
    $region76: #{baseline_tail.1} parent=1 // pred_region
      %4463 = dma.done [#allocation4], 128
    $region77: #{baseline_tail.1} parent=1 // pred_fallthru
      _
    // Predicated region
    $region78: #{baseline_tail.1} parent=1 // pred_check
      _
    $region79: #{baseline_tail.1} parent=1 // pred_check_branch
      %4465 = sbr.rel (0) target = $region81
    $region80: #{baseline_tail.1} parent=1 // pred_region
      %4466 = dma.done [#allocation15], 32
    $region81: #{baseline_tail.1} parent=1 // pred_fallthru
      _
    %4467 = vsyncpa [#allocation3], 1
    %4468 = vsyncpa [#allocation6], 1
    %4469 = vsyncpa [#allocation9], 1
    %4470 = vsyncpa [#allocation12], 1
    %4471 = vsyncpa [#allocation4], 1
    %4472 = vsyncpa [#allocation15], 1

</llo_original>
